<compile_context>
chip_gen: v6e
topology: v6e:2x2x1
jax: 0.10.0
libtpu: 0.0.40
codegen_flags: <defaults>
</compile_context>

<pallas_src>
import jax
import jax.numpy as jnp
from jax.experimental import pallas as pl
from jax.experimental.pallas import tpu as pltpu


PAD = 128  # classifier hidden width 100 zero-padded to a full 128-lane vreg


def _round_up(x, m):
    return ((x + m - 1) // m) * m


# ----------------------------------------------------------------------------
# Kernel: the whole MLP chain for one batch tile, fully in VMEM.
# Activations are (features, batch): batch lives on the lane axis.
# ----------------------------------------------------------------------------
def chen_mlp_kernel(xT_ref,
                    w1, b1, w2, b2, w3, b3, w4, b4,   # encoder
                    w5, b5, w6, b6,                   # classifier hidden (padded)
                    w7, b7,                           # final 128 -> 1
                    o_ref):
    h = xT_ref[...]                                   # (D_pad, tb) bf16

    def linear_relu(h, w_ref, b_ref):
        # bf16 operands into the MXU, f32 accumulation; bias + ReLU in f32.
        y = jnp.dot(w_ref[...], h.astype(jnp.bfloat16),
                    preferred_element_type=jnp.float32)
        return jnp.maximum(y + b_ref[...], 0.0)

    # encoder
    h = linear_relu(h, w1, b1)      # (512, tb)
    h = linear_relu(h, w2, b2)      # (384, tb)
    h = linear_relu(h, w3, b3)      # (256, tb)
    h = linear_relu(h, w4, b4)      # (128, tb)

    # classifier (Dropout == identity in eval mode; widths padded 100 -> 128)
    h = linear_relu(h, w5, b5)      # (128, tb)
    h = linear_relu(h, w6, b6)      # (128, tb)

    # Final Linear(128 -> 1): broadcast-multiply + sublane reduce on VPU/XLU,
    # fused with the sigmoid. Output row is lane-dense (1, tb).
    logits = jnp.sum(h * w7[...], axis=0, keepdims=True) + b7[...]   # (1, tb)
    o_ref[...] = jax.nn.sigmoid(logits).astype(o_ref.dtype)


# ----------------------------------------------------------------------------
# Wrapper: pad batch to a multiple of tile_b, tile over the (lane-dense) batch
# axis, broadcast the (grid-invariant) weights, reshape the output back.
# ----------------------------------------------------------------------------
def chen_encoder_mlp(x, kparams, *, tile_b=256):
    """x: (B, input_dim) float32.  kparams: output of prepare_params()."""
    B, D = x.shape
    D_pad = kparams[0][0].shape[1]          # first layer's (padded) in-features
    n_tiles = int(pl.cdiv(B, tile_b))
    B_pad = n_tiles * tile_b

    # Transpose to (features, batch), cast to bf16, zero-pad both axes.
    xT = jnp.zeros((D_pad, B_pad), jnp.bfloat16).at[:D, :B].set(
        x.T.astype(jnp.bfloat16))

    flat_params = []
    in_specs = [pl.BlockSpec((D_pad, tile_b), lambda i: (0, i))]
    for (w, b) in kparams:
        in_specs.append(pl.BlockSpec(w.shape, lambda i: (0, 0)))
        in_specs.append(pl.BlockSpec(b.shape, lambda i: (0, 0)))
        flat_params.extend([w, b])

    grid_spec = pltpu.PrefetchScalarGridSpec(
        num_scalar_prefetch=0,
        grid=(n_tiles,),
        in_specs=in_specs,
        out_specs=pl.BlockSpec((1, tile_b), lambda i: (0, i)),
    )

    out = pl.pallas_call(
        chen_mlp_kernel,
        out_shape=jax.ShapeDtypeStruct((1, B_pad), jnp.float32),
        grid_spec=grid_spec,
        compiler_params=pltpu.CompilerParams(
            dimension_semantics=("parallel",)),
    )(xT, *flat_params)

    return out[0, :B].reshape(B, 1)


# ----------------------------------------------------------------------------
# Parameter init (PyTorch layout: W (out,in), b (out,)) and kernel packing.
# ----------------------------------------------------------------------------
def init_params(key, input_dim):
    dims = [input_dim, 512, 384, 256, 128, 100, 100, 1]
    params = []
    for fan_in, fan_out in zip(dims[:-1], dims[1:]):
        key, kw, kb = jax.random.split(key, 3)
        bound = 1.0 / (float(fan_in) ** 0.5)
        w = jax.random.uniform(kw, (fan_out, fan_in), jnp.float32, -bound, bound)
        b = jax.random.uniform(kb, (fan_out,), jnp.float32, -bound, bound)
        params.append((w, b))
    return params


def prepare_params(params):
    """PyTorch-layout f32 params -> kernel format.

    - hidden layers: W bf16 (out_p, in_p), b f32 (out_p, 1).  The classifier
      widths are zero-padded 100 -> 128; the first layer's in-features are
      zero-padded up to a multiple of 8 (sublane alignment of the xT tile).
      All padding is zeros, so results are exact.
    - final layer: f32 column vector (128, 1) + scalar bias (1, 1).
    """
    kparams = []
    n = len(params)
    for idx, (w, b) in enumerate(params):
        out_f, in_f = w.shape
        if idx == n - 1:
            w_pad = jnp.zeros((out_f, PAD), jnp.float32).at[:, :in_f].set(w)
            kparams.append((w_pad.T, b.reshape(1, 1).astype(jnp.float32)))
        else:
            out_p = PAD if out_f == 100 else out_f
            if in_f == 100:
                in_p = PAD
            elif idx == 0:
                in_p = _round_up(in_f, 8)
            else:
                in_p = in_f
            w_pad = jnp.zeros((out_p, in_p), jnp.float32).at[:out_f, :in_f].set(w)
            b_pad = jnp.zeros((out_p, 1), jnp.float32).at[:out_f, 0].set(b)
            kparams.append((w_pad.astype(jnp.bfloat16), b_pad))
    return kparams


# ----------------------------------------------------------------------------
# Pure-JAX reference mirroring the kernel numerics (bf16 matmul operands,
# f32 accumulation, dropout == identity, final layer + sigmoid in f32).
# ----------------------------------------------------------------------------
def reference_forward(x, params):
    h = x
    n = len(params)
    for i, (w, b) in enumerate(params):
        if i < n - 1:
            y = jnp.dot(h.astype(jnp.bfloat16), w.T.astype(jnp.bfloat16),
                        preferred_element_type=jnp.float32) + b
            h = jnp.maximum(y, 0.0)
        else:
            h = jax.nn.sigmoid(jnp.dot(h, w.T) + b)
    return h


if __name__ == "__main__":
    key = jax.random.PRNGKey(0)
    key, kx = jax.random.split(key)

    INPUT_DIM = 77   # deliberately not a multiple of 8: exercises D padding
    BATCH = 300      # not a multiple of tile_b: exercises cdiv + batch padding

    x = jax.random.normal(kx, (BATCH, INPUT_DIM), jnp.float32)
    params = init_params(key, INPUT_DIM)
    kparams = prepare_params(params)

    out = chen_encoder_mlp(x, kparams, tile_b=256)
    out = jax.block_until_ready(out)

    ref = reference_forward(x, params)
    assert out.shape == (BATCH, 1), out.shape
    err = float(jnp.max(jnp.abs(out - ref)))
    assert err < 5e-4, f"max abs diff {err}"

    print("KERNEL_OK")
</pallas_src>

<mosaic_0001>
module attributes {stable_mosaic.version = 11 : i64} {
  func.func @chen_mlp_kernel(%arg0: i32, %arg1: memref<80x256xbf16, #tpu.memory_space<vmem>>, %arg2: memref<512x80xbf16, #tpu.memory_space<vmem>>, %arg3: memref<512x1xf32, #tpu.memory_space<vmem>>, %arg4: memref<384x512xbf16, #tpu.memory_space<vmem>>, %arg5: memref<384x1xf32, #tpu.memory_space<vmem>>, %arg6: memref<256x384xbf16, #tpu.memory_space<vmem>>, %arg7: memref<256x1xf32, #tpu.memory_space<vmem>>, %arg8: memref<128x256xbf16, #tpu.memory_space<vmem>>, %arg9: memref<128x1xf32, #tpu.memory_space<vmem>>, %arg10: memref<128x128xbf16, #tpu.memory_space<vmem>>, %arg11: memref<128x1xf32, #tpu.memory_space<vmem>>, %arg12: memref<128x128xbf16, #tpu.memory_space<vmem>>, %arg13: memref<128x1xf32, #tpu.memory_space<vmem>>, %arg14: memref<128x1xf32, #tpu.memory_space<vmem>>, %arg15: memref<1x1xf32, #tpu.memory_space<vmem>>, %arg16: memref<1x256xf32, #tpu.memory_space<vmem>>) attributes {dimension_semantics = [#tpu.dimension_semantics<parallel>], iteration_bounds = array<i64: 2>, scalar_prefetch = 0 : i64, scratch_operands = 0 : i64, tpu.core_type = #tpu.core_type<tc>, window_params = [{transform_indices = @transform_0, window_bounds = array<i64: 80, 256>}, {pipeline_mode = #tpu.pipeline_mode<synchronous>, transform_indices = @transform_1, window_bounds = array<i64: 512, 80>}, {pipeline_mode = #tpu.pipeline_mode<synchronous>, transform_indices = @transform_2, window_bounds = array<i64: 512, 1>}, {pipeline_mode = #tpu.pipeline_mode<synchronous>, transform_indices = @transform_3, window_bounds = array<i64: 384, 512>}, {pipeline_mode = #tpu.pipeline_mode<synchronous>, transform_indices = @transform_4, window_bounds = array<i64: 384, 1>}, {pipeline_mode = #tpu.pipeline_mode<synchronous>, transform_indices = @transform_5, window_bounds = array<i64: 256, 384>}, {pipeline_mode = #tpu.pipeline_mode<synchronous>, transform_indices = @transform_6, window_bounds = array<i64: 256, 1>}, {pipeline_mode = #tpu.pipeline_mode<synchronous>, transform_indices = @transform_7, window_bounds = array<i64: 128, 256>}, {pipeline_mode = #tpu.pipeline_mode<synchronous>, transform_indices = @transform_8, window_bounds = array<i64: 128, 1>}, {pipeline_mode = #tpu.pipeline_mode<synchronous>, transform_indices = @transform_9, window_bounds = array<i64: 128, 128>}, {pipeline_mode = #tpu.pipeline_mode<synchronous>, transform_indices = @transform_10, window_bounds = array<i64: 128, 1>}, {pipeline_mode = #tpu.pipeline_mode<synchronous>, transform_indices = @transform_11, window_bounds = array<i64: 128, 128>}, {pipeline_mode = #tpu.pipeline_mode<synchronous>, transform_indices = @transform_12, window_bounds = array<i64: 128, 1>}, {pipeline_mode = #tpu.pipeline_mode<synchronous>, transform_indices = @transform_13, window_bounds = array<i64: 128, 1>}, {pipeline_mode = #tpu.pipeline_mode<synchronous>, transform_indices = @transform_14, window_bounds = array<i64: 1, 1>}, {transform_indices = @transform_15, window_bounds = array<i64: 1, 256>}]} {
    %c0 = arith.constant 0 : index
    %c0_0 = arith.constant 0 : index
    %0 = vector.load %arg1[%c0, %c0_0] : memref<80x256xbf16, #tpu.memory_space<vmem>>, vector<80x256xbf16>
    %c0_1 = arith.constant 0 : index
    %c0_2 = arith.constant 0 : index
    %1 = vector.load %arg2[%c0_1, %c0_2] : memref<512x80xbf16, #tpu.memory_space<vmem>>, vector<512x80xbf16>
    %cst = arith.constant dense<0.000000e+00> : vector<512x256xf32>
    %2 = tpu.matmul %1, %0, %cst {dimension_numbers = #tpu.dot_dimension_numbers<[1], [0], [0], [1], [0, 0, 1, 1], [], []>} : vector<512x80xbf16>, vector<80x256xbf16>, vector<512x256xf32> -> vector<512x256xf32>
    %c0_3 = arith.constant 0 : index
    %c0_4 = arith.constant 0 : index
    %3 = vector.load %arg3[%c0_3, %c0_4] : memref<512x1xf32, #tpu.memory_space<vmem>>, vector<512x1xf32>
    %4 = vector.broadcast %3 : vector<512x1xf32> to vector<512x256xf32>
    %5 = arith.addf %2, %4 : vector<512x256xf32>
    %cst_5 = arith.constant 0.000000e+00 : f32
    %6 = vector.broadcast %cst_5 : f32 to vector<512x256xf32>
    %7 = arith.maximumf %5, %6 : vector<512x256xf32>
    %c0_6 = arith.constant 0 : index
    %c0_7 = arith.constant 0 : index
    %8 = vector.load %arg4[%c0_6, %c0_7] : memref<384x512xbf16, #tpu.memory_space<vmem>>, vector<384x512xbf16>
    %9 = arith.truncf %7 : vector<512x256xf32> to vector<512x256xbf16>
    %cst_8 = arith.constant dense<0.000000e+00> : vector<384x256xf32>
    %10 = tpu.matmul %8, %9, %cst_8 {dimension_numbers = #tpu.dot_dimension_numbers<[1], [0], [0], [1], [0, 0, 1, 1], [], []>} : vector<384x512xbf16>, vector<512x256xbf16>, vector<384x256xf32> -> vector<384x256xf32>
    %c0_9 = arith.constant 0 : index
    %c0_10 = arith.constant 0 : index
    %11 = vector.load %arg5[%c0_9, %c0_10] : memref<384x1xf32, #tpu.memory_space<vmem>>, vector<384x1xf32>
    %12 = vector.broadcast %11 : vector<384x1xf32> to vector<384x256xf32>
    %13 = arith.addf %10, %12 : vector<384x256xf32>
    %cst_11 = arith.constant 0.000000e+00 : f32
    %14 = vector.broadcast %cst_11 : f32 to vector<384x256xf32>
    %15 = arith.maximumf %13, %14 : vector<384x256xf32>
    %c0_12 = arith.constant 0 : index
    %c0_13 = arith.constant 0 : index
    %16 = vector.load %arg6[%c0_12, %c0_13] : memref<256x384xbf16, #tpu.memory_space<vmem>>, vector<256x384xbf16>
    %17 = arith.truncf %15 : vector<384x256xf32> to vector<384x256xbf16>
    %cst_14 = arith.constant dense<0.000000e+00> : vector<256x256xf32>
    %18 = tpu.matmul %16, %17, %cst_14 {dimension_numbers = #tpu.dot_dimension_numbers<[1], [0], [0], [1], [0, 0, 1, 1], [], []>} : vector<256x384xbf16>, vector<384x256xbf16>, vector<256x256xf32> -> vector<256x256xf32>
    %c0_15 = arith.constant 0 : index
    %c0_16 = arith.constant 0 : index
    %19 = vector.load %arg7[%c0_15, %c0_16] : memref<256x1xf32, #tpu.memory_space<vmem>>, vector<256x1xf32>
    %20 = vector.broadcast %19 : vector<256x1xf32> to vector<256x256xf32>
    %21 = arith.addf %18, %20 : vector<256x256xf32>
    %cst_17 = arith.constant 0.000000e+00 : f32
    %22 = vector.broadcast %cst_17 : f32 to vector<256x256xf32>
    %23 = arith.maximumf %21, %22 : vector<256x256xf32>
    %c0_18 = arith.constant 0 : index
    %c0_19 = arith.constant 0 : index
    %24 = vector.load %arg8[%c0_18, %c0_19] : memref<128x256xbf16, #tpu.memory_space<vmem>>, vector<128x256xbf16>
    %25 = arith.truncf %23 : vector<256x256xf32> to vector<256x256xbf16>
    %cst_20 = arith.constant dense<0.000000e+00> : vector<128x256xf32>
    %26 = tpu.matmul %24, %25, %cst_20 {dimension_numbers = #tpu.dot_dimension_numbers<[1], [0], [0], [1], [0, 0, 1, 1], [], []>} : vector<128x256xbf16>, vector<256x256xbf16>, vector<128x256xf32> -> vector<128x256xf32>
    %c0_21 = arith.constant 0 : index
    %c0_22 = arith.constant 0 : index
    %27 = vector.load %arg9[%c0_21, %c0_22] : memref<128x1xf32, #tpu.memory_space<vmem>>, vector<128x1xf32>
    %28 = vector.broadcast %27 : vector<128x1xf32> to vector<128x256xf32>
    %29 = arith.addf %26, %28 : vector<128x256xf32>
    %cst_23 = arith.constant 0.000000e+00 : f32
    %30 = vector.broadcast %cst_23 : f32 to vector<128x256xf32>
    %31 = arith.maximumf %29, %30 : vector<128x256xf32>
    %c0_24 = arith.constant 0 : index
    %c0_25 = arith.constant 0 : index
    %32 = vector.load %arg10[%c0_24, %c0_25] : memref<128x128xbf16, #tpu.memory_space<vmem>>, vector<128x128xbf16>
    %33 = arith.truncf %31 : vector<128x256xf32> to vector<128x256xbf16>
    %cst_26 = arith.constant dense<0.000000e+00> : vector<128x256xf32>
    %34 = tpu.matmul %32, %33, %cst_26 {dimension_numbers = #tpu.dot_dimension_numbers<[1], [0], [0], [1], [0, 0, 1, 1], [], []>} : vector<128x128xbf16>, vector<128x256xbf16>, vector<128x256xf32> -> vector<128x256xf32>
    %c0_27 = arith.constant 0 : index
    %c0_28 = arith.constant 0 : index
    %35 = vector.load %arg11[%c0_27, %c0_28] : memref<128x1xf32, #tpu.memory_space<vmem>>, vector<128x1xf32>
    %36 = vector.broadcast %35 : vector<128x1xf32> to vector<128x256xf32>
    %37 = arith.addf %34, %36 : vector<128x256xf32>
    %cst_29 = arith.constant 0.000000e+00 : f32
    %38 = vector.broadcast %cst_29 : f32 to vector<128x256xf32>
    %39 = arith.maximumf %37, %38 : vector<128x256xf32>
    %c0_30 = arith.constant 0 : index
    %c0_31 = arith.constant 0 : index
    %40 = vector.load %arg12[%c0_30, %c0_31] : memref<128x128xbf16, #tpu.memory_space<vmem>>, vector<128x128xbf16>
    %41 = arith.truncf %39 : vector<128x256xf32> to vector<128x256xbf16>
    %cst_32 = arith.constant dense<0.000000e+00> : vector<128x256xf32>
    %42 = tpu.matmul %40, %41, %cst_32 {dimension_numbers = #tpu.dot_dimension_numbers<[1], [0], [0], [1], [0, 0, 1, 1], [], []>} : vector<128x128xbf16>, vector<128x256xbf16>, vector<128x256xf32> -> vector<128x256xf32>
    %c0_33 = arith.constant 0 : index
    %c0_34 = arith.constant 0 : index
    %43 = vector.load %arg13[%c0_33, %c0_34] : memref<128x1xf32, #tpu.memory_space<vmem>>, vector<128x1xf32>
    %44 = vector.broadcast %43 : vector<128x1xf32> to vector<128x256xf32>
    %45 = arith.addf %42, %44 : vector<128x256xf32>
    %cst_35 = arith.constant 0.000000e+00 : f32
    %46 = vector.broadcast %cst_35 : f32 to vector<128x256xf32>
    %47 = arith.maximumf %45, %46 : vector<128x256xf32>
    %c0_36 = arith.constant 0 : index
    %c0_37 = arith.constant 0 : index
    %48 = vector.load %arg14[%c0_36, %c0_37] : memref<128x1xf32, #tpu.memory_space<vmem>>, vector<128x1xf32>
    %49 = vector.broadcast %48 : vector<128x1xf32> to vector<128x256xf32>
    %50 = arith.mulf %47, %49 : vector<128x256xf32>
    %cst_38 = arith.constant dense<0.000000e+00> : vector<256xf32>
    %51 = vector.multi_reduction <add>, %50, %cst_38 [0] : vector<128x256xf32> to vector<256xf32>
    %52 = vector.shape_cast %51 : vector<256xf32> to vector<1x256xf32>
    %c0_39 = arith.constant 0 : index
    %c0_40 = arith.constant 0 : index
    %53 = vector.load %arg15[%c0_39, %c0_40] : memref<1x1xf32, #tpu.memory_space<vmem>>, vector<1x1xf32>
    %54 = vector.broadcast %53 : vector<1x1xf32> to vector<1x256xf32>
    %55 = arith.addf %52, %54 : vector<1x256xf32>
    %56 = arith.negf %55 : vector<1x256xf32>
    %57 = math.exp %56 : vector<1x256xf32>
    %cst_41 = arith.constant 1.000000e+00 : f32
    %58 = vector.broadcast %cst_41 : f32 to vector<1x256xf32>
    %59 = arith.addf %58, %57 : vector<1x256xf32>
    %60 = arith.divf %58, %59 : vector<1x256xf32>
    %c0_42 = arith.constant 0 : index
    %c0_43 = arith.constant 0 : index
    %61 = vector.load %arg16[%c0_42, %c0_43] : memref<1x256xf32, #tpu.memory_space<vmem>>, vector<1x256xf32>
    tpu.vector_store %arg16[%c0_42, %c0_43], %60 {strides = array<i32>} : memref<1x256xf32, #tpu.memory_space<vmem>>, vector<1x256xf32>,
    return
  }
  func.func @transform_0(%arg0: i32) -> (i32, i32) {
    %c0_i32 = arith.constant 0 : i32
    %c0_i32_0 = arith.constant 0 : i32
    return %c0_i32, %arg0 : i32, i32
  }
  func.func @transform_1(%arg0: i32) -> (i32, i32) {
    %c0_i32 = arith.constant 0 : i32
    %c0_i32_0 = arith.constant 0 : i32
    %c0_i32_1 = arith.constant 0 : i32
    return %c0_i32, %c0_i32_0 : i32, i32
  }
  func.func @transform_2(%arg0: i32) -> (i32, i32) {
    %c0_i32 = arith.constant 0 : i32
    %c0_i32_0 = arith.constant 0 : i32
    %c0_i32_1 = arith.constant 0 : i32
    return %c0_i32, %c0_i32_0 : i32, i32
  }
  func.func @transform_3(%arg0: i32) -> (i32, i32) {
    %c0_i32 = arith.constant 0 : i32
    %c0_i32_0 = arith.constant 0 : i32
    %c0_i32_1 = arith.constant 0 : i32
    return %c0_i32, %c0_i32_0 : i32, i32
  }
  func.func @transform_4(%arg0: i32) -> (i32, i32) {
    %c0_i32 = arith.constant 0 : i32
    %c0_i32_0 = arith.constant 0 : i32
    %c0_i32_1 = arith.constant 0 : i32
    return %c0_i32, %c0_i32_0 : i32, i32
  }
  func.func @transform_5(%arg0: i32) -> (i32, i32) {
    %c0_i32 = arith.constant 0 : i32
    %c0_i32_0 = arith.constant 0 : i32
    %c0_i32_1 = arith.constant 0 : i32
    return %c0_i32, %c0_i32_0 : i32, i32
  }
  func.func @transform_6(%arg0: i32) -> (i32, i32) {
    %c0_i32 = arith.constant 0 : i32
    %c0_i32_0 = arith.constant 0 : i32
    %c0_i32_1 = arith.constant 0 : i32
    return %c0_i32, %c0_i32_0 : i32, i32
  }
  func.func @transform_7(%arg0: i32) -> (i32, i32) {
    %c0_i32 = arith.constant 0 : i32
    %c0_i32_0 = arith.constant 0 : i32
    %c0_i32_1 = arith.constant 0 : i32
    return %c0_i32, %c0_i32_0 : i32, i32
  }
  func.func @transform_8(%arg0: i32) -> (i32, i32) {
    %c0_i32 = arith.constant 0 : i32
    %c0_i32_0 = arith.constant 0 : i32
    %c0_i32_1 = arith.constant 0 : i32
    return %c0_i32, %c0_i32_0 : i32, i32
  }
  func.func @transform_9(%arg0: i32) -> (i32, i32) {
    %c0_i32 = arith.constant 0 : i32
    %c0_i32_0 = arith.constant 0 : i32
    %c0_i32_1 = arith.constant 0 : i32
    return %c0_i32, %c0_i32_0 : i32, i32
  }
  func.func @transform_10(%arg0: i32) -> (i32, i32) {
    %c0_i32 = arith.constant 0 : i32
    %c0_i32_0 = arith.constant 0 : i32
    %c0_i32_1 = arith.constant 0 : i32
    return %c0_i32, %c0_i32_0 : i32, i32
  }
  func.func @transform_11(%arg0: i32) -> (i32, i32) {
    %c0_i32 = arith.constant 0 : i32
    %c0_i32_0 = arith.constant 0 : i32
    %c0_i32_1 = arith.constant 0 : i32
    return %c0_i32, %c0_i32_0 : i32, i32
  }
  func.func @transform_12(%arg0: i32) -> (i32, i32) {
    %c0_i32 = arith.constant 0 : i32
    %c0_i32_0 = arith.constant 0 : i32
    %c0_i32_1 = arith.constant 0 : i32
    return %c0_i32, %c0_i32_0 : i32, i32
  }
  func.func @transform_13(%arg0: i32) -> (i32, i32) {
    %c0_i32 = arith.constant 0 : i32
    %c0_i32_0 = arith.constant 0 : i32
    %c0_i32_1 = arith.constant 0 : i32
    return %c0_i32, %c0_i32_0 : i32, i32
  }
  func.func @transform_14(%arg0: i32) -> (i32, i32) {
    %c0_i32 = arith.constant 0 : i32
    %c0_i32_0 = arith.constant 0 : i32
    %c0_i32_1 = arith.constant 0 : i32
    return %c0_i32, %c0_i32_0 : i32, i32
  }
  func.func @transform_15(%arg0: i32) -> (i32, i32) {
    %c0_i32 = arith.constant 0 : i32
    %c0_i32_0 = arith.constant 0 : i32
    return %c0_i32, %arg0 : i32, i32
  }
}

</mosaic_0001>

<llo_original>
// kernel: tpu_custom_call.1
$region0: #{tpu_custom_call.1}
  #allocation0 [shape = 'u32[]', space=smem, size = 0x4, offset = 0x4, fixed_abs, tag = 'smem constant byte address 0x4 - core index']
  #allocation1 [shape = 'u32[144,128]{1,0:T(1,128)}', space=vmem, size = 0x12000, scoped, tag = 'internal scratch']
  #allocation2 [shape = 'f32[1,1]{1,0:T(1,128)S(1)}', space=vmem, size = 0x200, scoped, tag = 'scoped memory for tpu_custom_call.1']
  %s0 = inlined_call_operand.vmem [shape: bf16[80,512], index: 0, kind: input, shape index: {}]
  %s1 = inlined_call_operand.vmem [shape: bf16[512,80], index: 1, kind: input, shape index: {}]
  %s2 = inlined_call_operand.vmem [shape: f32[512,1], index: 2, kind: input, shape index: {}]
  %s3 = inlined_call_operand.vmem [shape: bf16[384,512], index: 3, kind: input, shape index: {}]
  %s4 = inlined_call_operand.vmem [shape: f32[384,1], index: 4, kind: input, shape index: {}]
  %s5 = inlined_call_operand.vmem [shape: bf16[256,384], index: 5, kind: input, shape index: {}]
  %s6 = inlined_call_operand.vmem [shape: f32[256,1], index: 6, kind: input, shape index: {}]
  %s7 = inlined_call_operand.vmem [shape: bf16[128,256], index: 7, kind: input, shape index: {}]
  %s8 = inlined_call_operand.vmem [shape: f32[128,1], index: 8, kind: input, shape index: {}]
  %s9 = inlined_call_operand.vmem [shape: bf16[128,128], index: 9, kind: input, shape index: {}]
  %s10 = inlined_call_operand.vmem [shape: f32[128,1], index: 10, kind: input, shape index: {}]
  %s11 = inlined_call_operand.vmem [shape: bf16[128,128], index: 11, kind: input, shape index: {}]
  %s12 = inlined_call_operand.vmem [shape: f32[128,1], index: 12, kind: input, shape index: {}]
  %s13 = inlined_call_operand.vmem [shape: f32[128,1], index: 13, kind: input, shape index: {}]
  %s14 = inlined_call_operand.<no memory space> [shape: f32[1,1], index: 14, kind: input, shape index: {}]
  %s15 = inlined_call_operand.hbm [shape: f32[1,512], index: 15, kind: output, shape index: {}]
  %s16 = sld [smem:[#allocation0]]
  $region131: #{tpu_custom_call.1} parent=0
    _
  %s18 = ssub.s32 1, %s16
  %s19 = scalar_select 0, %s18, %s16
  %v20 = vstv %s14
  %21 = vst [vmem:[#allocation2] sm:$0x1] %v20
  $region1: #{tpu_custom_call.1} parent=0
    #allocation3 [shape = 'u8[81920]{0}', space=vmem, size = 0x14000, scoped, tag = 'input window, operand 0']
    #allocation4 [shape = 'u8[2048]{0}', space=vmem, size = 0x800, scoped, tag = 'output window, operand 0']
    #allocation5 [shape = 's32[2]{0}', space=sflag, size = 0x8, scoped, tag = 'scoped memory for tpu_custom_call.1']
    %22 = vsyncpa [#allocation5], 0
    %s23 = scalar_lea.sflag [#allocation5], 1
    %24 = vsyncpa %s23, 0
    loop: start=0, step=1, limit=4
    $region2: #{tpu_custom_call.1} parent=1 // loop_pre_header
      _
    $region3: #{tpu_custom_call.1} parent=1 // loop_header
      %s26 = sphi 0, %s30
      %p27 = scmp.ge.s32.totalorder %s26, 4
      %s36 = sphi 0, %s38
      %s39 = sphi 0, %s36
      %s40 = sphi 0, %s39
      %s56 = sphi 0, %s40
      %s60 = sphi 0, %s60
      %s62 = sphi 0, %s60
      %s63 = sphi 0, %s62
      %s77 = sphi 0, %s63
      %s81 = sphi 0, %s81
      %s83 = sphi 0, %s81
      %s84 = sphi 0, %s83
      %s98 = sphi 0, %s84
      %s102 = sphi 0, %s102
      %s104 = sphi 0, %s102
      %s105 = sphi 0, %s104
      %s119 = sphi 0, %s105
      %s123 = sphi 0, %s123
      %s125 = sphi 0, %s123
      %s126 = sphi 0, %s125
      %s140 = sphi 0, %s126
      %s144 = sphi 0, %s144
      %s146 = sphi 0, %s144
      %s147 = sphi 0, %s146
      %s161 = sphi 0, %s147
      %s165 = sphi 0, %s165
      %s167 = sphi 0, %s165
      %s168 = sphi 0, %s167
      %s182 = sphi 0, %s168
      %s186 = sphi 0, %s186
      %s188 = sphi 0, %s186
      %s189 = sphi 0, %s188
      %s203 = sphi 0, %s189
      %s207 = sphi 0, %s207
      %s209 = sphi 0, %s207
      %s210 = sphi 0, %s209
      %s224 = sphi 0, %s210
      %s228 = sphi 0, %s228
      %s230 = sphi 0, %s228
      %s231 = sphi 0, %s230
      %s245 = sphi 0, %s231
      %s249 = sphi 0, %s249
      %s251 = sphi 0, %s249
      %s252 = sphi 0, %s251
      %s266 = sphi 0, %s252
      %s270 = sphi 0, %s270
      %s272 = sphi 0, %s270
      %s273 = sphi 0, %s272
      %s287 = sphi 0, %s273
      %s291 = sphi 0, %s291
      %s293 = sphi 0, %s291
      %s294 = sphi 0, %s293
      %s308 = sphi 0, %s294
      %s312 = sphi 0, %s312
      %s314 = sphi 0, %s312
      %s315 = sphi 0, %s314
      %s329 = sphi 0, %s315
      %s333 = sphi 0, %s333
      %s335 = sphi 0, %s333
      %s336 = sphi 0, %s335
      %s350 = sphi 0, %s336
      %s356 = sphi 0, %s358
      %s359 = sphi 0, %s356
      %s360 = sphi 0, %s359
      %s376 = sphi 0, %s360
    $region4: #{tpu_custom_call.1} parent=1 // loop_header_branch
      %29 = sbr.rel (%p27) target = $region8
    $region5: #{tpu_custom_call.1} parent=1 // loop_body
      %s31 = ssub.s32 %s26, 1
      %s32 = ssub.s32 %s26, 2
      %s33 = sadd.s32 %s26, 1
      %s34 = ssub.s32 %s26, %s33
      %p35 = scmp.eq.s32.totalorder %s34, 0
      %s37 = sadd.s32 %s36, 1
      %s38 = scalar_select %p35, %s36, %s37
      %p41 = pneg %p35
      %p42 = scmp.eq.s32.totalorder %s26, 1
      %p43 = por %p41, %p42
      %p44 = scmp.ne.s32.totalorder %s36, %s39
      %p45 = scmp.eq.s32.totalorder %s26, 0
      %p46 = por %p44, %p45
      %p47 = scmp.ne.s32.totalorder %s36, %s39
      %p48 = scmp.eq.s32.totalorder %s31, 1
      %p49 = por %p47, %p48
      %p50 = scmp.ne.s32.totalorder %s39, %s40
      %p51 = scmp.eq.s32.totalorder %s31, 0
      %p52 = por %p50, %p51
      %p53 = scmp.ne.s32.totalorder %s39, %s40
      %p54 = scmp.eq.s32.totalorder %s32, 1
      %p55 = por %p53, %p54
      %p57 = scmp.ne.s32.totalorder %s40, %s56
      %p58 = scmp.eq.s32.totalorder %s32, 0
      %p59 = por %p57, %p58
      %s61 = sadd.s32 %s60, 1
      %p64 = scmp.eq.s32.totalorder %s26, 1
      %p65 = scmp.ne.s32.totalorder %s60, %s62
      %p66 = scmp.eq.s32.totalorder %s26, 0
      %p67 = por %p65, %p66
      %p68 = scmp.ne.s32.totalorder %s60, %s62
      %p69 = scmp.eq.s32.totalorder %s31, 1
      %p70 = por %p68, %p69
      %p71 = scmp.ne.s32.totalorder %s62, %s63
      %p72 = scmp.eq.s32.totalorder %s31, 0
      %p73 = por %p71, %p72
      %p74 = scmp.ne.s32.totalorder %s62, %s63
      %p75 = scmp.eq.s32.totalorder %s32, 1
      %p76 = por %p74, %p75
      %p78 = scmp.ne.s32.totalorder %s63, %s77
      %p79 = scmp.eq.s32.totalorder %s32, 0
      %p80 = por %p78, %p79
      %s82 = sadd.s32 %s81, 1
      %p85 = scmp.eq.s32.totalorder %s26, 1
      %p86 = scmp.ne.s32.totalorder %s81, %s83
      %p87 = scmp.eq.s32.totalorder %s26, 0
      %p88 = por %p86, %p87
      %p89 = scmp.ne.s32.totalorder %s81, %s83
      %p90 = scmp.eq.s32.totalorder %s31, 1
      %p91 = por %p89, %p90
      %p92 = scmp.ne.s32.totalorder %s83, %s84
      %p93 = scmp.eq.s32.totalorder %s31, 0
      %p94 = por %p92, %p93
      %p95 = scmp.ne.s32.totalorder %s83, %s84
      %p96 = scmp.eq.s32.totalorder %s32, 1
      %p97 = por %p95, %p96
      %p99 = scmp.ne.s32.totalorder %s84, %s98
      %p100 = scmp.eq.s32.totalorder %s32, 0
      %p101 = por %p99, %p100
      %s103 = sadd.s32 %s102, 1
      %p106 = scmp.eq.s32.totalorder %s26, 1
      %p107 = scmp.ne.s32.totalorder %s102, %s104
      %p108 = scmp.eq.s32.totalorder %s26, 0
      %p109 = por %p107, %p108
      %p110 = scmp.ne.s32.totalorder %s102, %s104
      %p111 = scmp.eq.s32.totalorder %s31, 1
      %p112 = por %p110, %p111
      %p113 = scmp.ne.s32.totalorder %s104, %s105
      %p114 = scmp.eq.s32.totalorder %s31, 0
      %p115 = por %p113, %p114
      %p116 = scmp.ne.s32.totalorder %s104, %s105
      %p117 = scmp.eq.s32.totalorder %s32, 1
      %p118 = por %p116, %p117
      %p120 = scmp.ne.s32.totalorder %s105, %s119
      %p121 = scmp.eq.s32.totalorder %s32, 0
      %p122 = por %p120, %p121
      %s124 = sadd.s32 %s123, 1
      %p127 = scmp.eq.s32.totalorder %s26, 1
      %p128 = scmp.ne.s32.totalorder %s123, %s125
      %p129 = scmp.eq.s32.totalorder %s26, 0
      %p130 = por %p128, %p129
      %p131 = scmp.ne.s32.totalorder %s123, %s125
      %p132 = scmp.eq.s32.totalorder %s31, 1
      %p133 = por %p131, %p132
      %p134 = scmp.ne.s32.totalorder %s125, %s126
      %p135 = scmp.eq.s32.totalorder %s31, 0
      %p136 = por %p134, %p135
      %p137 = scmp.ne.s32.totalorder %s125, %s126
      %p138 = scmp.eq.s32.totalorder %s32, 1
      %p139 = por %p137, %p138
      %p141 = scmp.ne.s32.totalorder %s126, %s140
      %p142 = scmp.eq.s32.totalorder %s32, 0
      %p143 = por %p141, %p142
      %s145 = sadd.s32 %s144, 1
      %p148 = scmp.eq.s32.totalorder %s26, 1
      %p149 = scmp.ne.s32.totalorder %s144, %s146
      %p150 = scmp.eq.s32.totalorder %s26, 0
      %p151 = por %p149, %p150
      %p152 = scmp.ne.s32.totalorder %s144, %s146
      %p153 = scmp.eq.s32.totalorder %s31, 1
      %p154 = por %p152, %p153
      %p155 = scmp.ne.s32.totalorder %s146, %s147
      %p156 = scmp.eq.s32.totalorder %s31, 0
      %p157 = por %p155, %p156
      %p158 = scmp.ne.s32.totalorder %s146, %s147
      %p159 = scmp.eq.s32.totalorder %s32, 1
      %p160 = por %p158, %p159
      %p162 = scmp.ne.s32.totalorder %s147, %s161
      %p163 = scmp.eq.s32.totalorder %s32, 0
      %p164 = por %p162, %p163
      %s166 = sadd.s32 %s165, 1
      %p169 = scmp.eq.s32.totalorder %s26, 1
      %p170 = scmp.ne.s32.totalorder %s165, %s167
      %p171 = scmp.eq.s32.totalorder %s26, 0
      %p172 = por %p170, %p171
      %p173 = scmp.ne.s32.totalorder %s165, %s167
      %p174 = scmp.eq.s32.totalorder %s31, 1
      %p175 = por %p173, %p174
      %p176 = scmp.ne.s32.totalorder %s167, %s168
      %p177 = scmp.eq.s32.totalorder %s31, 0
      %p178 = por %p176, %p177
      %p179 = scmp.ne.s32.totalorder %s167, %s168
      %p180 = scmp.eq.s32.totalorder %s32, 1
      %p181 = por %p179, %p180
      %p183 = scmp.ne.s32.totalorder %s168, %s182
      %p184 = scmp.eq.s32.totalorder %s32, 0
      %p185 = por %p183, %p184
      %s187 = sadd.s32 %s186, 1
      %p190 = scmp.eq.s32.totalorder %s26, 1
      %p191 = scmp.ne.s32.totalorder %s186, %s188
      %p192 = scmp.eq.s32.totalorder %s26, 0
      %p193 = por %p191, %p192
      %p194 = scmp.ne.s32.totalorder %s186, %s188
      %p195 = scmp.eq.s32.totalorder %s31, 1
      %p196 = por %p194, %p195
      %p197 = scmp.ne.s32.totalorder %s188, %s189
      %p198 = scmp.eq.s32.totalorder %s31, 0
      %p199 = por %p197, %p198
      %p200 = scmp.ne.s32.totalorder %s188, %s189
      %p201 = scmp.eq.s32.totalorder %s32, 1
      %p202 = por %p200, %p201
      %p204 = scmp.ne.s32.totalorder %s189, %s203
      %p205 = scmp.eq.s32.totalorder %s32, 0
      %p206 = por %p204, %p205
      %s208 = sadd.s32 %s207, 1
      %p211 = scmp.eq.s32.totalorder %s26, 1
      %p212 = scmp.ne.s32.totalorder %s207, %s209
      %p213 = scmp.eq.s32.totalorder %s26, 0
      %p214 = por %p212, %p213
      %p215 = scmp.ne.s32.totalorder %s207, %s209
      %p216 = scmp.eq.s32.totalorder %s31, 1
      %p217 = por %p215, %p216
      %p218 = scmp.ne.s32.totalorder %s209, %s210
      %p219 = scmp.eq.s32.totalorder %s31, 0
      %p220 = por %p218, %p219
      %p221 = scmp.ne.s32.totalorder %s209, %s210
      %p222 = scmp.eq.s32.totalorder %s32, 1
      %p223 = por %p221, %p222
      %p225 = scmp.ne.s32.totalorder %s210, %s224
      %p226 = scmp.eq.s32.totalorder %s32, 0
      %p227 = por %p225, %p226
      %s229 = sadd.s32 %s228, 1
      %p232 = scmp.eq.s32.totalorder %s26, 1
      %p233 = scmp.ne.s32.totalorder %s228, %s230
      %p234 = scmp.eq.s32.totalorder %s26, 0
      %p235 = por %p233, %p234
      %p236 = scmp.ne.s32.totalorder %s228, %s230
      %p237 = scmp.eq.s32.totalorder %s31, 1
      %p238 = por %p236, %p237
      %p239 = scmp.ne.s32.totalorder %s230, %s231
      %p240 = scmp.eq.s32.totalorder %s31, 0
      %p241 = por %p239, %p240
      %p242 = scmp.ne.s32.totalorder %s230, %s231
      %p243 = scmp.eq.s32.totalorder %s32, 1
      %p244 = por %p242, %p243
      %p246 = scmp.ne.s32.totalorder %s231, %s245
      %p247 = scmp.eq.s32.totalorder %s32, 0
      %p248 = por %p246, %p247
      %s250 = sadd.s32 %s249, 1
      %p253 = scmp.eq.s32.totalorder %s26, 1
      %p254 = scmp.ne.s32.totalorder %s249, %s251
      %p255 = scmp.eq.s32.totalorder %s26, 0
      %p256 = por %p254, %p255
      %p257 = scmp.ne.s32.totalorder %s249, %s251
      %p258 = scmp.eq.s32.totalorder %s31, 1
      %p259 = por %p257, %p258
      %p260 = scmp.ne.s32.totalorder %s251, %s252
      %p261 = scmp.eq.s32.totalorder %s31, 0
      %p262 = por %p260, %p261
      %p263 = scmp.ne.s32.totalorder %s251, %s252
      %p264 = scmp.eq.s32.totalorder %s32, 1
      %p265 = por %p263, %p264
      %p267 = scmp.ne.s32.totalorder %s252, %s266
      %p268 = scmp.eq.s32.totalorder %s32, 0
      %p269 = por %p267, %p268
      %s271 = sadd.s32 %s270, 1
      %p274 = scmp.eq.s32.totalorder %s26, 1
      %p275 = scmp.ne.s32.totalorder %s270, %s272
      %p276 = scmp.eq.s32.totalorder %s26, 0
      %p277 = por %p275, %p276
      %p278 = scmp.ne.s32.totalorder %s270, %s272
      %p279 = scmp.eq.s32.totalorder %s31, 1
      %p280 = por %p278, %p279
      %p281 = scmp.ne.s32.totalorder %s272, %s273
      %p282 = scmp.eq.s32.totalorder %s31, 0
      %p283 = por %p281, %p282
      %p284 = scmp.ne.s32.totalorder %s272, %s273
      %p285 = scmp.eq.s32.totalorder %s32, 1
      %p286 = por %p284, %p285
      %p288 = scmp.ne.s32.totalorder %s273, %s287
      %p289 = scmp.eq.s32.totalorder %s32, 0
      %p290 = por %p288, %p289
      %s292 = sadd.s32 %s291, 1
      %p295 = scmp.eq.s32.totalorder %s26, 1
      %p296 = scmp.ne.s32.totalorder %s291, %s293
      %p297 = scmp.eq.s32.totalorder %s26, 0
      %p298 = por %p296, %p297
      %p299 = scmp.ne.s32.totalorder %s291, %s293
      %p300 = scmp.eq.s32.totalorder %s31, 1
      %p301 = por %p299, %p300
      %p302 = scmp.ne.s32.totalorder %s293, %s294
      %p303 = scmp.eq.s32.totalorder %s31, 0
      %p304 = por %p302, %p303
      %p305 = scmp.ne.s32.totalorder %s293, %s294
      %p306 = scmp.eq.s32.totalorder %s32, 1
      %p307 = por %p305, %p306
      %p309 = scmp.ne.s32.totalorder %s294, %s308
      %p310 = scmp.eq.s32.totalorder %s32, 0
      %p311 = por %p309, %p310
      %s313 = sadd.s32 %s312, 1
      %p316 = scmp.eq.s32.totalorder %s26, 1
      %p317 = scmp.ne.s32.totalorder %s312, %s314
      %p318 = scmp.eq.s32.totalorder %s26, 0
      %p319 = por %p317, %p318
      %p320 = scmp.ne.s32.totalorder %s312, %s314
      %p321 = scmp.eq.s32.totalorder %s31, 1
      %p322 = por %p320, %p321
      %p323 = scmp.ne.s32.totalorder %s314, %s315
      %p324 = scmp.eq.s32.totalorder %s31, 0
      %p325 = por %p323, %p324
      %p326 = scmp.ne.s32.totalorder %s314, %s315
      %p327 = scmp.eq.s32.totalorder %s32, 1
      %p328 = por %p326, %p327
      %p330 = scmp.ne.s32.totalorder %s315, %s329
      %p331 = scmp.eq.s32.totalorder %s32, 0
      %p332 = por %p330, %p331
      %s334 = sadd.s32 %s333, 1
      %p337 = scmp.eq.s32.totalorder %s26, 1
      %p338 = scmp.ne.s32.totalorder %s333, %s335
      %p339 = scmp.eq.s32.totalorder %s26, 0
      %p340 = por %p338, %p339
      %p341 = scmp.ne.s32.totalorder %s333, %s335
      %p342 = scmp.eq.s32.totalorder %s31, 1
      %p343 = por %p341, %p342
      %p344 = scmp.ne.s32.totalorder %s335, %s336
      %p345 = scmp.eq.s32.totalorder %s31, 0
      %p346 = por %p344, %p345
      %p347 = scmp.ne.s32.totalorder %s335, %s336
      %p348 = scmp.eq.s32.totalorder %s32, 1
      %p349 = por %p347, %p348
      %p351 = scmp.ne.s32.totalorder %s336, %s350
      %p352 = scmp.eq.s32.totalorder %s32, 0
      %p353 = por %p351, %p352
      %s354 = ssub.s32 %s26, %s33
      %p355 = scmp.eq.s32.totalorder %s354, 0
      %s357 = sadd.s32 %s356, 1
      %s358 = scalar_select %p355, %s356, %s357
      %p361 = pneg %p355
      %p362 = scmp.eq.s32.totalorder %s26, 1
      %p363 = por %p361, %p362
      %p364 = scmp.ne.s32.totalorder %s356, %s359
      %p365 = scmp.eq.s32.totalorder %s26, 0
      %p366 = por %p364, %p365
      %p367 = scmp.ne.s32.totalorder %s356, %s359
      %p368 = scmp.eq.s32.totalorder %s31, 1
      %p369 = por %p367, %p368
      %p370 = scmp.ne.s32.totalorder %s359, %s360
      %p371 = scmp.eq.s32.totalorder %s31, 0
      %p372 = por %p370, %p371
      %p373 = scmp.ne.s32.totalorder %s359, %s360
      %p374 = scmp.eq.s32.totalorder %s32, 1
      %p375 = por %p373, %p374
      %p377 = scmp.ne.s32.totalorder %s360, %s376
      %p378 = scmp.eq.s32.totalorder %s32, 0
      %p379 = por %p377, %p378
      %p380 = scmp.le.s32.totalorder 1, %s26
      %p381 = scmp.lt.s32.totalorder %s26, 3
      %p382 = pnand %p380, %p381
      %p383 = pneg %p382
      // Predicated region
      $region9: #{tpu_custom_call.1} parent=5 // pred_check
        _
      $region10: #{tpu_custom_call.1} parent=5 // pred_check_branch
        %385 = sbr.rel (%p382) target = $region12
      $region11: #{tpu_custom_call.1} parent=5 // pred_region
        %s386 = ssub.s32 %s26, 1
        // Predicated region
        $region13: #{tpu_custom_call.1} parent=11 // pred_check
          %p387 = pneg %p73
        $region14: #{tpu_custom_call.1} parent=11 // pred_check_branch
          %389 = sbr.rel (%p387) target = $region16
        $region15: #{tpu_custom_call.1} parent=11 // pred_region
          _
        $region16: #{tpu_custom_call.1} parent=11 // pred_fallthru
          _
        // Predicated region
        $region17: #{tpu_custom_call.1} parent=11 // pred_check
          %p390 = pneg %p94
        $region18: #{tpu_custom_call.1} parent=11 // pred_check_branch
          %392 = sbr.rel (%p390) target = $region20
        $region19: #{tpu_custom_call.1} parent=11 // pred_region
          _
        $region20: #{tpu_custom_call.1} parent=11 // pred_fallthru
          _
        // Predicated region
        $region21: #{tpu_custom_call.1} parent=11 // pred_check
          %p393 = pneg %p115
        $region22: #{tpu_custom_call.1} parent=11 // pred_check_branch
          %395 = sbr.rel (%p393) target = $region24
        $region23: #{tpu_custom_call.1} parent=11 // pred_region
          _
        $region24: #{tpu_custom_call.1} parent=11 // pred_fallthru
          _
        // Predicated region
        $region25: #{tpu_custom_call.1} parent=11 // pred_check
          %p396 = pneg %p136
        $region26: #{tpu_custom_call.1} parent=11 // pred_check_branch
          %398 = sbr.rel (%p396) target = $region28
        $region27: #{tpu_custom_call.1} parent=11 // pred_region
          _
        $region28: #{tpu_custom_call.1} parent=11 // pred_fallthru
          _
        // Predicated region
        $region29: #{tpu_custom_call.1} parent=11 // pred_check
          %p399 = pneg %p157
        $region30: #{tpu_custom_call.1} parent=11 // pred_check_branch
          %401 = sbr.rel (%p399) target = $region32
        $region31: #{tpu_custom_call.1} parent=11 // pred_region
          _
        $region32: #{tpu_custom_call.1} parent=11 // pred_fallthru
          _
        // Predicated region
        $region33: #{tpu_custom_call.1} parent=11 // pred_check
          %p402 = pneg %p178
        $region34: #{tpu_custom_call.1} parent=11 // pred_check_branch
          %404 = sbr.rel (%p402) target = $region36
        $region35: #{tpu_custom_call.1} parent=11 // pred_region
          _
        $region36: #{tpu_custom_call.1} parent=11 // pred_fallthru
          _
        // Predicated region
        $region37: #{tpu_custom_call.1} parent=11 // pred_check
          %p405 = pneg %p199
        $region38: #{tpu_custom_call.1} parent=11 // pred_check_branch
          %407 = sbr.rel (%p405) target = $region40
        $region39: #{tpu_custom_call.1} parent=11 // pred_region
          _
        $region40: #{tpu_custom_call.1} parent=11 // pred_fallthru
          _
        // Predicated region
        $region41: #{tpu_custom_call.1} parent=11 // pred_check
          %p408 = pneg %p220
        $region42: #{tpu_custom_call.1} parent=11 // pred_check_branch
          %410 = sbr.rel (%p408) target = $region44
        $region43: #{tpu_custom_call.1} parent=11 // pred_region
          _
        $region44: #{tpu_custom_call.1} parent=11 // pred_fallthru
          _
        // Predicated region
        $region45: #{tpu_custom_call.1} parent=11 // pred_check
          %p411 = pneg %p241
        $region46: #{tpu_custom_call.1} parent=11 // pred_check_branch
          %413 = sbr.rel (%p411) target = $region48
        $region47: #{tpu_custom_call.1} parent=11 // pred_region
          _
        $region48: #{tpu_custom_call.1} parent=11 // pred_fallthru
          _
        // Predicated region
        $region49: #{tpu_custom_call.1} parent=11 // pred_check
          %p414 = pneg %p262
        $region50: #{tpu_custom_call.1} parent=11 // pred_check_branch
          %416 = sbr.rel (%p414) target = $region52
        $region51: #{tpu_custom_call.1} parent=11 // pred_region
          _
        $region52: #{tpu_custom_call.1} parent=11 // pred_fallthru
          _
        // Predicated region
        $region53: #{tpu_custom_call.1} parent=11 // pred_check
          %p417 = pneg %p283
        $region54: #{tpu_custom_call.1} parent=11 // pred_check_branch
          %419 = sbr.rel (%p417) target = $region56
        $region55: #{tpu_custom_call.1} parent=11 // pred_region
          _
        $region56: #{tpu_custom_call.1} parent=11 // pred_fallthru
          _
        // Predicated region
        $region57: #{tpu_custom_call.1} parent=11 // pred_check
          %p420 = pneg %p304
        $region58: #{tpu_custom_call.1} parent=11 // pred_check_branch
          %422 = sbr.rel (%p420) target = $region60
        $region59: #{tpu_custom_call.1} parent=11 // pred_region
          _
        $region60: #{tpu_custom_call.1} parent=11 // pred_fallthru
          _
        // Predicated region
        $region61: #{tpu_custom_call.1} parent=11 // pred_check
          %p423 = pneg %p325
        $region62: #{tpu_custom_call.1} parent=11 // pred_check_branch
          %425 = sbr.rel (%p423) target = $region64
        $region63: #{tpu_custom_call.1} parent=11 // pred_region
          _
        $region64: #{tpu_custom_call.1} parent=11 // pred_fallthru
          _
        // Predicated region
        $region65: #{tpu_custom_call.1} parent=11 // pred_check
          %p426 = pneg %p346
        $region66: #{tpu_custom_call.1} parent=11 // pred_check_branch
          %428 = sbr.rel (%p426) target = $region68
        $region67: #{tpu_custom_call.1} parent=11 // pred_region
          _
        $region68: #{tpu_custom_call.1} parent=11 // pred_fallthru
          _
      $region12: #{tpu_custom_call.1} parent=5 // pred_fallthru
        _
      %p429 = scmp.lt.s32.totalorder %s26, 2
      // Predicated region
      $region69: #{tpu_custom_call.1} parent=5 // pred_check
        %p430 = pneg %p429
      $region70: #{tpu_custom_call.1} parent=5 // pred_check_branch
        %432 = sbr.rel (%p430) target = $region72
      $region71: #{tpu_custom_call.1} parent=5 // pred_region
        // Predicated region
        $region73: #{tpu_custom_call.1} parent=71 // pred_check
          %p433 = pneg %p46
        $region74: #{tpu_custom_call.1} parent=71 // pred_check_branch
          %435 = sbr.rel (%p433) target = $region76
        $region75: #{tpu_custom_call.1} parent=71 // pred_region
          %s436 = sand.u32 %s36, 1
          %s437 = sand.u32 %s36, 1
          %s438 = smul.addr %s437, 80
          %s439 = scalar_lea.vmem [#allocation3], %s438
          %s440 = smul.u32 2, %s26
          %s441 = smul.addr %s440, 4
          %s442 = scalar_lea.vmem %s0, %s441
          // Predicated region
          $region77: #{tpu_custom_call.1} parent=75 // pred_check
            _
          $region78: #{tpu_custom_call.1} parent=75 // pred_check_branch
            %444 = sbr.rel (0) target = $region80
          $region79: #{tpu_custom_call.1} parent=75 // pred_region
            // Predicated region
            $region81: #{tpu_custom_call.1} parent=79 // pred_check
              _
            $region82: #{tpu_custom_call.1} parent=79 // pred_check_branch
              %446 = sbr.rel (0) target = $region84
            $region83: #{tpu_custom_call.1} parent=79 // pred_region
              // Predicated region
              $region96: #{tpu_custom_call.1} parent=83 // pred_check
                _
              $region97: #{tpu_custom_call.1} parent=83 // pred_check_branch
                %480 = sbr.rel (0) target = $region99
              $region98: #{tpu_custom_call.1} parent=83 // pred_region
                loop: start=0, step=1, limit=1
                $region100: #{tpu_custom_call.1} parent=98 // loop_pre_header
                  _
                $region101: #{tpu_custom_call.1} parent=98 // loop_header
                  %s482 = sphi 0, %s486
                  %p483 = scmp.ge.s32.totalorder %s482, 1
                  %s487 = sphi %s442, %s442
                  %s488 = sphi %s439, %s439
                $region102: #{tpu_custom_call.1} parent=98 // loop_header_branch
                  %485 = sbr.rel (%p483) target = $region106
                $region103: #{tpu_custom_call.1} parent=98 // loop_body
                  %v489 = vld [vmem:[%s487] sm:$0xff]
                  %490 = vst [vmem:[%s488] sm:$0xff] %v489
                  %v491 = vld [vmem:[%s487 + $0x10] sm:$0xff]
                  %492 = vst [vmem:[%s488 + $0x8] sm:$0xff] %v491
                  %v493 = vld [vmem:[%s487 + $0x20] sm:$0xff]
                  %494 = vst [vmem:[%s488 + $0x10] sm:$0xff] %v493
                  %v495 = vld [vmem:[%s487 + $0x30] sm:$0xff]
                  %496 = vst [vmem:[%s488 + $0x18] sm:$0xff] %v495
                  %v497 = vld [vmem:[%s487 + $0x40] sm:$0xff]
                  %498 = vst [vmem:[%s488 + $0x20] sm:$0xff] %v497
                  %v499 = vld [vmem:[%s487 + $0x50] sm:$0xff]
                  %500 = vst [vmem:[%s488 + $0x28] sm:$0xff] %v499
                  %v501 = vld [vmem:[%s487 + $0x60] sm:$0xff]
                  %502 = vst [vmem:[%s488 + $0x30] sm:$0xff] %v501
                  %v503 = vld [vmem:[%s487 + $0x70] sm:$0xff]
                  %504 = vst [vmem:[%s488 + $0x38] sm:$0xff] %v503
                  %v505 = vld [vmem:[%s487 + $0x80] sm:$0xff]
                  %506 = vst [vmem:[%s488 + $0x40] sm:$0xff] %v505
                  %v507 = vld [vmem:[%s487 + $0x90] sm:$0xff]
                  %508 = vst [vmem:[%s488 + $0x48] sm:$0xff] %v507
                $region104: #{tpu_custom_call.1} parent=98 // loop_footer
                  %s486 = sadd.s32 1, %s482
                $region105: #{tpu_custom_call.1} parent=98 // loop_footer_branch
                  %481 = sbr.rel target = $region101
                $region106: #{tpu_custom_call.1} parent=98 // loop_exit
                  _
              $region99: #{tpu_custom_call.1} parent=83 // pred_fallthru
                _
              // Predicated region
              $region107: #{tpu_custom_call.1} parent=83 // pred_check
                _
              $region108: #{tpu_custom_call.1} parent=83 // pred_check_branch
                %510 = sbr.rel target = $region110
              $region109: #{tpu_custom_call.1} parent=83 // pred_region
                _
              $region110: #{tpu_custom_call.1} parent=83 // pred_fallthru
                _
            $region84: #{tpu_custom_call.1} parent=79 // pred_fallthru
              _
            // Predicated region
            $region85: #{tpu_custom_call.1} parent=79 // pred_check
              _
            $region86: #{tpu_custom_call.1} parent=79 // pred_check_branch
              %448 = sbr.rel target = $region88
            $region87: #{tpu_custom_call.1} parent=79 // pred_region
              %s450 = ssub.s32 256, 1
              loop: start=0, step=1, limit=1
              $region89: #{tpu_custom_call.1} parent=87 // loop_pre_header
                _
              $region90: #{tpu_custom_call.1} parent=87 // loop_header
                %s452 = sphi 0, %s456
                %p453 = scmp.ge.s32.totalorder %s452, 1
                %s457 = sphi %s442, %s442
                %s458 = sphi %s439, %s439
              $region91: #{tpu_custom_call.1} parent=87 // loop_header_branch
                %455 = sbr.rel (%p453) target = $region95
              $region92: #{tpu_custom_call.1} parent=87 // loop_body
                %v459 = vld [vmem:[%s457] sm:%s450]
                %460 = vst [vmem:[%s458] sm:%s450] %v459
                %v461 = vld [vmem:[%s457 + $0x10] sm:%s450]
                %462 = vst [vmem:[%s458 + $0x8] sm:%s450] %v461
                %v463 = vld [vmem:[%s457 + $0x20] sm:%s450]
                %464 = vst [vmem:[%s458 + $0x10] sm:%s450] %v463
                %v465 = vld [vmem:[%s457 + $0x30] sm:%s450]
                %466 = vst [vmem:[%s458 + $0x18] sm:%s450] %v465
                %v467 = vld [vmem:[%s457 + $0x40] sm:%s450]
                %468 = vst [vmem:[%s458 + $0x20] sm:%s450] %v467
                %v469 = vld [vmem:[%s457 + $0x50] sm:%s450]
                %470 = vst [vmem:[%s458 + $0x28] sm:%s450] %v469
                %v471 = vld [vmem:[%s457 + $0x60] sm:%s450]
                %472 = vst [vmem:[%s458 + $0x30] sm:%s450] %v471
                %v473 = vld [vmem:[%s457 + $0x70] sm:%s450]
                %474 = vst [vmem:[%s458 + $0x38] sm:%s450] %v473
                %v475 = vld [vmem:[%s457 + $0x80] sm:%s450]
                %476 = vst [vmem:[%s458 + $0x40] sm:%s450] %v475
                %v477 = vld [vmem:[%s457 + $0x90] sm:%s450]
                %478 = vst [vmem:[%s458 + $0x48] sm:%s450] %v477
              $region93: #{tpu_custom_call.1} parent=87 // loop_footer
                %s456 = sadd.s32 1, %s452
              $region94: #{tpu_custom_call.1} parent=87 // loop_footer_branch
                %451 = sbr.rel target = $region90
              $region95: #{tpu_custom_call.1} parent=87 // loop_exit
                _
            $region88: #{tpu_custom_call.1} parent=79 // pred_fallthru
              _
          $region80: #{tpu_custom_call.1} parent=75 // pred_fallthru
            _
          %511 = vnop
        $region76: #{tpu_custom_call.1} parent=71 // pred_fallthru
          _
      $region72: #{tpu_custom_call.1} parent=5 // pred_fallthru
        _
      %p512 = scmp.le.s32.totalorder 1, %s26
      %p513 = scmp.lt.s32.totalorder %s26, 3
      %p514 = pnand %p512, %p513
      %p515 = pneg %p514
      // Predicated region
      $region111: #{tpu_custom_call.1} parent=5 // pred_check
        _
      $region112: #{tpu_custom_call.1} parent=5 // pred_check_branch
        %517 = sbr.rel (%p514) target = $region114
      $region113: #{tpu_custom_call.1} parent=5 // pred_region
        %s518 = ssub.s32 %s26, 1
        %s519 = sand.u32 %s39, 1
        %s520 = sand.u32 %s39, 1
        %s521 = smul.addr %s520, 80
        %s522 = scalar_lea.vmem [#allocation3], %s521
        // Predicated region
        $region115: #{tpu_custom_call.1} parent=113 // pred_check
          %p523 = pneg %p52
        $region116: #{tpu_custom_call.1} parent=113 // pred_check_branch
          %525 = sbr.rel (%p523) target = $region118
        $region117: #{tpu_custom_call.1} parent=113 // pred_region
          _
        $region118: #{tpu_custom_call.1} parent=113 // pred_fallthru
          _
        %s526 = sand.u32 %s39, 1
        %s527 = sand.u32 %s39, 1
        %s528 = smul.addr %s527, 80
        %s529 = scalar_lea.vmem [#allocation3], %s528
        %p530 = pneg %p52
        %p531 = pneg %p49
        %p532 = pneg %p73
        %p533 = pneg %p70
        %p534 = pneg %p94
        %p535 = pneg %p91
        %p536 = pneg %p115
        %p537 = pneg %p112
        %p538 = pneg %p136
        %p539 = pneg %p133
        %p540 = pneg %p157
        %p541 = pneg %p154
        %p542 = pneg %p178
        %p543 = pneg %p175
        %p544 = pneg %p199
        %p545 = pneg %p196
        %p546 = pneg %p220
        %p547 = pneg %p217
        %p548 = pneg %p241
        %p549 = pneg %p238
        %p550 = pneg %p262
        %p551 = pneg %p259
        %p552 = pneg %p283
        %p553 = pneg %p280
        %p554 = pneg %p304
        %p555 = pneg %p301
        %p556 = pneg %p325
        %p557 = pneg %p322
        %p558 = pneg %p346
        %p559 = pneg %p343
        %p560 = pneg %p372
        %p561 = pneg %p369
        %s562 = sand.u32 %s359, 1
        %s563 = scalar_lea.sflag [#allocation5], %s562
        %s564 = sand.u32 %s359, 1
        %s565 = smul.addr %s564, 2
        %s566 = scalar_lea.vmem [#allocation4], %s565
        %s567 = smul.u32 2, %s31
        %s568 = smul.u32 2, %s31
        %v570 = vld [vmem:[%s522] sm:$0xff]
        %v571 = vld [vmem:[%s522 + $0x8] sm:$0xff]
        %v572 = vld [vmem:[%s522 + $0x10] sm:$0xff]
        %v573 = vld [vmem:[%s522 + $0x18] sm:$0xff]
        %v574 = vld [vmem:[%s522 + $0x20] sm:$0xff]
        %v575 = vld [vmem:[%s522 + $0x28] sm:$0xff]
        %v576 = vld [vmem:[%s522 + $0x30] sm:$0xff]
        %v577 = vld [vmem:[%s522 + $0x38] sm:$0xff]
        %v578 = vld [vmem:[%s522 + $0x40] sm:$0xff]
        %v579 = vld [vmem:[%s522 + $0x48] sm:$0xff]
        %v580 = vld [vmem:[%s1] sm:$0xf]
        %v581 = vld [vmem:[%s1 + $0x4] sm:$0xf]
        %v582 = vld [vmem:[%s1 + $0x8] sm:$0xf]
        %v583 = vld [vmem:[%s1 + $0xc] sm:$0xf]
        %v584 = vld [vmem:[%s1 + $0x10] sm:$0xf]
        %v585 = vld [vmem:[%s1 + $0x14] sm:$0xf]
        %v586 = vld [vmem:[%s1 + $0x18] sm:$0xf]
        %v587 = vld [vmem:[%s1 + $0x1c] sm:$0xf]
        %v588 = vld [vmem:[%s1 + $0x20] sm:$0xf]
        %v589 = vld [vmem:[%s1 + $0x24] sm:$0xf]
        %v590 = vld [vmem:[%s1 + $0x28] sm:$0xf]
        %v591 = vld [vmem:[%s1 + $0x2c] sm:$0xf]
        %v592 = vld [vmem:[%s1 + $0x30] sm:$0xf]
        %v593 = vld [vmem:[%s1 + $0x34] sm:$0xf]
        %v594 = vld [vmem:[%s1 + $0x38] sm:$0xf]
        %v595 = vld [vmem:[%s1 + $0x3c] sm:$0xf]
        %v596 = vld [vmem:[%s1 + $0x40] sm:$0xf]
        %v597 = vld [vmem:[%s1 + $0x44] sm:$0xf]
        %v598 = vld [vmem:[%s1 + $0x48] sm:$0xf]
        %v599 = vld [vmem:[%s1 + $0x4c] sm:$0xf]
        %v600 = vld [vmem:[%s1 + $0x50] sm:$0xf]
        %v601 = vld [vmem:[%s1 + $0x54] sm:$0xf]
        %v602 = vld [vmem:[%s1 + $0x58] sm:$0xf]
        %v603 = vld [vmem:[%s1 + $0x5c] sm:$0xf]
        %v604 = vld [vmem:[%s1 + $0x60] sm:$0xf]
        %v605 = vld [vmem:[%s1 + $0x64] sm:$0xf]
        %v606 = vld [vmem:[%s1 + $0x68] sm:$0xf]
        %v607 = vld [vmem:[%s1 + $0x6c] sm:$0xf]
        %v608 = vld [vmem:[%s1 + $0x70] sm:$0xf]
        %v609 = vld [vmem:[%s1 + $0x74] sm:$0xf]
        %v610 = vld [vmem:[%s1 + $0x78] sm:$0xf]
        %v611 = vld [vmem:[%s1 + $0x7c] sm:$0xf]
        %v612 = vld [vmem:[%s1 + $0x80] sm:$0xf]
        %v613 = vld [vmem:[%s1 + $0x84] sm:$0xf]
        %v614 = vld [vmem:[%s1 + $0x88] sm:$0xf]
        %v615 = vld [vmem:[%s1 + $0x8c] sm:$0xf]
        %v616 = vld [vmem:[%s1 + $0x90] sm:$0xf]
        %v617 = vld [vmem:[%s1 + $0x94] sm:$0xf]
        %v618 = vld [vmem:[%s1 + $0x98] sm:$0xf]
        %v619 = vld [vmem:[%s1 + $0x9c] sm:$0xf]
        %v620 = vld [vmem:[%s1 + $0xa0] sm:$0xf]
        %v621 = vld [vmem:[%s1 + $0xa4] sm:$0xf]
        %v622 = vld [vmem:[%s1 + $0xa8] sm:$0xf]
        %v623 = vld [vmem:[%s1 + $0xac] sm:$0xf]
        %v624 = vld [vmem:[%s1 + $0xb0] sm:$0xf]
        %v625 = vld [vmem:[%s1 + $0xb4] sm:$0xf]
        %v626 = vld [vmem:[%s1 + $0xb8] sm:$0xf]
        %v627 = vld [vmem:[%s1 + $0xbc] sm:$0xf]
        %v628 = vld [vmem:[%s1 + $0xc0] sm:$0xf]
        %v629 = vld [vmem:[%s1 + $0xc4] sm:$0xf]
        %v630 = vld [vmem:[%s1 + $0xc8] sm:$0xf]
        %v631 = vld [vmem:[%s1 + $0xcc] sm:$0xf]
        %v632 = vld [vmem:[%s1 + $0xd0] sm:$0xf]
        %v633 = vld [vmem:[%s1 + $0xd4] sm:$0xf]
        %v634 = vld [vmem:[%s1 + $0xd8] sm:$0xf]
        %v635 = vld [vmem:[%s1 + $0xdc] sm:$0xf]
        %v636 = vld [vmem:[%s1 + $0xe0] sm:$0xf]
        %v637 = vld [vmem:[%s1 + $0xe4] sm:$0xf]
        %v638 = vld [vmem:[%s1 + $0xe8] sm:$0xf]
        %v639 = vld [vmem:[%s1 + $0xec] sm:$0xf]
        %v640 = vld [vmem:[%s1 + $0xf0] sm:$0xf]
        %v641 = vld [vmem:[%s1 + $0xf4] sm:$0xf]
        %v642 = vld [vmem:[%s1 + $0xf8] sm:$0xf]
        %v643 = vld [vmem:[%s1 + $0xfc] sm:$0xf]
        %v644 = vld [vmem:[%s2] sm:$0xff]
        %v645 = vld [vmem:[%s2 + $0x8] sm:$0xff]
        %v646 = vld [vmem:[%s2 + $0x10] sm:$0xff]
        %v647 = vld [vmem:[%s2 + $0x18] sm:$0xff]
        %v648 = vld [vmem:[%s2 + $0x20] sm:$0xff]
        %v649 = vld [vmem:[%s2 + $0x28] sm:$0xff]
        %v650 = vld [vmem:[%s2 + $0x30] sm:$0xff]
        %v651 = vld [vmem:[%s2 + $0x38] sm:$0xff]
        %v652 = vld [vmem:[%s2 + $0x40] sm:$0xff]
        %v653 = vld [vmem:[%s2 + $0x48] sm:$0xff]
        %v654 = vld [vmem:[%s2 + $0x50] sm:$0xff]
        %v655 = vld [vmem:[%s2 + $0x58] sm:$0xff]
        %v656 = vld [vmem:[%s2 + $0x60] sm:$0xff]
        %v657 = vld [vmem:[%s2 + $0x68] sm:$0xff]
        %v658 = vld [vmem:[%s2 + $0x70] sm:$0xff]
        %v659 = vld [vmem:[%s2 + $0x78] sm:$0xff]
        %v660 = vld [vmem:[%s2 + $0x80] sm:$0xff]
        %v661 = vld [vmem:[%s2 + $0x88] sm:$0xff]
        %v662 = vld [vmem:[%s2 + $0x90] sm:$0xff]
        %v663 = vld [vmem:[%s2 + $0x98] sm:$0xff]
        %v664 = vld [vmem:[%s2 + $0xa0] sm:$0xff]
        %v665 = vld [vmem:[%s2 + $0xa8] sm:$0xff]
        %v666 = vld [vmem:[%s2 + $0xb0] sm:$0xff]
        %v667 = vld [vmem:[%s2 + $0xb8] sm:$0xff]
        %v668 = vld [vmem:[%s2 + $0xc0] sm:$0xff]
        %v669 = vld [vmem:[%s2 + $0xc8] sm:$0xff]
        %v670 = vld [vmem:[%s2 + $0xd0] sm:$0xff]
        %v671 = vld [vmem:[%s2 + $0xd8] sm:$0xff]
        %v672 = vld [vmem:[%s2 + $0xe0] sm:$0xff]
        %v673 = vld [vmem:[%s2 + $0xe8] sm:$0xff]
        %v674 = vld [vmem:[%s2 + $0xf0] sm:$0xff]
        %v675 = vld [vmem:[%s2 + $0xf8] sm:$0xff]
        %v676 = vld [vmem:[%s2 + $0x100] sm:$0xff]
        %v677 = vld [vmem:[%s2 + $0x108] sm:$0xff]
        %v678 = vld [vmem:[%s2 + $0x110] sm:$0xff]
        %v679 = vld [vmem:[%s2 + $0x118] sm:$0xff]
        %v680 = vld [vmem:[%s2 + $0x120] sm:$0xff]
        %v681 = vld [vmem:[%s2 + $0x128] sm:$0xff]
        %v682 = vld [vmem:[%s2 + $0x130] sm:$0xff]
        %v683 = vld [vmem:[%s2 + $0x138] sm:$0xff]
        %v684 = vld [vmem:[%s2 + $0x140] sm:$0xff]
        %v685 = vld [vmem:[%s2 + $0x148] sm:$0xff]
        %v686 = vld [vmem:[%s2 + $0x150] sm:$0xff]
        %v687 = vld [vmem:[%s2 + $0x158] sm:$0xff]
        %v688 = vld [vmem:[%s2 + $0x160] sm:$0xff]
        %v689 = vld [vmem:[%s2 + $0x168] sm:$0xff]
        %v690 = vld [vmem:[%s2 + $0x170] sm:$0xff]
        %v691 = vld [vmem:[%s2 + $0x178] sm:$0xff]
        %v692 = vld [vmem:[%s2 + $0x180] sm:$0xff]
        %v693 = vld [vmem:[%s2 + $0x188] sm:$0xff]
        %v694 = vld [vmem:[%s2 + $0x190] sm:$0xff]
        %v695 = vld [vmem:[%s2 + $0x198] sm:$0xff]
        %v696 = vld [vmem:[%s2 + $0x1a0] sm:$0xff]
        %v697 = vld [vmem:[%s2 + $0x1a8] sm:$0xff]
        %v698 = vld [vmem:[%s2 + $0x1b0] sm:$0xff]
        %v699 = vld [vmem:[%s2 + $0x1b8] sm:$0xff]
        %v700 = vld [vmem:[%s2 + $0x1c0] sm:$0xff]
        %v701 = vld [vmem:[%s2 + $0x1c8] sm:$0xff]
        %v702 = vld [vmem:[%s2 + $0x1d0] sm:$0xff]
        %v703 = vld [vmem:[%s2 + $0x1d8] sm:$0xff]
        %v704 = vld [vmem:[%s2 + $0x1e0] sm:$0xff]
        %v705 = vld [vmem:[%s2 + $0x1e8] sm:$0xff]
        %v706 = vld [vmem:[%s2 + $0x1f0] sm:$0xff]
        %v707 = vld [vmem:[%s2 + $0x1f8] sm:$0xff]
        %709 = vset.pattern.permute.xlu0 0
        %710 = vperm.xlu0 %709, %v644
        %v711 = vpop.permute.xlu0 %710
        %714 = vset.pattern.permute.xlu0 0
        %715 = vperm.xlu0 %714, %v645
        %v716 = vpop.permute.xlu0 %715
        %719 = vset.pattern.permute.xlu0 0
        %720 = vperm.xlu0 %719, %v646
        %v721 = vpop.permute.xlu0 %720
        %724 = vset.pattern.permute.xlu0 0
        %725 = vperm.xlu0 %724, %v647
        %v726 = vpop.permute.xlu0 %725
        %729 = vset.pattern.permute.xlu0 0
        %730 = vperm.xlu0 %729, %v648
        %v731 = vpop.permute.xlu0 %730
        %734 = vset.pattern.permute.xlu0 0
        %735 = vperm.xlu0 %734, %v649
        %v736 = vpop.permute.xlu0 %735
        %739 = vset.pattern.permute.xlu0 0
        %740 = vperm.xlu0 %739, %v650
        %v741 = vpop.permute.xlu0 %740
        %744 = vset.pattern.permute.xlu0 0
        %745 = vperm.xlu0 %744, %v651
        %v746 = vpop.permute.xlu0 %745
        %749 = vset.pattern.permute.xlu0 0
        %750 = vperm.xlu0 %749, %v652
        %v751 = vpop.permute.xlu0 %750
        %754 = vset.pattern.permute.xlu0 0
        %755 = vperm.xlu0 %754, %v653
        %v756 = vpop.permute.xlu0 %755
        %759 = vset.pattern.permute.xlu0 0
        %760 = vperm.xlu0 %759, %v654
        %v761 = vpop.permute.xlu0 %760
        %764 = vset.pattern.permute.xlu0 0
        %765 = vperm.xlu0 %764, %v655
        %v766 = vpop.permute.xlu0 %765
        %769 = vset.pattern.permute.xlu0 0
        %770 = vperm.xlu0 %769, %v656
        %v771 = vpop.permute.xlu0 %770
        %774 = vset.pattern.permute.xlu0 0
        %775 = vperm.xlu0 %774, %v657
        %v776 = vpop.permute.xlu0 %775
        %779 = vset.pattern.permute.xlu0 0
        %780 = vperm.xlu0 %779, %v658
        %v781 = vpop.permute.xlu0 %780
        %784 = vset.pattern.permute.xlu0 0
        %785 = vperm.xlu0 %784, %v659
        %v786 = vpop.permute.xlu0 %785
        %789 = vset.pattern.permute.xlu0 0
        %790 = vperm.xlu0 %789, %v660
        %v791 = vpop.permute.xlu0 %790
        %794 = vset.pattern.permute.xlu0 0
        %795 = vperm.xlu0 %794, %v661
        %v796 = vpop.permute.xlu0 %795
        %799 = vset.pattern.permute.xlu0 0
        %800 = vperm.xlu0 %799, %v662
        %v801 = vpop.permute.xlu0 %800
        %804 = vset.pattern.permute.xlu0 0
        %805 = vperm.xlu0 %804, %v663
        %v806 = vpop.permute.xlu0 %805
        %809 = vset.pattern.permute.xlu0 0
        %810 = vperm.xlu0 %809, %v664
        %v811 = vpop.permute.xlu0 %810
        %814 = vset.pattern.permute.xlu0 0
        %815 = vperm.xlu0 %814, %v665
        %v816 = vpop.permute.xlu0 %815
        %819 = vset.pattern.permute.xlu0 0
        %820 = vperm.xlu0 %819, %v666
        %v821 = vpop.permute.xlu0 %820
        %824 = vset.pattern.permute.xlu0 0
        %825 = vperm.xlu0 %824, %v667
        %v826 = vpop.permute.xlu0 %825
        %829 = vset.pattern.permute.xlu0 0
        %830 = vperm.xlu0 %829, %v668
        %v831 = vpop.permute.xlu0 %830
        %834 = vset.pattern.permute.xlu0 0
        %835 = vperm.xlu0 %834, %v669
        %v836 = vpop.permute.xlu0 %835
        %839 = vset.pattern.permute.xlu0 0
        %840 = vperm.xlu0 %839, %v670
        %v841 = vpop.permute.xlu0 %840
        %844 = vset.pattern.permute.xlu0 0
        %845 = vperm.xlu0 %844, %v671
        %v846 = vpop.permute.xlu0 %845
        %849 = vset.pattern.permute.xlu0 0
        %850 = vperm.xlu0 %849, %v672
        %v851 = vpop.permute.xlu0 %850
        %854 = vset.pattern.permute.xlu0 0
        %855 = vperm.xlu0 %854, %v673
        %v856 = vpop.permute.xlu0 %855
        %859 = vset.pattern.permute.xlu0 0
        %860 = vperm.xlu0 %859, %v674
        %v861 = vpop.permute.xlu0 %860
        %864 = vset.pattern.permute.xlu0 0
        %865 = vperm.xlu0 %864, %v675
        %v866 = vpop.permute.xlu0 %865
        %869 = vset.pattern.permute.xlu0 0
        %870 = vperm.xlu0 %869, %v676
        %v871 = vpop.permute.xlu0 %870
        %874 = vset.pattern.permute.xlu0 0
        %875 = vperm.xlu0 %874, %v677
        %v876 = vpop.permute.xlu0 %875
        %879 = vset.pattern.permute.xlu0 0
        %880 = vperm.xlu0 %879, %v678
        %v881 = vpop.permute.xlu0 %880
        %884 = vset.pattern.permute.xlu0 0
        %885 = vperm.xlu0 %884, %v679
        %v886 = vpop.permute.xlu0 %885
        %889 = vset.pattern.permute.xlu0 0
        %890 = vperm.xlu0 %889, %v680
        %v891 = vpop.permute.xlu0 %890
        %894 = vset.pattern.permute.xlu0 0
        %895 = vperm.xlu0 %894, %v681
        %v896 = vpop.permute.xlu0 %895
        %899 = vset.pattern.permute.xlu0 0
        %900 = vperm.xlu0 %899, %v682
        %v901 = vpop.permute.xlu0 %900
        %904 = vset.pattern.permute.xlu0 0
        %905 = vperm.xlu0 %904, %v683
        %v906 = vpop.permute.xlu0 %905
        %909 = vset.pattern.permute.xlu0 0
        %910 = vperm.xlu0 %909, %v684
        %v911 = vpop.permute.xlu0 %910
        %914 = vset.pattern.permute.xlu0 0
        %915 = vperm.xlu0 %914, %v685
        %v916 = vpop.permute.xlu0 %915
        %919 = vset.pattern.permute.xlu0 0
        %920 = vperm.xlu0 %919, %v686
        %v921 = vpop.permute.xlu0 %920
        %924 = vset.pattern.permute.xlu0 0
        %925 = vperm.xlu0 %924, %v687
        %v926 = vpop.permute.xlu0 %925
        %929 = vset.pattern.permute.xlu0 0
        %930 = vperm.xlu0 %929, %v688
        %v931 = vpop.permute.xlu0 %930
        %934 = vset.pattern.permute.xlu0 0
        %935 = vperm.xlu0 %934, %v689
        %v936 = vpop.permute.xlu0 %935
        %939 = vset.pattern.permute.xlu0 0
        %940 = vperm.xlu0 %939, %v690
        %v941 = vpop.permute.xlu0 %940
        %944 = vset.pattern.permute.xlu0 0
        %945 = vperm.xlu0 %944, %v691
        %v946 = vpop.permute.xlu0 %945
        %949 = vset.pattern.permute.xlu0 0
        %950 = vperm.xlu0 %949, %v692
        %v951 = vpop.permute.xlu0 %950
        %954 = vset.pattern.permute.xlu0 0
        %955 = vperm.xlu0 %954, %v693
        %v956 = vpop.permute.xlu0 %955
        %959 = vset.pattern.permute.xlu0 0
        %960 = vperm.xlu0 %959, %v694
        %v961 = vpop.permute.xlu0 %960
        %964 = vset.pattern.permute.xlu0 0
        %965 = vperm.xlu0 %964, %v695
        %v966 = vpop.permute.xlu0 %965
        %969 = vset.pattern.permute.xlu0 0
        %970 = vperm.xlu0 %969, %v696
        %v971 = vpop.permute.xlu0 %970
        %974 = vset.pattern.permute.xlu0 0
        %975 = vperm.xlu0 %974, %v697
        %v976 = vpop.permute.xlu0 %975
        %979 = vset.pattern.permute.xlu0 0
        %980 = vperm.xlu0 %979, %v698
        %v981 = vpop.permute.xlu0 %980
        %984 = vset.pattern.permute.xlu0 0
        %985 = vperm.xlu0 %984, %v699
        %v986 = vpop.permute.xlu0 %985
        %989 = vset.pattern.permute.xlu0 0
        %990 = vperm.xlu0 %989, %v700
        %v991 = vpop.permute.xlu0 %990
        %994 = vset.pattern.permute.xlu0 0
        %995 = vperm.xlu0 %994, %v701
        %v996 = vpop.permute.xlu0 %995
        %999 = vset.pattern.permute.xlu0 0
        %1000 = vperm.xlu0 %999, %v702
        %v1001 = vpop.permute.xlu0 %1000
        %1004 = vset.pattern.permute.xlu0 0
        %1005 = vperm.xlu0 %1004, %v703
        %v1006 = vpop.permute.xlu0 %1005
        %1009 = vset.pattern.permute.xlu0 0
        %1010 = vperm.xlu0 %1009, %v704
        %v1011 = vpop.permute.xlu0 %1010
        %1014 = vset.pattern.permute.xlu0 0
        %1015 = vperm.xlu0 %1014, %v705
        %v1016 = vpop.permute.xlu0 %1015
        %1019 = vset.pattern.permute.xlu0 0
        %1020 = vperm.xlu0 %1019, %v706
        %v1021 = vpop.permute.xlu0 %1020
        %1024 = vset.pattern.permute.xlu0 0
        %1025 = vperm.xlu0 %1024, %v707
        %v1026 = vpop.permute.xlu0 %1025
        %v1092 = vunpack.c.l.b16 %v580
        %v1093 = vunpack.c.l.b16 %v581
        %v1094 = vunpack.c.l.b16 %v582
        %v1095 = vunpack.c.l.b16 %v583
        %v1096 = vunpack.c.l.b16 %v584
        %v1097 = vunpack.c.l.b16 %v585
        %v1098 = vunpack.c.l.b16 %v586
        %v1099 = vunpack.c.l.b16 %v587
        %v1100 = vunpack.c.l.b16 %v588
        %v1101 = vunpack.c.l.b16 %v589
        %v1102 = vunpack.c.l.b16 %v590
        %v1103 = vunpack.c.l.b16 %v591
        %v1104 = vunpack.c.l.b16 %v592
        %v1105 = vunpack.c.l.b16 %v593
        %v1106 = vunpack.c.l.b16 %v594
        %v1107 = vunpack.c.l.b16 %v595
        %v1108 = vunpack.c.l.b16 %v596
        %v1109 = vunpack.c.l.b16 %v597
        %v1110 = vunpack.c.l.b16 %v598
        %v1111 = vunpack.c.l.b16 %v599
        %v1112 = vunpack.c.l.b16 %v600
        %v1113 = vunpack.c.l.b16 %v601
        %v1114 = vunpack.c.l.b16 %v602
        %v1115 = vunpack.c.l.b16 %v603
        %v1116 = vunpack.c.l.b16 %v604
        %v1117 = vunpack.c.l.b16 %v605
        %v1118 = vunpack.c.l.b16 %v606
        %v1119 = vunpack.c.l.b16 %v607
        %v1120 = vunpack.c.l.b16 %v608
        %v1121 = vunpack.c.l.b16 %v609
        %v1122 = vunpack.c.l.b16 %v610
        %v1123 = vunpack.c.l.b16 %v611
        %v1124 = vunpack.c.l.b16 %v612
        %v1125 = vunpack.c.l.b16 %v613
        %v1126 = vunpack.c.l.b16 %v614
        %v1127 = vunpack.c.l.b16 %v615
        %v1128 = vunpack.c.l.b16 %v616
        %v1129 = vunpack.c.l.b16 %v617
        %v1130 = vunpack.c.l.b16 %v618
        %v1131 = vunpack.c.l.b16 %v619
        %v1132 = vunpack.c.l.b16 %v620
        %v1133 = vunpack.c.l.b16 %v621
        %v1134 = vunpack.c.l.b16 %v622
        %v1135 = vunpack.c.l.b16 %v623
        %v1136 = vunpack.c.l.b16 %v624
        %v1137 = vunpack.c.l.b16 %v625
        %v1138 = vunpack.c.l.b16 %v626
        %v1139 = vunpack.c.l.b16 %v627
        %v1140 = vunpack.c.l.b16 %v628
        %v1141 = vunpack.c.l.b16 %v629
        %v1142 = vunpack.c.l.b16 %v630
        %v1143 = vunpack.c.l.b16 %v631
        %v1144 = vunpack.c.l.b16 %v632
        %v1145 = vunpack.c.l.b16 %v633
        %v1146 = vunpack.c.l.b16 %v634
        %v1147 = vunpack.c.l.b16 %v635
        %v1148 = vunpack.c.l.b16 %v636
        %v1149 = vunpack.c.l.b16 %v637
        %v1150 = vunpack.c.l.b16 %v638
        %v1151 = vunpack.c.l.b16 %v639
        %v1152 = vunpack.c.l.b16 %v640
        %v1153 = vunpack.c.l.b16 %v641
        %v1154 = vunpack.c.l.b16 %v642
        %v1155 = vunpack.c.l.b16 %v643
        %v1156 = vpack.c.b16 %v1093, %v1092
        %v1157 = vpack.c.b16 %v1095, %v1094
        %v1158 = vpack.c.b16 %v1097, %v1096
        %v1159 = vpack.c.b16 %v1099, %v1098
        %v1160 = vpack.c.b16 %v1101, %v1100
        %v1161 = vpack.c.b16 %v1103, %v1102
        %v1162 = vpack.c.b16 %v1105, %v1104
        %v1163 = vpack.c.b16 %v1107, %v1106
        %v1164 = vpack.c.b16 %v1109, %v1108
        %v1165 = vpack.c.b16 %v1111, %v1110
        %v1166 = vpack.c.b16 %v1113, %v1112
        %v1167 = vpack.c.b16 %v1115, %v1114
        %v1168 = vpack.c.b16 %v1117, %v1116
        %v1169 = vpack.c.b16 %v1119, %v1118
        %v1170 = vpack.c.b16 %v1121, %v1120
        %v1171 = vpack.c.b16 %v1123, %v1122
        %v1172 = vpack.c.b16 %v1125, %v1124
        %v1173 = vpack.c.b16 %v1127, %v1126
        %v1174 = vpack.c.b16 %v1129, %v1128
        %v1175 = vpack.c.b16 %v1131, %v1130
        %v1176 = vpack.c.b16 %v1133, %v1132
        %v1177 = vpack.c.b16 %v1135, %v1134
        %v1178 = vpack.c.b16 %v1137, %v1136
        %v1179 = vpack.c.b16 %v1139, %v1138
        %v1180 = vpack.c.b16 %v1141, %v1140
        %v1181 = vpack.c.b16 %v1143, %v1142
        %v1182 = vpack.c.b16 %v1145, %v1144
        %v1183 = vpack.c.b16 %v1147, %v1146
        %v1184 = vpack.c.b16 %v1149, %v1148
        %v1185 = vpack.c.b16 %v1151, %v1150
        %v1186 = vpack.c.b16 %v1153, %v1152
        %v1187 = vpack.c.b16 %v1155, %v1154
        %v1198 = vunpack.c.l.b16 %v570
        %v1199 = vunpack.c.h.b16 %v570
        %v1200 = vunpack.c.l.b16 %v571
        %v1201 = vunpack.c.h.b16 %v571
        %v1202 = vunpack.c.l.b16 %v572
        %v1203 = vunpack.c.h.b16 %v572
        %v1204 = vunpack.c.l.b16 %v573
        %v1205 = vunpack.c.h.b16 %v573
        %v1206 = vunpack.c.l.b16 %v574
        %v1207 = vunpack.c.h.b16 %v574
        %v1208 = vunpack.c.l.b16 %v575
        %v1209 = vunpack.c.h.b16 %v575
        %v1210 = vunpack.c.l.b16 %v576
        %v1211 = vunpack.c.h.b16 %v576
        %v1212 = vunpack.c.l.b16 %v577
        %v1213 = vunpack.c.h.b16 %v577
        %v1214 = vunpack.c.l.b16 %v578
        %v1215 = vunpack.c.h.b16 %v578
        %v1216 = vunpack.c.l.b16 %v579
        %v1217 = vunpack.c.h.b16 %v579
        %v1218 = vpack.c.b16 %v1200, %v1198
        %v1219 = vpack.c.b16 %v1201, %v1199
        %v1220 = vpack.c.b16 %v1204, %v1202
        %v1221 = vpack.c.b16 %v1205, %v1203
        %v1222 = vpack.c.b16 %v1208, %v1206
        %v1223 = vpack.c.b16 %v1209, %v1207
        %v1224 = vpack.c.b16 %v1212, %v1210
        %v1225 = vpack.c.b16 %v1213, %v1211
        %v1226 = vpack.c.b16 %v1216, %v1214
        %v1227 = vpack.c.b16 %v1217, %v1215
        %vm1238 = vcmask 654336
        %v1240 = vsel %vm1238, %v1156, 0
        %v1243 = vsel %vm1238, %v1157, 0
        %v1246 = vsel %vm1238, %v1158, 0
        %v1249 = vsel %vm1238, %v1159, 0
        %v1252 = vsel %vm1238, %v1160, 0
        %v1255 = vsel %vm1238, %v1161, 0
        %v1258 = vsel %vm1238, %v1162, 0
        %v1261 = vsel %vm1238, %v1163, 0
        %v1264 = vsel %vm1238, %v1164, 0
        %v1267 = vsel %vm1238, %v1165, 0
        %v1270 = vsel %vm1238, %v1166, 0
        %v1273 = vsel %vm1238, %v1167, 0
        %v1276 = vsel %vm1238, %v1168, 0
        %v1279 = vsel %vm1238, %v1169, 0
        %v1282 = vsel %vm1238, %v1170, 0
        %v1285 = vsel %vm1238, %v1171, 0
        %v1288 = vsel %vm1238, %v1172, 0
        %v1291 = vsel %vm1238, %v1173, 0
        %v1294 = vsel %vm1238, %v1174, 0
        %v1297 = vsel %vm1238, %v1175, 0
        %v1300 = vsel %vm1238, %v1176, 0
        %v1303 = vsel %vm1238, %v1177, 0
        %v1306 = vsel %vm1238, %v1178, 0
        %v1309 = vsel %vm1238, %v1179, 0
        %v1312 = vsel %vm1238, %v1180, 0
        %v1315 = vsel %vm1238, %v1181, 0
        %v1318 = vsel %vm1238, %v1182, 0
        %v1321 = vsel %vm1238, %v1183, 0
        %v1324 = vsel %vm1238, %v1184, 0
        %v1327 = vsel %vm1238, %v1185, 0
        %v1330 = vsel %vm1238, %v1186, 0
        %v1333 = vsel %vm1238, %v1187, 0
        %1335 = vmatprep.subr.bf16.mxu0 0
        %1336 = vmatpush1.bf16.msra.mxu0 0
        %1337 = vmatprep.subr.bf16.mxu0 0
        %1338 = vmatpush1.bf16.msra.mxu0 0
        %1339 = vmatprep.subr.bf16.mxu0 0
        %1340 = vmatpush1.bf16.msra.mxu0 0
        %1341 = vmatprep.subr.bf16.mxu0 %v1227
        %1342 = vmatpush1.bf16.msra.mxu0 %v1226
        %1343 = vmatprep.subr.bf16.mxu0 %v1225
        %1344 = vmatpush1.bf16.msra.mxu0 %v1224
        %1345 = vmatprep.subr.bf16.mxu0 %v1223
        %1346 = vmatpush1.bf16.msra.mxu0 %v1222
        %1347 = vmatprep.subr.bf16.mxu0 %v1221
        %1348 = vmatpush1.bf16.msra.mxu0 %v1220
        %1349 = vmatprep.subr.bf16.mxu0 %v1219
        %1350 = vmatpush1.bf16.msra.mxu0 %v1218
        %1351 = vmatprep.subr.bf16.mxu0 0
        %1352 = vmatpush2.bf16.msra.mxu0 0
        %1353 = vmatprep.subr.bf16.mxu0 0
        %1354 = vmatpush2.bf16.msra.mxu0 0
        %1355 = vmatprep.subr.bf16.mxu0 0
        %1356 = vmatpush2.bf16.msra.mxu0 0
        %1357 = vmatprep.subr.bf16.mxu0 0
        %1358 = vmatpush2.bf16.msra.mxu0 0
        %1359 = vmatprep.subr.bf16.mxu0 0
        %1360 = vmatpush2.bf16.msra.mxu0 0
        %1361 = vmatprep.subr.bf16.mxu0 0
        %1362 = vmatpush2.bf16.msra.mxu0 0
        %1363 = vmatprep.subr.bf16.mxu0 0
        %1364 = vmatpush2.bf16.msra.mxu0 0
        %1365 = vmatprep.subr.bf16.mxu0 0
        %1366 = vmatpush2.bf16.msra.mxu0 0
        %1367 = vmatprep.mubr.bf16.mxu0 0
        %1368 = vmatmul.mubr.bf16.gmra.mxu0 %v1240
        %v1369 = vpop.f32.mrf.mxu0
        %v1370 = vadd.f32 %v711, %v1369
        %v1371 = vpop.f32.mrf.mxu0
        %v1372 = vadd.f32 %v711, %v1371
        %v1373 = vpop.f32.mrf.mxu0
        %v1374 = vadd.f32 %v716, %v1373
        %v1375 = vpop.f32.mrf.mxu0
        %v1376 = vadd.f32 %v716, %v1375
        %1377 = vmatprep.mubr.bf16.mxu0 0
        %1378 = vmatmul.mubr.bf16.gmra.mxu0 %v1243
        %v1379 = vpop.f32.mrf.mxu0
        %v1380 = vadd.f32 %v721, %v1379
        %v1381 = vpop.f32.mrf.mxu0
        %v1382 = vadd.f32 %v721, %v1381
        %v1383 = vpop.f32.mrf.mxu0
        %v1384 = vadd.f32 %v726, %v1383
        %v1385 = vpop.f32.mrf.mxu0
        %v1386 = vadd.f32 %v726, %v1385
        %1387 = vmatprep.mubr.bf16.mxu0 0
        %1388 = vmatmul.mubr.bf16.gmra.mxu0 %v1246
        %v1389 = vpop.f32.mrf.mxu0
        %v1390 = vadd.f32 %v731, %v1389
        %v1391 = vpop.f32.mrf.mxu0
        %v1392 = vadd.f32 %v731, %v1391
        %v1393 = vpop.f32.mrf.mxu0
        %v1394 = vadd.f32 %v736, %v1393
        %v1395 = vpop.f32.mrf.mxu0
        %v1396 = vadd.f32 %v736, %v1395
        %1397 = vmatprep.mubr.bf16.mxu0 0
        %1398 = vmatmul.mubr.bf16.gmra.mxu0 %v1249
        %v1399 = vpop.f32.mrf.mxu0
        %v1400 = vadd.f32 %v741, %v1399
        %v1401 = vpop.f32.mrf.mxu0
        %v1402 = vadd.f32 %v741, %v1401
        %v1403 = vpop.f32.mrf.mxu0
        %v1404 = vadd.f32 %v746, %v1403
        %v1405 = vpop.f32.mrf.mxu0
        %v1406 = vadd.f32 %v746, %v1405
        %1407 = vmatprep.mubr.bf16.mxu0 0
        %1408 = vmatmul.mubr.bf16.gmra.mxu0 %v1252
        %v1409 = vpop.f32.mrf.mxu0
        %v1410 = vadd.f32 %v751, %v1409
        %v1411 = vpop.f32.mrf.mxu0
        %v1412 = vadd.f32 %v751, %v1411
        %v1413 = vpop.f32.mrf.mxu0
        %v1414 = vadd.f32 %v756, %v1413
        %v1415 = vpop.f32.mrf.mxu0
        %v1416 = vadd.f32 %v756, %v1415
        %1417 = vmatprep.mubr.bf16.mxu0 0
        %1418 = vmatmul.mubr.bf16.gmra.mxu0 %v1255
        %v1419 = vpop.f32.mrf.mxu0
        %v1420 = vadd.f32 %v761, %v1419
        %v1421 = vpop.f32.mrf.mxu0
        %v1422 = vadd.f32 %v761, %v1421
        %v1423 = vpop.f32.mrf.mxu0
        %v1424 = vadd.f32 %v766, %v1423
        %v1425 = vpop.f32.mrf.mxu0
        %v1426 = vadd.f32 %v766, %v1425
        %1427 = vmatprep.mubr.bf16.mxu0 0
        %1428 = vmatmul.mubr.bf16.gmra.mxu0 %v1258
        %v1429 = vpop.f32.mrf.mxu0
        %v1430 = vadd.f32 %v771, %v1429
        %v1431 = vpop.f32.mrf.mxu0
        %v1432 = vadd.f32 %v771, %v1431
        %v1433 = vpop.f32.mrf.mxu0
        %v1434 = vadd.f32 %v776, %v1433
        %v1435 = vpop.f32.mrf.mxu0
        %v1436 = vadd.f32 %v776, %v1435
        %1437 = vmatprep.mubr.bf16.mxu0 0
        %1438 = vmatmul.mubr.bf16.gmra.mxu0 %v1261
        %v1439 = vpop.f32.mrf.mxu0
        %v1440 = vadd.f32 %v781, %v1439
        %v1441 = vpop.f32.mrf.mxu0
        %v1442 = vadd.f32 %v781, %v1441
        %v1443 = vpop.f32.mrf.mxu0
        %v1444 = vadd.f32 %v786, %v1443
        %v1445 = vpop.f32.mrf.mxu0
        %v1446 = vadd.f32 %v786, %v1445
        %1447 = vmatprep.mubr.bf16.mxu0 0
        %1448 = vmatmul.mubr.bf16.gmra.mxu0 %v1264
        %v1449 = vpop.f32.mrf.mxu0
        %v1450 = vadd.f32 %v791, %v1449
        %v1451 = vpop.f32.mrf.mxu0
        %v1452 = vadd.f32 %v791, %v1451
        %v1453 = vpop.f32.mrf.mxu0
        %v1454 = vadd.f32 %v796, %v1453
        %v1455 = vpop.f32.mrf.mxu0
        %v1456 = vadd.f32 %v796, %v1455
        %1457 = vmatprep.mubr.bf16.mxu0 0
        %1458 = vmatmul.mubr.bf16.gmra.mxu0 %v1267
        %v1459 = vpop.f32.mrf.mxu0
        %v1460 = vadd.f32 %v801, %v1459
        %v1461 = vpop.f32.mrf.mxu0
        %v1462 = vadd.f32 %v801, %v1461
        %v1463 = vpop.f32.mrf.mxu0
        %v1464 = vadd.f32 %v806, %v1463
        %v1465 = vpop.f32.mrf.mxu0
        %v1466 = vadd.f32 %v806, %v1465
        %1467 = vmatprep.mubr.bf16.mxu0 0
        %1468 = vmatmul.mubr.bf16.gmra.mxu0 %v1270
        %v1469 = vpop.f32.mrf.mxu0
        %v1470 = vadd.f32 %v811, %v1469
        %v1471 = vpop.f32.mrf.mxu0
        %v1472 = vadd.f32 %v811, %v1471
        %v1473 = vpop.f32.mrf.mxu0
        %v1474 = vadd.f32 %v816, %v1473
        %v1475 = vpop.f32.mrf.mxu0
        %v1476 = vadd.f32 %v816, %v1475
        %1477 = vmatprep.mubr.bf16.mxu0 0
        %1478 = vmatmul.mubr.bf16.gmra.mxu0 %v1273
        %v1479 = vpop.f32.mrf.mxu0
        %v1480 = vadd.f32 %v821, %v1479
        %v1481 = vpop.f32.mrf.mxu0
        %v1482 = vadd.f32 %v821, %v1481
        %v1483 = vpop.f32.mrf.mxu0
        %v1484 = vadd.f32 %v826, %v1483
        %v1485 = vpop.f32.mrf.mxu0
        %v1486 = vadd.f32 %v826, %v1485
        %1487 = vmatprep.mubr.bf16.mxu0 0
        %1488 = vmatmul.mubr.bf16.gmra.mxu0 %v1276
        %v1489 = vpop.f32.mrf.mxu0
        %v1490 = vadd.f32 %v831, %v1489
        %v1491 = vpop.f32.mrf.mxu0
        %v1492 = vadd.f32 %v831, %v1491
        %v1493 = vpop.f32.mrf.mxu0
        %v1494 = vadd.f32 %v836, %v1493
        %v1495 = vpop.f32.mrf.mxu0
        %v1496 = vadd.f32 %v836, %v1495
        %1497 = vmatprep.mubr.bf16.mxu0 0
        %1498 = vmatmul.mubr.bf16.gmra.mxu0 %v1279
        %v1499 = vpop.f32.mrf.mxu0
        %v1500 = vadd.f32 %v841, %v1499
        %v1501 = vpop.f32.mrf.mxu0
        %v1502 = vadd.f32 %v841, %v1501
        %v1503 = vpop.f32.mrf.mxu0
        %v1504 = vadd.f32 %v846, %v1503
        %v1505 = vpop.f32.mrf.mxu0
        %v1506 = vadd.f32 %v846, %v1505
        %1507 = vmatprep.mubr.bf16.mxu0 0
        %1508 = vmatmul.mubr.bf16.gmra.mxu0 %v1282
        %v1509 = vpop.f32.mrf.mxu0
        %v1510 = vadd.f32 %v851, %v1509
        %v1511 = vpop.f32.mrf.mxu0
        %v1512 = vadd.f32 %v851, %v1511
        %v1513 = vpop.f32.mrf.mxu0
        %v1514 = vadd.f32 %v856, %v1513
        %v1515 = vpop.f32.mrf.mxu0
        %v1516 = vadd.f32 %v856, %v1515
        %1517 = vmatprep.mubr.bf16.mxu0 0
        %1518 = vmatmul.mubr.bf16.gmra.mxu0 %v1285
        %v1519 = vpop.f32.mrf.mxu0
        %v1520 = vadd.f32 %v861, %v1519
        %v1521 = vpop.f32.mrf.mxu0
        %v1522 = vadd.f32 %v861, %v1521
        %v1523 = vpop.f32.mrf.mxu0
        %v1524 = vadd.f32 %v866, %v1523
        %v1525 = vpop.f32.mrf.mxu0
        %v1526 = vadd.f32 %v866, %v1525
        %1527 = vmatprep.mubr.bf16.mxu0 0
        %1528 = vmatmul.mubr.bf16.gmra.mxu0 %v1288
        %v1529 = vpop.f32.mrf.mxu0
        %v1530 = vadd.f32 %v871, %v1529
        %v1531 = vpop.f32.mrf.mxu0
        %v1532 = vadd.f32 %v871, %v1531
        %v1533 = vpop.f32.mrf.mxu0
        %v1534 = vadd.f32 %v876, %v1533
        %v1535 = vpop.f32.mrf.mxu0
        %v1536 = vadd.f32 %v876, %v1535
        %1537 = vmatprep.mubr.bf16.mxu0 0
        %1538 = vmatmul.mubr.bf16.gmra.mxu0 %v1291
        %v1539 = vpop.f32.mrf.mxu0
        %v1540 = vadd.f32 %v881, %v1539
        %v1541 = vpop.f32.mrf.mxu0
        %v1542 = vadd.f32 %v881, %v1541
        %v1543 = vpop.f32.mrf.mxu0
        %v1544 = vadd.f32 %v886, %v1543
        %v1545 = vpop.f32.mrf.mxu0
        %v1546 = vadd.f32 %v886, %v1545
        %1547 = vmatprep.mubr.bf16.mxu0 0
        %1548 = vmatmul.mubr.bf16.gmra.mxu0 %v1294
        %v1549 = vpop.f32.mrf.mxu0
        %v1550 = vadd.f32 %v891, %v1549
        %v1551 = vpop.f32.mrf.mxu0
        %v1552 = vadd.f32 %v891, %v1551
        %v1553 = vpop.f32.mrf.mxu0
        %v1554 = vadd.f32 %v896, %v1553
        %v1555 = vpop.f32.mrf.mxu0
        %v1556 = vadd.f32 %v896, %v1555
        %1557 = vmatprep.mubr.bf16.mxu0 0
        %1558 = vmatmul.mubr.bf16.gmra.mxu0 %v1297
        %v1559 = vpop.f32.mrf.mxu0
        %v1560 = vadd.f32 %v901, %v1559
        %v1561 = vpop.f32.mrf.mxu0
        %v1562 = vadd.f32 %v901, %v1561
        %v1563 = vpop.f32.mrf.mxu0
        %v1564 = vadd.f32 %v906, %v1563
        %v1565 = vpop.f32.mrf.mxu0
        %v1566 = vadd.f32 %v906, %v1565
        %1567 = vmatprep.mubr.bf16.mxu0 0
        %1568 = vmatmul.mubr.bf16.gmra.mxu0 %v1300
        %v1569 = vpop.f32.mrf.mxu0
        %v1570 = vadd.f32 %v911, %v1569
        %v1571 = vpop.f32.mrf.mxu0
        %v1572 = vadd.f32 %v911, %v1571
        %v1573 = vpop.f32.mrf.mxu0
        %v1574 = vadd.f32 %v916, %v1573
        %v1575 = vpop.f32.mrf.mxu0
        %v1576 = vadd.f32 %v916, %v1575
        %1577 = vmatprep.mubr.bf16.mxu0 0
        %1578 = vmatmul.mubr.bf16.gmra.mxu0 %v1303
        %v1579 = vpop.f32.mrf.mxu0
        %v1580 = vadd.f32 %v921, %v1579
        %v1581 = vpop.f32.mrf.mxu0
        %v1582 = vadd.f32 %v921, %v1581
        %v1583 = vpop.f32.mrf.mxu0
        %v1584 = vadd.f32 %v926, %v1583
        %v1585 = vpop.f32.mrf.mxu0
        %v1586 = vadd.f32 %v926, %v1585
        %1587 = vmatprep.mubr.bf16.mxu0 0
        %1588 = vmatmul.mubr.bf16.gmra.mxu0 %v1306
        %v1589 = vpop.f32.mrf.mxu0
        %v1590 = vadd.f32 %v931, %v1589
        %v1591 = vpop.f32.mrf.mxu0
        %v1592 = vadd.f32 %v931, %v1591
        %v1593 = vpop.f32.mrf.mxu0
        %v1594 = vadd.f32 %v936, %v1593
        %v1595 = vpop.f32.mrf.mxu0
        %v1596 = vadd.f32 %v936, %v1595
        %1597 = vmatprep.mubr.bf16.mxu0 0
        %1598 = vmatmul.mubr.bf16.gmra.mxu0 %v1309
        %v1599 = vpop.f32.mrf.mxu0
        %v1600 = vadd.f32 %v941, %v1599
        %v1601 = vpop.f32.mrf.mxu0
        %v1602 = vadd.f32 %v941, %v1601
        %v1603 = vpop.f32.mrf.mxu0
        %v1604 = vadd.f32 %v946, %v1603
        %v1605 = vpop.f32.mrf.mxu0
        %v1606 = vadd.f32 %v946, %v1605
        %1607 = vmatprep.mubr.bf16.mxu0 0
        %1608 = vmatmul.mubr.bf16.gmra.mxu0 %v1312
        %v1609 = vpop.f32.mrf.mxu0
        %v1610 = vadd.f32 %v951, %v1609
        %v1611 = vpop.f32.mrf.mxu0
        %v1612 = vadd.f32 %v951, %v1611
        %v1613 = vpop.f32.mrf.mxu0
        %v1614 = vadd.f32 %v956, %v1613
        %v1615 = vpop.f32.mrf.mxu0
        %v1616 = vadd.f32 %v956, %v1615
        %1617 = vmatprep.mubr.bf16.mxu0 0
        %1618 = vmatmul.mubr.bf16.gmra.mxu0 %v1315
        %v1619 = vpop.f32.mrf.mxu0
        %v1620 = vadd.f32 %v961, %v1619
        %v1621 = vpop.f32.mrf.mxu0
        %v1622 = vadd.f32 %v961, %v1621
        %v1623 = vpop.f32.mrf.mxu0
        %v1624 = vadd.f32 %v966, %v1623
        %v1625 = vpop.f32.mrf.mxu0
        %v1626 = vadd.f32 %v966, %v1625
        %1627 = vmatprep.mubr.bf16.mxu0 0
        %1628 = vmatmul.mubr.bf16.gmra.mxu0 %v1318
        %v1629 = vpop.f32.mrf.mxu0
        %v1630 = vadd.f32 %v971, %v1629
        %v1631 = vpop.f32.mrf.mxu0
        %v1632 = vadd.f32 %v971, %v1631
        %v1633 = vpop.f32.mrf.mxu0
        %v1634 = vadd.f32 %v976, %v1633
        %v1635 = vpop.f32.mrf.mxu0
        %v1636 = vadd.f32 %v976, %v1635
        %1637 = vmatprep.mubr.bf16.mxu0 0
        %1638 = vmatmul.mubr.bf16.gmra.mxu0 %v1321
        %v1639 = vpop.f32.mrf.mxu0
        %v1640 = vadd.f32 %v981, %v1639
        %v1641 = vpop.f32.mrf.mxu0
        %v1642 = vadd.f32 %v981, %v1641
        %v1643 = vpop.f32.mrf.mxu0
        %v1644 = vadd.f32 %v986, %v1643
        %v1645 = vpop.f32.mrf.mxu0
        %v1646 = vadd.f32 %v986, %v1645
        %1647 = vmatprep.mubr.bf16.mxu0 0
        %1648 = vmatmul.mubr.bf16.gmra.mxu0 %v1324
        %v1649 = vpop.f32.mrf.mxu0
        %v1650 = vadd.f32 %v991, %v1649
        %v1651 = vpop.f32.mrf.mxu0
        %v1652 = vadd.f32 %v991, %v1651
        %v1653 = vpop.f32.mrf.mxu0
        %v1654 = vadd.f32 %v996, %v1653
        %v1655 = vpop.f32.mrf.mxu0
        %v1656 = vadd.f32 %v996, %v1655
        %1657 = vmatprep.mubr.bf16.mxu0 0
        %1658 = vmatmul.mubr.bf16.gmra.mxu0 %v1327
        %v1659 = vpop.f32.mrf.mxu0
        %v1660 = vadd.f32 %v1001, %v1659
        %v1661 = vpop.f32.mrf.mxu0
        %v1662 = vadd.f32 %v1001, %v1661
        %v1663 = vpop.f32.mrf.mxu0
        %v1664 = vadd.f32 %v1006, %v1663
        %v1665 = vpop.f32.mrf.mxu0
        %v1666 = vadd.f32 %v1006, %v1665
        %1667 = vmatprep.mubr.bf16.mxu0 0
        %1668 = vmatmul.mubr.bf16.gmra.mxu0 %v1330
        %v1669 = vpop.f32.mrf.mxu0
        %v1670 = vadd.f32 %v1011, %v1669
        %v1671 = vpop.f32.mrf.mxu0
        %v1672 = vadd.f32 %v1011, %v1671
        %v1673 = vpop.f32.mrf.mxu0
        %v1674 = vadd.f32 %v1016, %v1673
        %v1675 = vpop.f32.mrf.mxu0
        %v1676 = vadd.f32 %v1016, %v1675
        %1677 = vmatprep.mubr.bf16.mxu0 0
        %1678 = vmatmul.mubr.bf16.gmra.mxu0 %v1333
        %v1679 = vpop.f32.mrf.mxu0
        %v1680 = vadd.f32 %v1021, %v1679
        %v1681 = vpop.f32.mrf.mxu0
        %v1682 = vadd.f32 %v1021, %v1681
        %v1683 = vpop.f32.mrf.mxu0
        %v1684 = vadd.f32 %v1026, %v1683
        %v1685 = vpop.f32.mrf.mxu0
        %v1686 = vadd.f32 %v1026, %v1685
        %1687 = vdwg.mxu0
        %v1688 = vmax.f32 %v1370, 0.0
        %v1689 = vmax.f32 %v1372, 0.0
        %v1690 = vmax.f32 %v1374, 0.0
        %v1691 = vmax.f32 %v1376, 0.0
        %v1692 = vmax.f32 %v1380, 0.0
        %v1693 = vmax.f32 %v1382, 0.0
        %v1694 = vmax.f32 %v1384, 0.0
        %v1695 = vmax.f32 %v1386, 0.0
        %v1696 = vmax.f32 %v1390, 0.0
        %v1697 = vmax.f32 %v1392, 0.0
        %v1698 = vmax.f32 %v1394, 0.0
        %v1699 = vmax.f32 %v1396, 0.0
        %v1700 = vmax.f32 %v1400, 0.0
        %v1701 = vmax.f32 %v1402, 0.0
        %v1702 = vmax.f32 %v1404, 0.0
        %v1703 = vmax.f32 %v1406, 0.0
        %v1704 = vmax.f32 %v1410, 0.0
        %v1705 = vmax.f32 %v1412, 0.0
        %v1706 = vmax.f32 %v1414, 0.0
        %v1707 = vmax.f32 %v1416, 0.0
        %v1708 = vmax.f32 %v1420, 0.0
        %v1709 = vmax.f32 %v1422, 0.0
        %v1710 = vmax.f32 %v1424, 0.0
        %v1711 = vmax.f32 %v1426, 0.0
        %v1712 = vmax.f32 %v1430, 0.0
        %v1713 = vmax.f32 %v1432, 0.0
        %v1714 = vmax.f32 %v1434, 0.0
        %v1715 = vmax.f32 %v1436, 0.0
        %v1716 = vmax.f32 %v1440, 0.0
        %v1717 = vmax.f32 %v1442, 0.0
        %v1718 = vmax.f32 %v1444, 0.0
        %v1719 = vmax.f32 %v1446, 0.0
        %v1720 = vmax.f32 %v1450, 0.0
        %v1721 = vmax.f32 %v1452, 0.0
        %v1722 = vmax.f32 %v1454, 0.0
        %v1723 = vmax.f32 %v1456, 0.0
        %v1724 = vmax.f32 %v1460, 0.0
        %v1725 = vmax.f32 %v1462, 0.0
        %v1726 = vmax.f32 %v1464, 0.0
        %v1727 = vmax.f32 %v1466, 0.0
        %v1728 = vmax.f32 %v1470, 0.0
        %v1729 = vmax.f32 %v1472, 0.0
        %v1730 = vmax.f32 %v1474, 0.0
        %v1731 = vmax.f32 %v1476, 0.0
        %v1732 = vmax.f32 %v1480, 0.0
        %v1733 = vmax.f32 %v1482, 0.0
        %v1734 = vmax.f32 %v1484, 0.0
        %v1735 = vmax.f32 %v1486, 0.0
        %v1736 = vmax.f32 %v1490, 0.0
        %v1737 = vmax.f32 %v1492, 0.0
        %v1738 = vmax.f32 %v1494, 0.0
        %v1739 = vmax.f32 %v1496, 0.0
        %v1740 = vmax.f32 %v1500, 0.0
        %v1741 = vmax.f32 %v1502, 0.0
        %v1742 = vmax.f32 %v1504, 0.0
        %v1743 = vmax.f32 %v1506, 0.0
        %v1744 = vmax.f32 %v1510, 0.0
        %v1745 = vmax.f32 %v1512, 0.0
        %v1746 = vmax.f32 %v1514, 0.0
        %v1747 = vmax.f32 %v1516, 0.0
        %v1748 = vmax.f32 %v1520, 0.0
        %v1749 = vmax.f32 %v1522, 0.0
        %v1750 = vmax.f32 %v1524, 0.0
        %v1751 = vmax.f32 %v1526, 0.0
        %v1752 = vmax.f32 %v1530, 0.0
        %v1753 = vmax.f32 %v1532, 0.0
        %v1754 = vmax.f32 %v1534, 0.0
        %v1755 = vmax.f32 %v1536, 0.0
        %v1756 = vmax.f32 %v1540, 0.0
        %v1757 = vmax.f32 %v1542, 0.0
        %v1758 = vmax.f32 %v1544, 0.0
        %v1759 = vmax.f32 %v1546, 0.0
        %v1760 = vmax.f32 %v1550, 0.0
        %v1761 = vmax.f32 %v1552, 0.0
        %v1762 = vmax.f32 %v1554, 0.0
        %v1763 = vmax.f32 %v1556, 0.0
        %v1764 = vmax.f32 %v1560, 0.0
        %v1765 = vmax.f32 %v1562, 0.0
        %v1766 = vmax.f32 %v1564, 0.0
        %v1767 = vmax.f32 %v1566, 0.0
        %v1768 = vmax.f32 %v1570, 0.0
        %v1769 = vmax.f32 %v1572, 0.0
        %v1770 = vmax.f32 %v1574, 0.0
        %v1771 = vmax.f32 %v1576, 0.0
        %v1772 = vmax.f32 %v1580, 0.0
        %v1773 = vmax.f32 %v1582, 0.0
        %v1774 = vmax.f32 %v1584, 0.0
        %v1775 = vmax.f32 %v1586, 0.0
        %v1776 = vmax.f32 %v1590, 0.0
        %v1777 = vmax.f32 %v1592, 0.0
        %v1778 = vmax.f32 %v1594, 0.0
        %v1779 = vmax.f32 %v1596, 0.0
        %v1780 = vmax.f32 %v1600, 0.0
        %v1781 = vmax.f32 %v1602, 0.0
        %v1782 = vmax.f32 %v1604, 0.0
        %v1783 = vmax.f32 %v1606, 0.0
        %v1784 = vmax.f32 %v1610, 0.0
        %v1785 = vmax.f32 %v1612, 0.0
        %v1786 = vmax.f32 %v1614, 0.0
        %v1787 = vmax.f32 %v1616, 0.0
        %v1788 = vmax.f32 %v1620, 0.0
        %v1789 = vmax.f32 %v1622, 0.0
        %v1790 = vmax.f32 %v1624, 0.0
        %v1791 = vmax.f32 %v1626, 0.0
        %v1792 = vmax.f32 %v1630, 0.0
        %v1793 = vmax.f32 %v1632, 0.0
        %v1794 = vmax.f32 %v1634, 0.0
        %v1795 = vmax.f32 %v1636, 0.0
        %v1796 = vmax.f32 %v1640, 0.0
        %v1797 = vmax.f32 %v1642, 0.0
        %v1798 = vmax.f32 %v1644, 0.0
        %v1799 = vmax.f32 %v1646, 0.0
        %v1800 = vmax.f32 %v1650, 0.0
        %v1801 = vmax.f32 %v1652, 0.0
        %v1802 = vmax.f32 %v1654, 0.0
        %v1803 = vmax.f32 %v1656, 0.0
        %v1804 = vmax.f32 %v1660, 0.0
        %v1805 = vmax.f32 %v1662, 0.0
        %v1806 = vmax.f32 %v1664, 0.0
        %v1807 = vmax.f32 %v1666, 0.0
        %v1808 = vmax.f32 %v1670, 0.0
        %v1809 = vmax.f32 %v1672, 0.0
        %v1810 = vmax.f32 %v1674, 0.0
        %v1811 = vmax.f32 %v1676, 0.0
        %v1812 = vmax.f32 %v1680, 0.0
        %v1813 = vmax.f32 %v1682, 0.0
        %v1814 = vmax.f32 %v1684, 0.0
        %v1815 = vmax.f32 %v1686, 0.0
        %v1816 = vld [vmem:[%s3] sm:$0xff]
        %v1817 = vld [vmem:[%s3 + $0x8] sm:$0xff]
        %v1818 = vld [vmem:[%s3 + $0x10] sm:$0xff]
        %v1819 = vld [vmem:[%s3 + $0x18] sm:$0xff]
        %v1820 = vld [vmem:[%s3 + $0x20] sm:$0xff]
        %v1821 = vld [vmem:[%s3 + $0x28] sm:$0xff]
        %v1822 = vld [vmem:[%s3 + $0x30] sm:$0xff]
        %v1823 = vld [vmem:[%s3 + $0x38] sm:$0xff]
        %v1824 = vld [vmem:[%s3 + $0x40] sm:$0xff]
        %v1825 = vld [vmem:[%s3 + $0x48] sm:$0xff]
        %v1826 = vld [vmem:[%s3 + $0x50] sm:$0xff]
        %v1827 = vld [vmem:[%s3 + $0x58] sm:$0xff]
        %v1828 = vld [vmem:[%s3 + $0x60] sm:$0xff]
        %v1829 = vld [vmem:[%s3 + $0x68] sm:$0xff]
        %v1830 = vld [vmem:[%s3 + $0x70] sm:$0xff]
        %v1831 = vld [vmem:[%s3 + $0x78] sm:$0xff]
        %v1832 = vld [vmem:[%s3 + $0x80] sm:$0xff]
        %v1833 = vld [vmem:[%s3 + $0x88] sm:$0xff]
        %v1834 = vld [vmem:[%s3 + $0x90] sm:$0xff]
        %v1835 = vld [vmem:[%s3 + $0x98] sm:$0xff]
        %v1836 = vld [vmem:[%s3 + $0xa0] sm:$0xff]
        %v1837 = vld [vmem:[%s3 + $0xa8] sm:$0xff]
        %v1838 = vld [vmem:[%s3 + $0xb0] sm:$0xff]
        %v1839 = vld [vmem:[%s3 + $0xb8] sm:$0xff]
        %v1840 = vld [vmem:[%s3 + $0xc0] sm:$0xff]
        %v1841 = vld [vmem:[%s3 + $0xc8] sm:$0xff]
        %v1842 = vld [vmem:[%s3 + $0xd0] sm:$0xff]
        %v1843 = vld [vmem:[%s3 + $0xd8] sm:$0xff]
        %v1844 = vld [vmem:[%s3 + $0xe0] sm:$0xff]
        %v1845 = vld [vmem:[%s3 + $0xe8] sm:$0xff]
        %v1846 = vld [vmem:[%s3 + $0xf0] sm:$0xff]
        %v1847 = vld [vmem:[%s3 + $0xf8] sm:$0xff]
        %v1848 = vld [vmem:[%s3 + $0x100] sm:$0xff]
        %v1849 = vld [vmem:[%s3 + $0x108] sm:$0xff]
        %v1850 = vld [vmem:[%s3 + $0x110] sm:$0xff]
        %v1851 = vld [vmem:[%s3 + $0x118] sm:$0xff]
        %v1852 = vld [vmem:[%s3 + $0x120] sm:$0xff]
        %v1853 = vld [vmem:[%s3 + $0x128] sm:$0xff]
        %v1854 = vld [vmem:[%s3 + $0x130] sm:$0xff]
        %v1855 = vld [vmem:[%s3 + $0x138] sm:$0xff]
        %v1856 = vld [vmem:[%s3 + $0x140] sm:$0xff]
        %v1857 = vld [vmem:[%s3 + $0x148] sm:$0xff]
        %v1858 = vld [vmem:[%s3 + $0x150] sm:$0xff]
        %v1859 = vld [vmem:[%s3 + $0x158] sm:$0xff]
        %v1860 = vld [vmem:[%s3 + $0x160] sm:$0xff]
        %v1861 = vld [vmem:[%s3 + $0x168] sm:$0xff]
        %v1862 = vld [vmem:[%s3 + $0x170] sm:$0xff]
        %v1863 = vld [vmem:[%s3 + $0x178] sm:$0xff]
        %v1864 = vld [vmem:[%s3 + $0x180] sm:$0xff]
        %v1865 = vld [vmem:[%s3 + $0x188] sm:$0xff]
        %v1866 = vld [vmem:[%s3 + $0x190] sm:$0xff]
        %v1867 = vld [vmem:[%s3 + $0x198] sm:$0xff]
        %v1868 = vld [vmem:[%s3 + $0x1a0] sm:$0xff]
        %v1869 = vld [vmem:[%s3 + $0x1a8] sm:$0xff]
        %v1870 = vld [vmem:[%s3 + $0x1b0] sm:$0xff]
        %v1871 = vld [vmem:[%s3 + $0x1b8] sm:$0xff]
        %v1872 = vld [vmem:[%s3 + $0x1c0] sm:$0xff]
        %v1873 = vld [vmem:[%s3 + $0x1c8] sm:$0xff]
        %v1874 = vld [vmem:[%s3 + $0x1d0] sm:$0xff]
        %v1875 = vld [vmem:[%s3 + $0x1d8] sm:$0xff]
        %v1876 = vld [vmem:[%s3 + $0x1e0] sm:$0xff]
        %v1877 = vld [vmem:[%s3 + $0x1e8] sm:$0xff]
        %v1878 = vld [vmem:[%s3 + $0x1f0] sm:$0xff]
        %v1879 = vld [vmem:[%s3 + $0x1f8] sm:$0xff]
        %v1880 = vld [vmem:[%s3 + $0x200] sm:$0xff]
        %v1881 = vld [vmem:[%s3 + $0x208] sm:$0xff]
        %v1882 = vld [vmem:[%s3 + $0x210] sm:$0xff]
        %v1883 = vld [vmem:[%s3 + $0x218] sm:$0xff]
        %v1884 = vld [vmem:[%s3 + $0x220] sm:$0xff]
        %v1885 = vld [vmem:[%s3 + $0x228] sm:$0xff]
        %v1886 = vld [vmem:[%s3 + $0x230] sm:$0xff]
        %v1887 = vld [vmem:[%s3 + $0x238] sm:$0xff]
        %v1888 = vld [vmem:[%s3 + $0x240] sm:$0xff]
        %v1889 = vld [vmem:[%s3 + $0x248] sm:$0xff]
        %v1890 = vld [vmem:[%s3 + $0x250] sm:$0xff]
        %v1891 = vld [vmem:[%s3 + $0x258] sm:$0xff]
        %v1892 = vld [vmem:[%s3 + $0x260] sm:$0xff]
        %v1893 = vld [vmem:[%s3 + $0x268] sm:$0xff]
        %v1894 = vld [vmem:[%s3 + $0x270] sm:$0xff]
        %v1895 = vld [vmem:[%s3 + $0x278] sm:$0xff]
        %v1896 = vld [vmem:[%s3 + $0x280] sm:$0xff]
        %v1897 = vld [vmem:[%s3 + $0x288] sm:$0xff]
        %v1898 = vld [vmem:[%s3 + $0x290] sm:$0xff]
        %v1899 = vld [vmem:[%s3 + $0x298] sm:$0xff]
        %v1900 = vld [vmem:[%s3 + $0x2a0] sm:$0xff]
        %v1901 = vld [vmem:[%s3 + $0x2a8] sm:$0xff]
        %v1902 = vld [vmem:[%s3 + $0x2b0] sm:$0xff]
        %v1903 = vld [vmem:[%s3 + $0x2b8] sm:$0xff]
        %v1904 = vld [vmem:[%s3 + $0x2c0] sm:$0xff]
        %v1905 = vld [vmem:[%s3 + $0x2c8] sm:$0xff]
        %v1906 = vld [vmem:[%s3 + $0x2d0] sm:$0xff]
        %v1907 = vld [vmem:[%s3 + $0x2d8] sm:$0xff]
        %v1908 = vld [vmem:[%s3 + $0x2e0] sm:$0xff]
        %v1909 = vld [vmem:[%s3 + $0x2e8] sm:$0xff]
        %v1910 = vld [vmem:[%s3 + $0x2f0] sm:$0xff]
        %v1911 = vld [vmem:[%s3 + $0x2f8] sm:$0xff]
        %v1912 = vpack.c.bf16 %v1690, %v1688
        %v1913 = vpack.c.bf16 %v1691, %v1689
        %v1914 = vpack.c.bf16 %v1694, %v1692
        %v1915 = vpack.c.bf16 %v1695, %v1693
        %v1916 = vpack.c.bf16 %v1698, %v1696
        %v1917 = vpack.c.bf16 %v1699, %v1697
        %v1918 = vpack.c.bf16 %v1702, %v1700
        %v1919 = vpack.c.bf16 %v1703, %v1701
        %v1920 = vpack.c.bf16 %v1706, %v1704
        %v1921 = vpack.c.bf16 %v1707, %v1705
        %v1922 = vpack.c.bf16 %v1710, %v1708
        %v1923 = vpack.c.bf16 %v1711, %v1709
        %v1924 = vpack.c.bf16 %v1714, %v1712
        %v1925 = vpack.c.bf16 %v1715, %v1713
        %v1926 = vpack.c.bf16 %v1718, %v1716
        %v1927 = vpack.c.bf16 %v1719, %v1717
        %v1928 = vpack.c.bf16 %v1722, %v1720
        %v1929 = vpack.c.bf16 %v1723, %v1721
        %v1930 = vpack.c.bf16 %v1726, %v1724
        %v1931 = vpack.c.bf16 %v1727, %v1725
        %v1932 = vpack.c.bf16 %v1730, %v1728
        %v1933 = vpack.c.bf16 %v1731, %v1729
        %v1934 = vpack.c.bf16 %v1734, %v1732
        %v1935 = vpack.c.bf16 %v1735, %v1733
        %v1936 = vpack.c.bf16 %v1738, %v1736
        %v1937 = vpack.c.bf16 %v1739, %v1737
        %v1938 = vpack.c.bf16 %v1742, %v1740
        %v1939 = vpack.c.bf16 %v1743, %v1741
        %v1940 = vpack.c.bf16 %v1746, %v1744
        %v1941 = vpack.c.bf16 %v1747, %v1745
        %v1942 = vpack.c.bf16 %v1750, %v1748
        %v1943 = vpack.c.bf16 %v1751, %v1749
        %v1944 = vpack.c.bf16 %v1754, %v1752
        %v1945 = vpack.c.bf16 %v1755, %v1753
        %v1946 = vpack.c.bf16 %v1758, %v1756
        %v1947 = vpack.c.bf16 %v1759, %v1757
        %v1948 = vpack.c.bf16 %v1762, %v1760
        %v1949 = vpack.c.bf16 %v1763, %v1761
        %v1950 = vpack.c.bf16 %v1766, %v1764
        %v1951 = vpack.c.bf16 %v1767, %v1765
        %v1952 = vpack.c.bf16 %v1770, %v1768
        %v1953 = vpack.c.bf16 %v1771, %v1769
        %v1954 = vpack.c.bf16 %v1774, %v1772
        %v1955 = vpack.c.bf16 %v1775, %v1773
        %v1956 = vpack.c.bf16 %v1778, %v1776
        %v1957 = vpack.c.bf16 %v1779, %v1777
        %v1958 = vpack.c.bf16 %v1782, %v1780
        %v1959 = vpack.c.bf16 %v1783, %v1781
        %v1960 = vpack.c.bf16 %v1786, %v1784
        %v1961 = vpack.c.bf16 %v1787, %v1785
        %v1962 = vpack.c.bf16 %v1790, %v1788
        %v1963 = vpack.c.bf16 %v1791, %v1789
        %v1964 = vpack.c.bf16 %v1794, %v1792
        %v1965 = vpack.c.bf16 %v1795, %v1793
        %v1966 = vpack.c.bf16 %v1798, %v1796
        %v1967 = vpack.c.bf16 %v1799, %v1797
        %v1968 = vpack.c.bf16 %v1802, %v1800
        %v1969 = vpack.c.bf16 %v1803, %v1801
        %v1970 = vpack.c.bf16 %v1806, %v1804
        %v1971 = vpack.c.bf16 %v1807, %v1805
        %v1972 = vpack.c.bf16 %v1810, %v1808
        %v1973 = vpack.c.bf16 %v1811, %v1809
        %v1974 = vpack.c.bf16 %v1814, %v1812
        %v1975 = vpack.c.bf16 %v1815, %v1813
        %v1976 = vld [vmem:[%s4] sm:$0xff]
        %v1977 = vld [vmem:[%s4 + $0x8] sm:$0xff]
        %v1978 = vld [vmem:[%s4 + $0x10] sm:$0xff]
        %v1979 = vld [vmem:[%s4 + $0x18] sm:$0xff]
        %v1980 = vld [vmem:[%s4 + $0x20] sm:$0xff]
        %v1981 = vld [vmem:[%s4 + $0x28] sm:$0xff]
        %v1982 = vld [vmem:[%s4 + $0x30] sm:$0xff]
        %v1983 = vld [vmem:[%s4 + $0x38] sm:$0xff]
        %v1984 = vld [vmem:[%s4 + $0x40] sm:$0xff]
        %v1985 = vld [vmem:[%s4 + $0x48] sm:$0xff]
        %v1986 = vld [vmem:[%s4 + $0x50] sm:$0xff]
        %v1987 = vld [vmem:[%s4 + $0x58] sm:$0xff]
        %v1988 = vld [vmem:[%s4 + $0x60] sm:$0xff]
        %v1989 = vld [vmem:[%s4 + $0x68] sm:$0xff]
        %v1990 = vld [vmem:[%s4 + $0x70] sm:$0xff]
        %v1991 = vld [vmem:[%s4 + $0x78] sm:$0xff]
        %v1992 = vld [vmem:[%s4 + $0x80] sm:$0xff]
        %v1993 = vld [vmem:[%s4 + $0x88] sm:$0xff]
        %v1994 = vld [vmem:[%s4 + $0x90] sm:$0xff]
        %v1995 = vld [vmem:[%s4 + $0x98] sm:$0xff]
        %v1996 = vld [vmem:[%s4 + $0xa0] sm:$0xff]
        %v1997 = vld [vmem:[%s4 + $0xa8] sm:$0xff]
        %v1998 = vld [vmem:[%s4 + $0xb0] sm:$0xff]
        %v1999 = vld [vmem:[%s4 + $0xb8] sm:$0xff]
        %v2000 = vld [vmem:[%s4 + $0xc0] sm:$0xff]
        %v2001 = vld [vmem:[%s4 + $0xc8] sm:$0xff]
        %v2002 = vld [vmem:[%s4 + $0xd0] sm:$0xff]
        %v2003 = vld [vmem:[%s4 + $0xd8] sm:$0xff]
        %v2004 = vld [vmem:[%s4 + $0xe0] sm:$0xff]
        %v2005 = vld [vmem:[%s4 + $0xe8] sm:$0xff]
        %v2006 = vld [vmem:[%s4 + $0xf0] sm:$0xff]
        %v2007 = vld [vmem:[%s4 + $0xf8] sm:$0xff]
        %v2008 = vld [vmem:[%s4 + $0x100] sm:$0xff]
        %v2009 = vld [vmem:[%s4 + $0x108] sm:$0xff]
        %v2010 = vld [vmem:[%s4 + $0x110] sm:$0xff]
        %v2011 = vld [vmem:[%s4 + $0x118] sm:$0xff]
        %v2012 = vld [vmem:[%s4 + $0x120] sm:$0xff]
        %v2013 = vld [vmem:[%s4 + $0x128] sm:$0xff]
        %v2014 = vld [vmem:[%s4 + $0x130] sm:$0xff]
        %v2015 = vld [vmem:[%s4 + $0x138] sm:$0xff]
        %v2016 = vld [vmem:[%s4 + $0x140] sm:$0xff]
        %v2017 = vld [vmem:[%s4 + $0x148] sm:$0xff]
        %v2018 = vld [vmem:[%s4 + $0x150] sm:$0xff]
        %v2019 = vld [vmem:[%s4 + $0x158] sm:$0xff]
        %v2020 = vld [vmem:[%s4 + $0x160] sm:$0xff]
        %v2021 = vld [vmem:[%s4 + $0x168] sm:$0xff]
        %v2022 = vld [vmem:[%s4 + $0x170] sm:$0xff]
        %v2023 = vld [vmem:[%s4 + $0x178] sm:$0xff]
        %2025 = vset.pattern.permute.xlu0 0
        %2026 = vperm.xlu0 %2025, %v1976
        %v2027 = vpop.permute.xlu0 %2026
        %2030 = vset.pattern.permute.xlu0 0
        %2031 = vperm.xlu0 %2030, %v1977
        %v2032 = vpop.permute.xlu0 %2031
        %2035 = vset.pattern.permute.xlu0 0
        %2036 = vperm.xlu0 %2035, %v1978
        %v2037 = vpop.permute.xlu0 %2036
        %2040 = vset.pattern.permute.xlu0 0
        %2041 = vperm.xlu0 %2040, %v1979
        %v2042 = vpop.permute.xlu0 %2041
        %2045 = vset.pattern.permute.xlu0 0
        %2046 = vperm.xlu0 %2045, %v1980
        %v2047 = vpop.permute.xlu0 %2046
        %2050 = vset.pattern.permute.xlu0 0
        %2051 = vperm.xlu0 %2050, %v1981
        %v2052 = vpop.permute.xlu0 %2051
        %2055 = vset.pattern.permute.xlu0 0
        %2056 = vperm.xlu0 %2055, %v1982
        %v2057 = vpop.permute.xlu0 %2056
        %2060 = vset.pattern.permute.xlu0 0
        %2061 = vperm.xlu0 %2060, %v1983
        %v2062 = vpop.permute.xlu0 %2061
        %2065 = vset.pattern.permute.xlu0 0
        %2066 = vperm.xlu0 %2065, %v1984
        %v2067 = vpop.permute.xlu0 %2066
        %2070 = vset.pattern.permute.xlu0 0
        %2071 = vperm.xlu0 %2070, %v1985
        %v2072 = vpop.permute.xlu0 %2071
        %2075 = vset.pattern.permute.xlu0 0
        %2076 = vperm.xlu0 %2075, %v1986
        %v2077 = vpop.permute.xlu0 %2076
        %2080 = vset.pattern.permute.xlu0 0
        %2081 = vperm.xlu0 %2080, %v1987
        %v2082 = vpop.permute.xlu0 %2081
        %2085 = vset.pattern.permute.xlu0 0
        %2086 = vperm.xlu0 %2085, %v1988
        %v2087 = vpop.permute.xlu0 %2086
        %2090 = vset.pattern.permute.xlu0 0
        %2091 = vperm.xlu0 %2090, %v1989
        %v2092 = vpop.permute.xlu0 %2091
        %2095 = vset.pattern.permute.xlu0 0
        %2096 = vperm.xlu0 %2095, %v1990
        %v2097 = vpop.permute.xlu0 %2096
        %2100 = vset.pattern.permute.xlu0 0
        %2101 = vperm.xlu0 %2100, %v1991
        %v2102 = vpop.permute.xlu0 %2101
        %2105 = vset.pattern.permute.xlu0 0
        %2106 = vperm.xlu0 %2105, %v1992
        %v2107 = vpop.permute.xlu0 %2106
        %2110 = vset.pattern.permute.xlu0 0
        %2111 = vperm.xlu0 %2110, %v1993
        %v2112 = vpop.permute.xlu0 %2111
        %2115 = vset.pattern.permute.xlu0 0
        %2116 = vperm.xlu0 %2115, %v1994
        %v2117 = vpop.permute.xlu0 %2116
        %2120 = vset.pattern.permute.xlu0 0
        %2121 = vperm.xlu0 %2120, %v1995
        %v2122 = vpop.permute.xlu0 %2121
        %2125 = vset.pattern.permute.xlu0 0
        %2126 = vperm.xlu0 %2125, %v1996
        %v2127 = vpop.permute.xlu0 %2126
        %2130 = vset.pattern.permute.xlu0 0
        %2131 = vperm.xlu0 %2130, %v1997
        %v2132 = vpop.permute.xlu0 %2131
        %2135 = vset.pattern.permute.xlu0 0
        %2136 = vperm.xlu0 %2135, %v1998
        %v2137 = vpop.permute.xlu0 %2136
        %2140 = vset.pattern.permute.xlu0 0
        %2141 = vperm.xlu0 %2140, %v1999
        %v2142 = vpop.permute.xlu0 %2141
        %2145 = vset.pattern.permute.xlu0 0
        %2146 = vperm.xlu0 %2145, %v2000
        %v2147 = vpop.permute.xlu0 %2146
        %2150 = vset.pattern.permute.xlu0 0
        %2151 = vperm.xlu0 %2150, %v2001
        %v2152 = vpop.permute.xlu0 %2151
        %2155 = vset.pattern.permute.xlu0 0
        %2156 = vperm.xlu0 %2155, %v2002
        %v2157 = vpop.permute.xlu0 %2156
        %2160 = vset.pattern.permute.xlu0 0
        %2161 = vperm.xlu0 %2160, %v2003
        %v2162 = vpop.permute.xlu0 %2161
        %2165 = vset.pattern.permute.xlu0 0
        %2166 = vperm.xlu0 %2165, %v2004
        %v2167 = vpop.permute.xlu0 %2166
        %2170 = vset.pattern.permute.xlu0 0
        %2171 = vperm.xlu0 %2170, %v2005
        %v2172 = vpop.permute.xlu0 %2171
        %2175 = vset.pattern.permute.xlu0 0
        %2176 = vperm.xlu0 %2175, %v2006
        %v2177 = vpop.permute.xlu0 %2176
        %2180 = vset.pattern.permute.xlu0 0
        %2181 = vperm.xlu0 %2180, %v2007
        %v2182 = vpop.permute.xlu0 %2181
        %2185 = vset.pattern.permute.xlu0 0
        %2186 = vperm.xlu0 %2185, %v2008
        %v2187 = vpop.permute.xlu0 %2186
        %2190 = vset.pattern.permute.xlu0 0
        %2191 = vperm.xlu0 %2190, %v2009
        %v2192 = vpop.permute.xlu0 %2191
        %2195 = vset.pattern.permute.xlu0 0
        %2196 = vperm.xlu0 %2195, %v2010
        %v2197 = vpop.permute.xlu0 %2196
        %2200 = vset.pattern.permute.xlu0 0
        %2201 = vperm.xlu0 %2200, %v2011
        %v2202 = vpop.permute.xlu0 %2201
        %2205 = vset.pattern.permute.xlu0 0
        %2206 = vperm.xlu0 %2205, %v2012
        %v2207 = vpop.permute.xlu0 %2206
        %2210 = vset.pattern.permute.xlu0 0
        %2211 = vperm.xlu0 %2210, %v2013
        %v2212 = vpop.permute.xlu0 %2211
        %2215 = vset.pattern.permute.xlu0 0
        %2216 = vperm.xlu0 %2215, %v2014
        %v2217 = vpop.permute.xlu0 %2216
        %2220 = vset.pattern.permute.xlu0 0
        %2221 = vperm.xlu0 %2220, %v2015
        %v2222 = vpop.permute.xlu0 %2221
        %2225 = vset.pattern.permute.xlu0 0
        %2226 = vperm.xlu0 %2225, %v2016
        %v2227 = vpop.permute.xlu0 %2226
        %2230 = vset.pattern.permute.xlu0 0
        %2231 = vperm.xlu0 %2230, %v2017
        %v2232 = vpop.permute.xlu0 %2231
        %2235 = vset.pattern.permute.xlu0 0
        %2236 = vperm.xlu0 %2235, %v2018
        %v2237 = vpop.permute.xlu0 %2236
        %2240 = vset.pattern.permute.xlu0 0
        %2241 = vperm.xlu0 %2240, %v2019
        %v2242 = vpop.permute.xlu0 %2241
        %2245 = vset.pattern.permute.xlu0 0
        %2246 = vperm.xlu0 %2245, %v2020
        %v2247 = vpop.permute.xlu0 %2246
        %2250 = vset.pattern.permute.xlu0 0
        %2251 = vperm.xlu0 %2250, %v2021
        %v2252 = vpop.permute.xlu0 %2251
        %2255 = vset.pattern.permute.xlu0 0
        %2256 = vperm.xlu0 %2255, %v2022
        %v2257 = vpop.permute.xlu0 %2256
        %2260 = vset.pattern.permute.xlu0 0
        %2261 = vperm.xlu0 %2260, %v2023
        %v2262 = vpop.permute.xlu0 %2261
        %v2360 = vunpack.c.l.b16 %v1816
        %v2361 = vunpack.c.h.b16 %v1816
        %v2362 = vunpack.c.l.b16 %v1817
        %v2363 = vunpack.c.h.b16 %v1817
        %v2364 = vunpack.c.l.b16 %v1818
        %v2365 = vunpack.c.h.b16 %v1818
        %v2366 = vunpack.c.l.b16 %v1819
        %v2367 = vunpack.c.h.b16 %v1819
        %v2368 = vunpack.c.l.b16 %v1820
        %v2369 = vunpack.c.h.b16 %v1820
        %v2370 = vunpack.c.l.b16 %v1821
        %v2371 = vunpack.c.h.b16 %v1821
        %v2372 = vunpack.c.l.b16 %v1822
        %v2373 = vunpack.c.h.b16 %v1822
        %v2374 = vunpack.c.l.b16 %v1823
        %v2375 = vunpack.c.h.b16 %v1823
        %v2376 = vunpack.c.l.b16 %v1824
        %v2377 = vunpack.c.h.b16 %v1824
        %v2378 = vunpack.c.l.b16 %v1825
        %v2379 = vunpack.c.h.b16 %v1825
        %v2380 = vunpack.c.l.b16 %v1826
        %v2381 = vunpack.c.h.b16 %v1826
        %v2382 = vunpack.c.l.b16 %v1827
        %v2383 = vunpack.c.h.b16 %v1827
        %v2384 = vunpack.c.l.b16 %v1828
        %v2385 = vunpack.c.h.b16 %v1828
        %v2386 = vunpack.c.l.b16 %v1829
        %v2387 = vunpack.c.h.b16 %v1829
        %v2388 = vunpack.c.l.b16 %v1830
        %v2389 = vunpack.c.h.b16 %v1830
        %v2390 = vunpack.c.l.b16 %v1831
        %v2391 = vunpack.c.h.b16 %v1831
        %v2392 = vunpack.c.l.b16 %v1832
        %v2393 = vunpack.c.h.b16 %v1832
        %v2394 = vunpack.c.l.b16 %v1833
        %v2395 = vunpack.c.h.b16 %v1833
        %v2396 = vunpack.c.l.b16 %v1834
        %v2397 = vunpack.c.h.b16 %v1834
        %v2398 = vunpack.c.l.b16 %v1835
        %v2399 = vunpack.c.h.b16 %v1835
        %v2400 = vunpack.c.l.b16 %v1836
        %v2401 = vunpack.c.h.b16 %v1836
        %v2402 = vunpack.c.l.b16 %v1837
        %v2403 = vunpack.c.h.b16 %v1837
        %v2404 = vunpack.c.l.b16 %v1838
        %v2405 = vunpack.c.h.b16 %v1838
        %v2406 = vunpack.c.l.b16 %v1839
        %v2407 = vunpack.c.h.b16 %v1839
        %v2408 = vunpack.c.l.b16 %v1840
        %v2409 = vunpack.c.h.b16 %v1840
        %v2410 = vunpack.c.l.b16 %v1841
        %v2411 = vunpack.c.h.b16 %v1841
        %v2412 = vunpack.c.l.b16 %v1842
        %v2413 = vunpack.c.h.b16 %v1842
        %v2414 = vunpack.c.l.b16 %v1843
        %v2415 = vunpack.c.h.b16 %v1843
        %v2416 = vunpack.c.l.b16 %v1844
        %v2417 = vunpack.c.h.b16 %v1844
        %v2418 = vunpack.c.l.b16 %v1845
        %v2419 = vunpack.c.h.b16 %v1845
        %v2420 = vunpack.c.l.b16 %v1846
        %v2421 = vunpack.c.h.b16 %v1846
        %v2422 = vunpack.c.l.b16 %v1847
        %v2423 = vunpack.c.h.b16 %v1847
        %v2424 = vunpack.c.l.b16 %v1848
        %v2425 = vunpack.c.h.b16 %v1848
        %v2426 = vunpack.c.l.b16 %v1849
        %v2427 = vunpack.c.h.b16 %v1849
        %v2428 = vunpack.c.l.b16 %v1850
        %v2429 = vunpack.c.h.b16 %v1850
        %v2430 = vunpack.c.l.b16 %v1851
        %v2431 = vunpack.c.h.b16 %v1851
        %v2432 = vunpack.c.l.b16 %v1852
        %v2433 = vunpack.c.h.b16 %v1852
        %v2434 = vunpack.c.l.b16 %v1853
        %v2435 = vunpack.c.h.b16 %v1853
        %v2436 = vunpack.c.l.b16 %v1854
        %v2437 = vunpack.c.h.b16 %v1854
        %v2438 = vunpack.c.l.b16 %v1855
        %v2439 = vunpack.c.h.b16 %v1855
        %v2440 = vunpack.c.l.b16 %v1856
        %v2441 = vunpack.c.h.b16 %v1856
        %v2442 = vunpack.c.l.b16 %v1857
        %v2443 = vunpack.c.h.b16 %v1857
        %v2444 = vunpack.c.l.b16 %v1858
        %v2445 = vunpack.c.h.b16 %v1858
        %v2446 = vunpack.c.l.b16 %v1859
        %v2447 = vunpack.c.h.b16 %v1859
        %v2448 = vunpack.c.l.b16 %v1860
        %v2449 = vunpack.c.h.b16 %v1860
        %v2450 = vunpack.c.l.b16 %v1861
        %v2451 = vunpack.c.h.b16 %v1861
        %v2452 = vunpack.c.l.b16 %v1862
        %v2453 = vunpack.c.h.b16 %v1862
        %v2454 = vunpack.c.l.b16 %v1863
        %v2455 = vunpack.c.h.b16 %v1863
        %v2456 = vunpack.c.l.b16 %v1864
        %v2457 = vunpack.c.h.b16 %v1864
        %v2458 = vunpack.c.l.b16 %v1865
        %v2459 = vunpack.c.h.b16 %v1865
        %v2460 = vunpack.c.l.b16 %v1866
        %v2461 = vunpack.c.h.b16 %v1866
        %v2462 = vunpack.c.l.b16 %v1867
        %v2463 = vunpack.c.h.b16 %v1867
        %v2464 = vunpack.c.l.b16 %v1868
        %v2465 = vunpack.c.h.b16 %v1868
        %v2466 = vunpack.c.l.b16 %v1869
        %v2467 = vunpack.c.h.b16 %v1869
        %v2468 = vunpack.c.l.b16 %v1870
        %v2469 = vunpack.c.h.b16 %v1870
        %v2470 = vunpack.c.l.b16 %v1871
        %v2471 = vunpack.c.h.b16 %v1871
        %v2472 = vunpack.c.l.b16 %v1872
        %v2473 = vunpack.c.h.b16 %v1872
        %v2474 = vunpack.c.l.b16 %v1873
        %v2475 = vunpack.c.h.b16 %v1873
        %v2476 = vunpack.c.l.b16 %v1874
        %v2477 = vunpack.c.h.b16 %v1874
        %v2478 = vunpack.c.l.b16 %v1875
        %v2479 = vunpack.c.h.b16 %v1875
        %v2480 = vunpack.c.l.b16 %v1876
        %v2481 = vunpack.c.h.b16 %v1876
        %v2482 = vunpack.c.l.b16 %v1877
        %v2483 = vunpack.c.h.b16 %v1877
        %v2484 = vunpack.c.l.b16 %v1878
        %v2485 = vunpack.c.h.b16 %v1878
        %v2486 = vunpack.c.l.b16 %v1879
        %v2487 = vunpack.c.h.b16 %v1879
        %v2488 = vunpack.c.l.b16 %v1880
        %v2489 = vunpack.c.h.b16 %v1880
        %v2490 = vunpack.c.l.b16 %v1881
        %v2491 = vunpack.c.h.b16 %v1881
        %v2492 = vunpack.c.l.b16 %v1882
        %v2493 = vunpack.c.h.b16 %v1882
        %v2494 = vunpack.c.l.b16 %v1883
        %v2495 = vunpack.c.h.b16 %v1883
        %v2496 = vunpack.c.l.b16 %v1884
        %v2497 = vunpack.c.h.b16 %v1884
        %v2498 = vunpack.c.l.b16 %v1885
        %v2499 = vunpack.c.h.b16 %v1885
        %v2500 = vunpack.c.l.b16 %v1886
        %v2501 = vunpack.c.h.b16 %v1886
        %v2502 = vunpack.c.l.b16 %v1887
        %v2503 = vunpack.c.h.b16 %v1887
        %v2504 = vunpack.c.l.b16 %v1888
        %v2505 = vunpack.c.h.b16 %v1888
        %v2506 = vunpack.c.l.b16 %v1889
        %v2507 = vunpack.c.h.b16 %v1889
        %v2508 = vunpack.c.l.b16 %v1890
        %v2509 = vunpack.c.h.b16 %v1890
        %v2510 = vunpack.c.l.b16 %v1891
        %v2511 = vunpack.c.h.b16 %v1891
        %v2512 = vunpack.c.l.b16 %v1892
        %v2513 = vunpack.c.h.b16 %v1892
        %v2514 = vunpack.c.l.b16 %v1893
        %v2515 = vunpack.c.h.b16 %v1893
        %v2516 = vunpack.c.l.b16 %v1894
        %v2517 = vunpack.c.h.b16 %v1894
        %v2518 = vunpack.c.l.b16 %v1895
        %v2519 = vunpack.c.h.b16 %v1895
        %v2520 = vunpack.c.l.b16 %v1896
        %v2521 = vunpack.c.h.b16 %v1896
        %v2522 = vunpack.c.l.b16 %v1897
        %v2523 = vunpack.c.h.b16 %v1897
        %v2524 = vunpack.c.l.b16 %v1898
        %v2525 = vunpack.c.h.b16 %v1898
        %v2526 = vunpack.c.l.b16 %v1899
        %v2527 = vunpack.c.h.b16 %v1899
        %v2528 = vunpack.c.l.b16 %v1900
        %v2529 = vunpack.c.h.b16 %v1900
        %v2530 = vunpack.c.l.b16 %v1901
        %v2531 = vunpack.c.h.b16 %v1901
        %v2532 = vunpack.c.l.b16 %v1902
        %v2533 = vunpack.c.h.b16 %v1902
        %v2534 = vunpack.c.l.b16 %v1903
        %v2535 = vunpack.c.h.b16 %v1903
        %v2536 = vunpack.c.l.b16 %v1904
        %v2537 = vunpack.c.h.b16 %v1904
        %v2538 = vunpack.c.l.b16 %v1905
        %v2539 = vunpack.c.h.b16 %v1905
        %v2540 = vunpack.c.l.b16 %v1906
        %v2541 = vunpack.c.h.b16 %v1906
        %v2542 = vunpack.c.l.b16 %v1907
        %v2543 = vunpack.c.h.b16 %v1907
        %v2544 = vunpack.c.l.b16 %v1908
        %v2545 = vunpack.c.h.b16 %v1908
        %v2546 = vunpack.c.l.b16 %v1909
        %v2547 = vunpack.c.h.b16 %v1909
        %v2548 = vunpack.c.l.b16 %v1910
        %v2549 = vunpack.c.h.b16 %v1910
        %v2550 = vunpack.c.l.b16 %v1911
        %v2551 = vunpack.c.h.b16 %v1911
        %v2552 = vpack.c.b16 %v2364, %v2360
        %v2553 = vpack.c.b16 %v2365, %v2361
        %v2554 = vpack.c.b16 %v2366, %v2362
        %v2555 = vpack.c.b16 %v2367, %v2363
        %v2556 = vpack.c.b16 %v2372, %v2368
        %v2557 = vpack.c.b16 %v2373, %v2369
        %v2558 = vpack.c.b16 %v2374, %v2370
        %v2559 = vpack.c.b16 %v2375, %v2371
        %v2560 = vpack.c.b16 %v2380, %v2376
        %v2561 = vpack.c.b16 %v2381, %v2377
        %v2562 = vpack.c.b16 %v2382, %v2378
        %v2563 = vpack.c.b16 %v2383, %v2379
        %v2564 = vpack.c.b16 %v2388, %v2384
        %v2565 = vpack.c.b16 %v2389, %v2385
        %v2566 = vpack.c.b16 %v2390, %v2386
        %v2567 = vpack.c.b16 %v2391, %v2387
        %v2568 = vpack.c.b16 %v2396, %v2392
        %v2569 = vpack.c.b16 %v2397, %v2393
        %v2570 = vpack.c.b16 %v2398, %v2394
        %v2571 = vpack.c.b16 %v2399, %v2395
        %v2572 = vpack.c.b16 %v2404, %v2400
        %v2573 = vpack.c.b16 %v2405, %v2401
        %v2574 = vpack.c.b16 %v2406, %v2402
        %v2575 = vpack.c.b16 %v2407, %v2403
        %v2576 = vpack.c.b16 %v2412, %v2408
        %v2577 = vpack.c.b16 %v2413, %v2409
        %v2578 = vpack.c.b16 %v2414, %v2410
        %v2579 = vpack.c.b16 %v2415, %v2411
        %v2580 = vpack.c.b16 %v2420, %v2416
        %v2581 = vpack.c.b16 %v2421, %v2417
        %v2582 = vpack.c.b16 %v2422, %v2418
        %v2583 = vpack.c.b16 %v2423, %v2419
        %v2584 = vpack.c.b16 %v2428, %v2424
        %v2585 = vpack.c.b16 %v2429, %v2425
        %v2586 = vpack.c.b16 %v2430, %v2426
        %v2587 = vpack.c.b16 %v2431, %v2427
        %v2588 = vpack.c.b16 %v2436, %v2432
        %v2589 = vpack.c.b16 %v2437, %v2433
        %v2590 = vpack.c.b16 %v2438, %v2434
        %v2591 = vpack.c.b16 %v2439, %v2435
        %v2592 = vpack.c.b16 %v2444, %v2440
        %v2593 = vpack.c.b16 %v2445, %v2441
        %v2594 = vpack.c.b16 %v2446, %v2442
        %v2595 = vpack.c.b16 %v2447, %v2443
        %v2596 = vpack.c.b16 %v2452, %v2448
        %v2597 = vpack.c.b16 %v2453, %v2449
        %v2598 = vpack.c.b16 %v2454, %v2450
        %v2599 = vpack.c.b16 %v2455, %v2451
        %v2600 = vpack.c.b16 %v2460, %v2456
        %v2601 = vpack.c.b16 %v2461, %v2457
        %v2602 = vpack.c.b16 %v2462, %v2458
        %v2603 = vpack.c.b16 %v2463, %v2459
        %v2604 = vpack.c.b16 %v2468, %v2464
        %v2605 = vpack.c.b16 %v2469, %v2465
        %v2606 = vpack.c.b16 %v2470, %v2466
        %v2607 = vpack.c.b16 %v2471, %v2467
        %v2608 = vpack.c.b16 %v2476, %v2472
        %v2609 = vpack.c.b16 %v2477, %v2473
        %v2610 = vpack.c.b16 %v2478, %v2474
        %v2611 = vpack.c.b16 %v2479, %v2475
        %v2612 = vpack.c.b16 %v2484, %v2480
        %v2613 = vpack.c.b16 %v2485, %v2481
        %v2614 = vpack.c.b16 %v2486, %v2482
        %v2615 = vpack.c.b16 %v2487, %v2483
        %v2616 = vpack.c.b16 %v2492, %v2488
        %v2617 = vpack.c.b16 %v2493, %v2489
        %v2618 = vpack.c.b16 %v2494, %v2490
        %v2619 = vpack.c.b16 %v2495, %v2491
        %v2620 = vpack.c.b16 %v2500, %v2496
        %v2621 = vpack.c.b16 %v2501, %v2497
        %v2622 = vpack.c.b16 %v2502, %v2498
        %v2623 = vpack.c.b16 %v2503, %v2499
        %v2624 = vpack.c.b16 %v2508, %v2504
        %v2625 = vpack.c.b16 %v2509, %v2505
        %v2626 = vpack.c.b16 %v2510, %v2506
        %v2627 = vpack.c.b16 %v2511, %v2507
        %v2628 = vpack.c.b16 %v2516, %v2512
        %v2629 = vpack.c.b16 %v2517, %v2513
        %v2630 = vpack.c.b16 %v2518, %v2514
        %v2631 = vpack.c.b16 %v2519, %v2515
        %v2632 = vpack.c.b16 %v2524, %v2520
        %v2633 = vpack.c.b16 %v2525, %v2521
        %v2634 = vpack.c.b16 %v2526, %v2522
        %v2635 = vpack.c.b16 %v2527, %v2523
        %v2636 = vpack.c.b16 %v2532, %v2528
        %v2637 = vpack.c.b16 %v2533, %v2529
        %v2638 = vpack.c.b16 %v2534, %v2530
        %v2639 = vpack.c.b16 %v2535, %v2531
        %v2640 = vpack.c.b16 %v2540, %v2536
        %v2641 = vpack.c.b16 %v2541, %v2537
        %v2642 = vpack.c.b16 %v2542, %v2538
        %v2643 = vpack.c.b16 %v2543, %v2539
        %v2644 = vpack.c.b16 %v2548, %v2544
        %v2645 = vpack.c.b16 %v2549, %v2545
        %v2646 = vpack.c.b16 %v2550, %v2546
        %v2647 = vpack.c.b16 %v2551, %v2547
        %2744 = vmatprep.subr.bf16.mxu0 %v1927
        %2745 = vmatpush1.bf16.msra.mxu0 %v1926
        %2746 = vmatprep.subr.bf16.mxu0 %v1925
        %2747 = vmatpush1.bf16.msra.mxu0 %v1924
        %2748 = vmatprep.subr.bf16.mxu0 %v1923
        %2749 = vmatpush1.bf16.msra.mxu0 %v1922
        %2750 = vmatprep.subr.bf16.mxu0 %v1921
        %2751 = vmatpush1.bf16.msra.mxu0 %v1920
        %2752 = vmatprep.subr.bf16.mxu0 %v1919
        %2753 = vmatpush1.bf16.msra.mxu0 %v1918
        %2754 = vmatprep.subr.bf16.mxu0 %v1917
        %2755 = vmatpush1.bf16.msra.mxu0 %v1916
        %2756 = vmatprep.subr.bf16.mxu0 %v1915
        %2757 = vmatpush1.bf16.msra.mxu0 %v1914
        %2758 = vmatprep.subr.bf16.mxu0 %v1913
        %2759 = vmatpush1.bf16.msra.mxu0 %v1912
        %2760 = vmatprep.subr.bf16.mxu0 %v1943
        %2761 = vmatpush2.bf16.msra.mxu0 %v1942
        %2762 = vmatprep.subr.bf16.mxu0 %v1941
        %2763 = vmatpush2.bf16.msra.mxu0 %v1940
        %2764 = vmatprep.subr.bf16.mxu0 %v1939
        %2765 = vmatpush2.bf16.msra.mxu0 %v1938
        %2766 = vmatprep.subr.bf16.mxu0 %v1937
        %2767 = vmatpush2.bf16.msra.mxu0 %v1936
        %2768 = vmatprep.subr.bf16.mxu0 %v1935
        %2769 = vmatpush2.bf16.msra.mxu0 %v1934
        %2770 = vmatprep.subr.bf16.mxu0 %v1933
        %2771 = vmatpush2.bf16.msra.mxu0 %v1932
        %2772 = vmatprep.subr.bf16.mxu0 %v1931
        %2773 = vmatpush2.bf16.msra.mxu0 %v1930
        %2774 = vmatprep.subr.bf16.mxu0 %v1929
        %2775 = vmatpush2.bf16.msra.mxu0 %v1928
        %2776 = vmatprep.mubr.bf16.mxu0 %v2553
        %2777 = vmatmul.mubr.bf16.gmra.mxu0 %v2552
        %v2778 = vpop.f32.mrf.mxu0
        %v2779 = vadd.f32 %v2027, %v2778
        %v2780 = vpop.f32.mrf.mxu0
        %v2781 = vadd.f32 %v2027, %v2780
        %v2782 = vpop.f32.mrf.mxu0
        %v2783 = vadd.f32 %v2032, %v2782
        %v2784 = vpop.f32.mrf.mxu0
        %v2785 = vadd.f32 %v2032, %v2784
        %2786 = vmatprep.mubr.bf16.mxu0 %v2557
        %2787 = vmatmul.mubr.bf16.gmra.mxu0 %v2556
        %v2788 = vpop.f32.mrf.mxu0
        %v2789 = vadd.f32 %v2037, %v2788
        %v2790 = vpop.f32.mrf.mxu0
        %v2791 = vadd.f32 %v2037, %v2790
        %v2792 = vpop.f32.mrf.mxu0
        %v2793 = vadd.f32 %v2042, %v2792
        %v2794 = vpop.f32.mrf.mxu0
        %v2795 = vadd.f32 %v2042, %v2794
        %2796 = vmatprep.mubr.bf16.mxu0 %v2561
        %2797 = vmatmul.mubr.bf16.gmra.mxu0 %v2560
        %v2798 = vpop.f32.mrf.mxu0
        %v2799 = vadd.f32 %v2047, %v2798
        %v2800 = vpop.f32.mrf.mxu0
        %v2801 = vadd.f32 %v2047, %v2800
        %v2802 = vpop.f32.mrf.mxu0
        %v2803 = vadd.f32 %v2052, %v2802
        %v2804 = vpop.f32.mrf.mxu0
        %v2805 = vadd.f32 %v2052, %v2804
        %2806 = vmatprep.mubr.bf16.mxu0 %v2565
        %2807 = vmatmul.mubr.bf16.gmra.mxu0 %v2564
        %v2808 = vpop.f32.mrf.mxu0
        %v2809 = vadd.f32 %v2057, %v2808
        %v2810 = vpop.f32.mrf.mxu0
        %v2811 = vadd.f32 %v2057, %v2810
        %v2812 = vpop.f32.mrf.mxu0
        %v2813 = vadd.f32 %v2062, %v2812
        %v2814 = vpop.f32.mrf.mxu0
        %v2815 = vadd.f32 %v2062, %v2814
        %2816 = vmatprep.mubr.bf16.mxu0 %v2569
        %2817 = vmatmul.mubr.bf16.gmra.mxu0 %v2568
        %v2818 = vpop.f32.mrf.mxu0
        %v2819 = vadd.f32 %v2067, %v2818
        %v2820 = vpop.f32.mrf.mxu0
        %v2821 = vadd.f32 %v2067, %v2820
        %v2822 = vpop.f32.mrf.mxu0
        %v2823 = vadd.f32 %v2072, %v2822
        %v2824 = vpop.f32.mrf.mxu0
        %v2825 = vadd.f32 %v2072, %v2824
        %2826 = vmatprep.mubr.bf16.mxu0 %v2573
        %2827 = vmatmul.mubr.bf16.gmra.mxu0 %v2572
        %v2828 = vpop.f32.mrf.mxu0
        %v2829 = vadd.f32 %v2077, %v2828
        %v2830 = vpop.f32.mrf.mxu0
        %v2831 = vadd.f32 %v2077, %v2830
        %v2832 = vpop.f32.mrf.mxu0
        %v2833 = vadd.f32 %v2082, %v2832
        %v2834 = vpop.f32.mrf.mxu0
        %v2835 = vadd.f32 %v2082, %v2834
        %2836 = vmatprep.mubr.bf16.mxu0 %v2577
        %2837 = vmatmul.mubr.bf16.gmra.mxu0 %v2576
        %v2838 = vpop.f32.mrf.mxu0
        %v2839 = vadd.f32 %v2087, %v2838
        %v2840 = vpop.f32.mrf.mxu0
        %v2841 = vadd.f32 %v2087, %v2840
        %v2842 = vpop.f32.mrf.mxu0
        %v2843 = vadd.f32 %v2092, %v2842
        %v2844 = vpop.f32.mrf.mxu0
        %v2845 = vadd.f32 %v2092, %v2844
        %2846 = vmatprep.mubr.bf16.mxu0 %v2581
        %2847 = vmatmul.mubr.bf16.gmra.mxu0 %v2580
        %v2848 = vpop.f32.mrf.mxu0
        %v2849 = vadd.f32 %v2097, %v2848
        %v2850 = vpop.f32.mrf.mxu0
        %v2851 = vadd.f32 %v2097, %v2850
        %v2852 = vpop.f32.mrf.mxu0
        %v2853 = vadd.f32 %v2102, %v2852
        %v2854 = vpop.f32.mrf.mxu0
        %v2855 = vadd.f32 %v2102, %v2854
        %2856 = vmatprep.mubr.bf16.mxu0 %v2585
        %2857 = vmatmul.mubr.bf16.gmra.mxu0 %v2584
        %v2858 = vpop.f32.mrf.mxu0
        %v2859 = vadd.f32 %v2107, %v2858
        %v2860 = vpop.f32.mrf.mxu0
        %v2861 = vadd.f32 %v2107, %v2860
        %v2862 = vpop.f32.mrf.mxu0
        %v2863 = vadd.f32 %v2112, %v2862
        %v2864 = vpop.f32.mrf.mxu0
        %v2865 = vadd.f32 %v2112, %v2864
        %2866 = vmatprep.mubr.bf16.mxu0 %v2589
        %2867 = vmatmul.mubr.bf16.gmra.mxu0 %v2588
        %v2868 = vpop.f32.mrf.mxu0
        %v2869 = vadd.f32 %v2117, %v2868
        %v2870 = vpop.f32.mrf.mxu0
        %v2871 = vadd.f32 %v2117, %v2870
        %v2872 = vpop.f32.mrf.mxu0
        %v2873 = vadd.f32 %v2122, %v2872
        %v2874 = vpop.f32.mrf.mxu0
        %v2875 = vadd.f32 %v2122, %v2874
        %2876 = vmatprep.mubr.bf16.mxu0 %v2593
        %2877 = vmatmul.mubr.bf16.gmra.mxu0 %v2592
        %v2878 = vpop.f32.mrf.mxu0
        %v2879 = vadd.f32 %v2127, %v2878
        %v2880 = vpop.f32.mrf.mxu0
        %v2881 = vadd.f32 %v2127, %v2880
        %v2882 = vpop.f32.mrf.mxu0
        %v2883 = vadd.f32 %v2132, %v2882
        %v2884 = vpop.f32.mrf.mxu0
        %v2885 = vadd.f32 %v2132, %v2884
        %2886 = vmatprep.mubr.bf16.mxu0 %v2597
        %2887 = vmatmul.mubr.bf16.gmra.mxu0 %v2596
        %v2888 = vpop.f32.mrf.mxu0
        %v2889 = vadd.f32 %v2137, %v2888
        %v2890 = vpop.f32.mrf.mxu0
        %v2891 = vadd.f32 %v2137, %v2890
        %v2892 = vpop.f32.mrf.mxu0
        %v2893 = vadd.f32 %v2142, %v2892
        %v2894 = vpop.f32.mrf.mxu0
        %v2895 = vadd.f32 %v2142, %v2894
        %2896 = vmatprep.mubr.bf16.mxu0 %v2601
        %2897 = vmatmul.mubr.bf16.gmra.mxu0 %v2600
        %v2898 = vpop.f32.mrf.mxu0
        %v2899 = vadd.f32 %v2147, %v2898
        %v2900 = vpop.f32.mrf.mxu0
        %v2901 = vadd.f32 %v2147, %v2900
        %v2902 = vpop.f32.mrf.mxu0
        %v2903 = vadd.f32 %v2152, %v2902
        %v2904 = vpop.f32.mrf.mxu0
        %v2905 = vadd.f32 %v2152, %v2904
        %2906 = vmatprep.mubr.bf16.mxu0 %v2605
        %2907 = vmatmul.mubr.bf16.gmra.mxu0 %v2604
        %v2908 = vpop.f32.mrf.mxu0
        %v2909 = vadd.f32 %v2157, %v2908
        %v2910 = vpop.f32.mrf.mxu0
        %v2911 = vadd.f32 %v2157, %v2910
        %v2912 = vpop.f32.mrf.mxu0
        %v2913 = vadd.f32 %v2162, %v2912
        %v2914 = vpop.f32.mrf.mxu0
        %v2915 = vadd.f32 %v2162, %v2914
        %2916 = vmatprep.mubr.bf16.mxu0 %v2609
        %2917 = vmatmul.mubr.bf16.gmra.mxu0 %v2608
        %v2918 = vpop.f32.mrf.mxu0
        %v2919 = vadd.f32 %v2167, %v2918
        %v2920 = vpop.f32.mrf.mxu0
        %v2921 = vadd.f32 %v2167, %v2920
        %v2922 = vpop.f32.mrf.mxu0
        %v2923 = vadd.f32 %v2172, %v2922
        %v2924 = vpop.f32.mrf.mxu0
        %v2925 = vadd.f32 %v2172, %v2924
        %2926 = vmatprep.mubr.bf16.mxu0 %v2613
        %2927 = vmatmul.mubr.bf16.gmra.mxu0 %v2612
        %v2928 = vpop.f32.mrf.mxu0
        %v2929 = vadd.f32 %v2177, %v2928
        %v2930 = vpop.f32.mrf.mxu0
        %v2931 = vadd.f32 %v2177, %v2930
        %v2932 = vpop.f32.mrf.mxu0
        %v2933 = vadd.f32 %v2182, %v2932
        %v2934 = vpop.f32.mrf.mxu0
        %v2935 = vadd.f32 %v2182, %v2934
        %2936 = vmatprep.mubr.bf16.mxu0 %v2617
        %2937 = vmatmul.mubr.bf16.gmra.mxu0 %v2616
        %v2938 = vpop.f32.mrf.mxu0
        %v2939 = vadd.f32 %v2187, %v2938
        %v2940 = vpop.f32.mrf.mxu0
        %v2941 = vadd.f32 %v2187, %v2940
        %v2942 = vpop.f32.mrf.mxu0
        %v2943 = vadd.f32 %v2192, %v2942
        %v2944 = vpop.f32.mrf.mxu0
        %v2945 = vadd.f32 %v2192, %v2944
        %2946 = vmatprep.mubr.bf16.mxu0 %v2621
        %2947 = vmatmul.mubr.bf16.gmra.mxu0 %v2620
        %v2948 = vpop.f32.mrf.mxu0
        %v2949 = vadd.f32 %v2197, %v2948
        %v2950 = vpop.f32.mrf.mxu0
        %v2951 = vadd.f32 %v2197, %v2950
        %v2952 = vpop.f32.mrf.mxu0
        %v2953 = vadd.f32 %v2202, %v2952
        %v2954 = vpop.f32.mrf.mxu0
        %v2955 = vadd.f32 %v2202, %v2954
        %2956 = vmatprep.mubr.bf16.mxu0 %v2625
        %2957 = vmatmul.mubr.bf16.gmra.mxu0 %v2624
        %v2958 = vpop.f32.mrf.mxu0
        %v2959 = vadd.f32 %v2207, %v2958
        %v2960 = vpop.f32.mrf.mxu0
        %v2961 = vadd.f32 %v2207, %v2960
        %v2962 = vpop.f32.mrf.mxu0
        %v2963 = vadd.f32 %v2212, %v2962
        %v2964 = vpop.f32.mrf.mxu0
        %v2965 = vadd.f32 %v2212, %v2964
        %2966 = vmatprep.mubr.bf16.mxu0 %v2629
        %2967 = vmatmul.mubr.bf16.gmra.mxu0 %v2628
        %v2968 = vpop.f32.mrf.mxu0
        %v2969 = vadd.f32 %v2217, %v2968
        %v2970 = vpop.f32.mrf.mxu0
        %v2971 = vadd.f32 %v2217, %v2970
        %v2972 = vpop.f32.mrf.mxu0
        %v2973 = vadd.f32 %v2222, %v2972
        %v2974 = vpop.f32.mrf.mxu0
        %v2975 = vadd.f32 %v2222, %v2974
        %2976 = vmatprep.mubr.bf16.mxu0 %v2633
        %2977 = vmatmul.mubr.bf16.gmra.mxu0 %v2632
        %v2978 = vpop.f32.mrf.mxu0
        %v2979 = vadd.f32 %v2227, %v2978
        %v2980 = vpop.f32.mrf.mxu0
        %v2981 = vadd.f32 %v2227, %v2980
        %v2982 = vpop.f32.mrf.mxu0
        %v2983 = vadd.f32 %v2232, %v2982
        %v2984 = vpop.f32.mrf.mxu0
        %v2985 = vadd.f32 %v2232, %v2984
        %2986 = vmatprep.mubr.bf16.mxu0 %v2637
        %2987 = vmatmul.mubr.bf16.gmra.mxu0 %v2636
        %v2988 = vpop.f32.mrf.mxu0
        %v2989 = vadd.f32 %v2237, %v2988
        %v2990 = vpop.f32.mrf.mxu0
        %v2991 = vadd.f32 %v2237, %v2990
        %v2992 = vpop.f32.mrf.mxu0
        %v2993 = vadd.f32 %v2242, %v2992
        %v2994 = vpop.f32.mrf.mxu0
        %v2995 = vadd.f32 %v2242, %v2994
        %2996 = vmatprep.mubr.bf16.mxu0 %v2641
        %2997 = vmatmul.mubr.bf16.gmra.mxu0 %v2640
        %v2998 = vpop.f32.mrf.mxu0
        %v2999 = vadd.f32 %v2247, %v2998
        %v3000 = vpop.f32.mrf.mxu0
        %v3001 = vadd.f32 %v2247, %v3000
        %v3002 = vpop.f32.mrf.mxu0
        %v3003 = vadd.f32 %v2252, %v3002
        %v3004 = vpop.f32.mrf.mxu0
        %v3005 = vadd.f32 %v2252, %v3004
        %3006 = vmatprep.mubr.bf16.mxu0 %v2645
        %3007 = vmatmul.mubr.bf16.gmra.mxu0 %v2644
        %v3008 = vpop.f32.mrf.mxu0
        %v3009 = vadd.f32 %v2257, %v3008
        %v3010 = vpop.f32.mrf.mxu0
        %v3011 = vadd.f32 %v2257, %v3010
        %v3012 = vpop.f32.mrf.mxu0
        %v3013 = vadd.f32 %v2262, %v3012
        %v3014 = vpop.f32.mrf.mxu0
        %v3015 = vadd.f32 %v2262, %v3014
        %3016 = vdwg.mxu0
        %3017 = vmatprep.subr.bf16.mxu0 %v1959
        %3018 = vmatpush1.bf16.msra.mxu0 %v1958
        %3019 = vmatprep.subr.bf16.mxu0 %v1957
        %3020 = vmatpush1.bf16.msra.mxu0 %v1956
        %3021 = vmatprep.subr.bf16.mxu0 %v1955
        %3022 = vmatpush1.bf16.msra.mxu0 %v1954
        %3023 = vmatprep.subr.bf16.mxu0 %v1953
        %3024 = vmatpush1.bf16.msra.mxu0 %v1952
        %3025 = vmatprep.subr.bf16.mxu0 %v1951
        %3026 = vmatpush1.bf16.msra.mxu0 %v1950
        %3027 = vmatprep.subr.bf16.mxu0 %v1949
        %3028 = vmatpush1.bf16.msra.mxu0 %v1948
        %3029 = vmatprep.subr.bf16.mxu0 %v1947
        %3030 = vmatpush1.bf16.msra.mxu0 %v1946
        %3031 = vmatprep.subr.bf16.mxu0 %v1945
        %3032 = vmatpush1.bf16.msra.mxu0 %v1944
        %3033 = vmatprep.subr.bf16.mxu0 %v1975
        %3034 = vmatpush2.bf16.msra.mxu0 %v1974
        %3035 = vmatprep.subr.bf16.mxu0 %v1973
        %3036 = vmatpush2.bf16.msra.mxu0 %v1972
        %3037 = vmatprep.subr.bf16.mxu0 %v1971
        %3038 = vmatpush2.bf16.msra.mxu0 %v1970
        %3039 = vmatprep.subr.bf16.mxu0 %v1969
        %3040 = vmatpush2.bf16.msra.mxu0 %v1968
        %3041 = vmatprep.subr.bf16.mxu0 %v1967
        %3042 = vmatpush2.bf16.msra.mxu0 %v1966
        %3043 = vmatprep.subr.bf16.mxu0 %v1965
        %3044 = vmatpush2.bf16.msra.mxu0 %v1964
        %3045 = vmatprep.subr.bf16.mxu0 %v1963
        %3046 = vmatpush2.bf16.msra.mxu0 %v1962
        %3047 = vmatprep.subr.bf16.mxu0 %v1961
        %3048 = vmatpush2.bf16.msra.mxu0 %v1960
        %3049 = vmatprep.mubr.bf16.mxu0 %v2555
        %3050 = vmatmul.mubr.bf16.gmra.mxu0 %v2554
        %v3051 = vpop.f32.mrf.mxu0
        %v3052 = vadd.f32 %v2779, %v3051
        %v3053 = vpop.f32.mrf.mxu0
        %v3054 = vadd.f32 %v2781, %v3053
        %v3055 = vpop.f32.mrf.mxu0
        %v3056 = vadd.f32 %v2783, %v3055
        %v3057 = vpop.f32.mrf.mxu0
        %v3058 = vadd.f32 %v2785, %v3057
        %3059 = vmatprep.mubr.bf16.mxu0 %v2559
        %3060 = vmatmul.mubr.bf16.gmra.mxu0 %v2558
        %v3061 = vpop.f32.mrf.mxu0
        %v3062 = vadd.f32 %v2789, %v3061
        %v3063 = vpop.f32.mrf.mxu0
        %v3064 = vadd.f32 %v2791, %v3063
        %v3065 = vpop.f32.mrf.mxu0
        %v3066 = vadd.f32 %v2793, %v3065
        %v3067 = vpop.f32.mrf.mxu0
        %v3068 = vadd.f32 %v2795, %v3067
        %3069 = vmatprep.mubr.bf16.mxu0 %v2563
        %3070 = vmatmul.mubr.bf16.gmra.mxu0 %v2562
        %v3071 = vpop.f32.mrf.mxu0
        %v3072 = vadd.f32 %v2799, %v3071
        %v3073 = vpop.f32.mrf.mxu0
        %v3074 = vadd.f32 %v2801, %v3073
        %v3075 = vpop.f32.mrf.mxu0
        %v3076 = vadd.f32 %v2803, %v3075
        %v3077 = vpop.f32.mrf.mxu0
        %v3078 = vadd.f32 %v2805, %v3077
        %3079 = vmatprep.mubr.bf16.mxu0 %v2567
        %3080 = vmatmul.mubr.bf16.gmra.mxu0 %v2566
        %v3081 = vpop.f32.mrf.mxu0
        %v3082 = vadd.f32 %v2809, %v3081
        %v3083 = vpop.f32.mrf.mxu0
        %v3084 = vadd.f32 %v2811, %v3083
        %v3085 = vpop.f32.mrf.mxu0
        %v3086 = vadd.f32 %v2813, %v3085
        %v3087 = vpop.f32.mrf.mxu0
        %v3088 = vadd.f32 %v2815, %v3087
        %3089 = vmatprep.mubr.bf16.mxu0 %v2571
        %3090 = vmatmul.mubr.bf16.gmra.mxu0 %v2570
        %v3091 = vpop.f32.mrf.mxu0
        %v3092 = vadd.f32 %v2819, %v3091
        %v3093 = vpop.f32.mrf.mxu0
        %v3094 = vadd.f32 %v2821, %v3093
        %v3095 = vpop.f32.mrf.mxu0
        %v3096 = vadd.f32 %v2823, %v3095
        %v3097 = vpop.f32.mrf.mxu0
        %v3098 = vadd.f32 %v2825, %v3097
        %3099 = vmatprep.mubr.bf16.mxu0 %v2575
        %3100 = vmatmul.mubr.bf16.gmra.mxu0 %v2574
        %v3101 = vpop.f32.mrf.mxu0
        %v3102 = vadd.f32 %v2829, %v3101
        %v3103 = vpop.f32.mrf.mxu0
        %v3104 = vadd.f32 %v2831, %v3103
        %v3105 = vpop.f32.mrf.mxu0
        %v3106 = vadd.f32 %v2833, %v3105
        %v3107 = vpop.f32.mrf.mxu0
        %v3108 = vadd.f32 %v2835, %v3107
        %3109 = vmatprep.mubr.bf16.mxu0 %v2579
        %3110 = vmatmul.mubr.bf16.gmra.mxu0 %v2578
        %v3111 = vpop.f32.mrf.mxu0
        %v3112 = vadd.f32 %v2839, %v3111
        %v3113 = vpop.f32.mrf.mxu0
        %v3114 = vadd.f32 %v2841, %v3113
        %v3115 = vpop.f32.mrf.mxu0
        %v3116 = vadd.f32 %v2843, %v3115
        %v3117 = vpop.f32.mrf.mxu0
        %v3118 = vadd.f32 %v2845, %v3117
        %3119 = vmatprep.mubr.bf16.mxu0 %v2583
        %3120 = vmatmul.mubr.bf16.gmra.mxu0 %v2582
        %v3121 = vpop.f32.mrf.mxu0
        %v3122 = vadd.f32 %v2849, %v3121
        %v3123 = vpop.f32.mrf.mxu0
        %v3124 = vadd.f32 %v2851, %v3123
        %v3125 = vpop.f32.mrf.mxu0
        %v3126 = vadd.f32 %v2853, %v3125
        %v3127 = vpop.f32.mrf.mxu0
        %v3128 = vadd.f32 %v2855, %v3127
        %3129 = vmatprep.mubr.bf16.mxu0 %v2587
        %3130 = vmatmul.mubr.bf16.gmra.mxu0 %v2586
        %v3131 = vpop.f32.mrf.mxu0
        %v3132 = vadd.f32 %v2859, %v3131
        %v3133 = vpop.f32.mrf.mxu0
        %v3134 = vadd.f32 %v2861, %v3133
        %v3135 = vpop.f32.mrf.mxu0
        %v3136 = vadd.f32 %v2863, %v3135
        %v3137 = vpop.f32.mrf.mxu0
        %v3138 = vadd.f32 %v2865, %v3137
        %3139 = vmatprep.mubr.bf16.mxu0 %v2591
        %3140 = vmatmul.mubr.bf16.gmra.mxu0 %v2590
        %v3141 = vpop.f32.mrf.mxu0
        %v3142 = vadd.f32 %v2869, %v3141
        %v3143 = vpop.f32.mrf.mxu0
        %v3144 = vadd.f32 %v2871, %v3143
        %v3145 = vpop.f32.mrf.mxu0
        %v3146 = vadd.f32 %v2873, %v3145
        %v3147 = vpop.f32.mrf.mxu0
        %v3148 = vadd.f32 %v2875, %v3147
        %3149 = vmatprep.mubr.bf16.mxu0 %v2595
        %3150 = vmatmul.mubr.bf16.gmra.mxu0 %v2594
        %v3151 = vpop.f32.mrf.mxu0
        %v3152 = vadd.f32 %v2879, %v3151
        %v3153 = vpop.f32.mrf.mxu0
        %v3154 = vadd.f32 %v2881, %v3153
        %v3155 = vpop.f32.mrf.mxu0
        %v3156 = vadd.f32 %v2883, %v3155
        %v3157 = vpop.f32.mrf.mxu0
        %v3158 = vadd.f32 %v2885, %v3157
        %3159 = vmatprep.mubr.bf16.mxu0 %v2599
        %3160 = vmatmul.mubr.bf16.gmra.mxu0 %v2598
        %v3161 = vpop.f32.mrf.mxu0
        %v3162 = vadd.f32 %v2889, %v3161
        %v3163 = vpop.f32.mrf.mxu0
        %v3164 = vadd.f32 %v2891, %v3163
        %v3165 = vpop.f32.mrf.mxu0
        %v3166 = vadd.f32 %v2893, %v3165
        %v3167 = vpop.f32.mrf.mxu0
        %v3168 = vadd.f32 %v2895, %v3167
        %3169 = vmatprep.mubr.bf16.mxu0 %v2603
        %3170 = vmatmul.mubr.bf16.gmra.mxu0 %v2602
        %v3171 = vpop.f32.mrf.mxu0
        %v3172 = vadd.f32 %v2899, %v3171
        %v3173 = vpop.f32.mrf.mxu0
        %v3174 = vadd.f32 %v2901, %v3173
        %v3175 = vpop.f32.mrf.mxu0
        %v3176 = vadd.f32 %v2903, %v3175
        %v3177 = vpop.f32.mrf.mxu0
        %v3178 = vadd.f32 %v2905, %v3177
        %3179 = vmatprep.mubr.bf16.mxu0 %v2607
        %3180 = vmatmul.mubr.bf16.gmra.mxu0 %v2606
        %v3181 = vpop.f32.mrf.mxu0
        %v3182 = vadd.f32 %v2909, %v3181
        %v3183 = vpop.f32.mrf.mxu0
        %v3184 = vadd.f32 %v2911, %v3183
        %v3185 = vpop.f32.mrf.mxu0
        %v3186 = vadd.f32 %v2913, %v3185
        %v3187 = vpop.f32.mrf.mxu0
        %v3188 = vadd.f32 %v2915, %v3187
        %3189 = vmatprep.mubr.bf16.mxu0 %v2611
        %3190 = vmatmul.mubr.bf16.gmra.mxu0 %v2610
        %v3191 = vpop.f32.mrf.mxu0
        %v3192 = vadd.f32 %v2919, %v3191
        %v3193 = vpop.f32.mrf.mxu0
        %v3194 = vadd.f32 %v2921, %v3193
        %v3195 = vpop.f32.mrf.mxu0
        %v3196 = vadd.f32 %v2923, %v3195
        %v3197 = vpop.f32.mrf.mxu0
        %v3198 = vadd.f32 %v2925, %v3197
        %3199 = vmatprep.mubr.bf16.mxu0 %v2615
        %3200 = vmatmul.mubr.bf16.gmra.mxu0 %v2614
        %v3201 = vpop.f32.mrf.mxu0
        %v3202 = vadd.f32 %v2929, %v3201
        %v3203 = vpop.f32.mrf.mxu0
        %v3204 = vadd.f32 %v2931, %v3203
        %v3205 = vpop.f32.mrf.mxu0
        %v3206 = vadd.f32 %v2933, %v3205
        %v3207 = vpop.f32.mrf.mxu0
        %v3208 = vadd.f32 %v2935, %v3207
        %3209 = vmatprep.mubr.bf16.mxu0 %v2619
        %3210 = vmatmul.mubr.bf16.gmra.mxu0 %v2618
        %v3211 = vpop.f32.mrf.mxu0
        %v3212 = vadd.f32 %v2939, %v3211
        %v3213 = vpop.f32.mrf.mxu0
        %v3214 = vadd.f32 %v2941, %v3213
        %v3215 = vpop.f32.mrf.mxu0
        %v3216 = vadd.f32 %v2943, %v3215
        %v3217 = vpop.f32.mrf.mxu0
        %v3218 = vadd.f32 %v2945, %v3217
        %3219 = vmatprep.mubr.bf16.mxu0 %v2623
        %3220 = vmatmul.mubr.bf16.gmra.mxu0 %v2622
        %v3221 = vpop.f32.mrf.mxu0
        %v3222 = vadd.f32 %v2949, %v3221
        %v3223 = vpop.f32.mrf.mxu0
        %v3224 = vadd.f32 %v2951, %v3223
        %v3225 = vpop.f32.mrf.mxu0
        %v3226 = vadd.f32 %v2953, %v3225
        %v3227 = vpop.f32.mrf.mxu0
        %v3228 = vadd.f32 %v2955, %v3227
        %3229 = vmatprep.mubr.bf16.mxu0 %v2627
        %3230 = vmatmul.mubr.bf16.gmra.mxu0 %v2626
        %v3231 = vpop.f32.mrf.mxu0
        %v3232 = vadd.f32 %v2959, %v3231
        %v3233 = vpop.f32.mrf.mxu0
        %v3234 = vadd.f32 %v2961, %v3233
        %v3235 = vpop.f32.mrf.mxu0
        %v3236 = vadd.f32 %v2963, %v3235
        %v3237 = vpop.f32.mrf.mxu0
        %v3238 = vadd.f32 %v2965, %v3237
        %3239 = vmatprep.mubr.bf16.mxu0 %v2631
        %3240 = vmatmul.mubr.bf16.gmra.mxu0 %v2630
        %v3241 = vpop.f32.mrf.mxu0
        %v3242 = vadd.f32 %v2969, %v3241
        %v3243 = vpop.f32.mrf.mxu0
        %v3244 = vadd.f32 %v2971, %v3243
        %v3245 = vpop.f32.mrf.mxu0
        %v3246 = vadd.f32 %v2973, %v3245
        %v3247 = vpop.f32.mrf.mxu0
        %v3248 = vadd.f32 %v2975, %v3247
        %3249 = vmatprep.mubr.bf16.mxu0 %v2635
        %3250 = vmatmul.mubr.bf16.gmra.mxu0 %v2634
        %v3251 = vpop.f32.mrf.mxu0
        %v3252 = vadd.f32 %v2979, %v3251
        %v3253 = vpop.f32.mrf.mxu0
        %v3254 = vadd.f32 %v2981, %v3253
        %v3255 = vpop.f32.mrf.mxu0
        %v3256 = vadd.f32 %v2983, %v3255
        %v3257 = vpop.f32.mrf.mxu0
        %v3258 = vadd.f32 %v2985, %v3257
        %3259 = vmatprep.mubr.bf16.mxu0 %v2639
        %3260 = vmatmul.mubr.bf16.gmra.mxu0 %v2638
        %v3261 = vpop.f32.mrf.mxu0
        %v3262 = vadd.f32 %v2989, %v3261
        %v3263 = vpop.f32.mrf.mxu0
        %v3264 = vadd.f32 %v2991, %v3263
        %v3265 = vpop.f32.mrf.mxu0
        %v3266 = vadd.f32 %v2993, %v3265
        %v3267 = vpop.f32.mrf.mxu0
        %v3268 = vadd.f32 %v2995, %v3267
        %3269 = vmatprep.mubr.bf16.mxu0 %v2643
        %3270 = vmatmul.mubr.bf16.gmra.mxu0 %v2642
        %v3271 = vpop.f32.mrf.mxu0
        %v3272 = vadd.f32 %v2999, %v3271
        %v3273 = vpop.f32.mrf.mxu0
        %v3274 = vadd.f32 %v3001, %v3273
        %v3275 = vpop.f32.mrf.mxu0
        %v3276 = vadd.f32 %v3003, %v3275
        %v3277 = vpop.f32.mrf.mxu0
        %v3278 = vadd.f32 %v3005, %v3277
        %3279 = vmatprep.mubr.bf16.mxu0 %v2647
        %3280 = vmatmul.mubr.bf16.gmra.mxu0 %v2646
        %v3281 = vpop.f32.mrf.mxu0
        %v3282 = vadd.f32 %v3009, %v3281
        %v3283 = vpop.f32.mrf.mxu0
        %v3284 = vadd.f32 %v3011, %v3283
        %v3285 = vpop.f32.mrf.mxu0
        %v3286 = vadd.f32 %v3013, %v3285
        %v3287 = vpop.f32.mrf.mxu0
        %v3288 = vadd.f32 %v3015, %v3287
        %3289 = vdwg.mxu0
        %v3290 = vmax.f32 %v3052, 0.0
        %v3291 = vmax.f32 %v3054, 0.0
        %v3292 = vmax.f32 %v3056, 0.0
        %v3293 = vmax.f32 %v3058, 0.0
        %v3294 = vmax.f32 %v3062, 0.0
        %v3295 = vmax.f32 %v3064, 0.0
        %v3296 = vmax.f32 %v3066, 0.0
        %v3297 = vmax.f32 %v3068, 0.0
        %v3298 = vmax.f32 %v3072, 0.0
        %v3299 = vmax.f32 %v3074, 0.0
        %v3300 = vmax.f32 %v3076, 0.0
        %v3301 = vmax.f32 %v3078, 0.0
        %v3302 = vmax.f32 %v3082, 0.0
        %v3303 = vmax.f32 %v3084, 0.0
        %v3304 = vmax.f32 %v3086, 0.0
        %v3305 = vmax.f32 %v3088, 0.0
        %v3306 = vmax.f32 %v3092, 0.0
        %v3307 = vmax.f32 %v3094, 0.0
        %v3308 = vmax.f32 %v3096, 0.0
        %v3309 = vmax.f32 %v3098, 0.0
        %v3310 = vmax.f32 %v3102, 0.0
        %v3311 = vmax.f32 %v3104, 0.0
        %v3312 = vmax.f32 %v3106, 0.0
        %v3313 = vmax.f32 %v3108, 0.0
        %v3314 = vmax.f32 %v3112, 0.0
        %v3315 = vmax.f32 %v3114, 0.0
        %v3316 = vmax.f32 %v3116, 0.0
        %v3317 = vmax.f32 %v3118, 0.0
        %v3318 = vmax.f32 %v3122, 0.0
        %v3319 = vmax.f32 %v3124, 0.0
        %v3320 = vmax.f32 %v3126, 0.0
        %v3321 = vmax.f32 %v3128, 0.0
        %v3322 = vmax.f32 %v3132, 0.0
        %v3323 = vmax.f32 %v3134, 0.0
        %v3324 = vmax.f32 %v3136, 0.0
        %v3325 = vmax.f32 %v3138, 0.0
        %v3326 = vmax.f32 %v3142, 0.0
        %v3327 = vmax.f32 %v3144, 0.0
        %v3328 = vmax.f32 %v3146, 0.0
        %v3329 = vmax.f32 %v3148, 0.0
        %v3330 = vmax.f32 %v3152, 0.0
        %v3331 = vmax.f32 %v3154, 0.0
        %v3332 = vmax.f32 %v3156, 0.0
        %v3333 = vmax.f32 %v3158, 0.0
        %v3334 = vmax.f32 %v3162, 0.0
        %v3335 = vmax.f32 %v3164, 0.0
        %v3336 = vmax.f32 %v3166, 0.0
        %v3337 = vmax.f32 %v3168, 0.0
        %v3338 = vmax.f32 %v3172, 0.0
        %v3339 = vmax.f32 %v3174, 0.0
        %v3340 = vmax.f32 %v3176, 0.0
        %v3341 = vmax.f32 %v3178, 0.0
        %v3342 = vmax.f32 %v3182, 0.0
        %v3343 = vmax.f32 %v3184, 0.0
        %v3344 = vmax.f32 %v3186, 0.0
        %v3345 = vmax.f32 %v3188, 0.0
        %v3346 = vmax.f32 %v3192, 0.0
        %v3347 = vmax.f32 %v3194, 0.0
        %v3348 = vmax.f32 %v3196, 0.0
        %v3349 = vmax.f32 %v3198, 0.0
        %v3350 = vmax.f32 %v3202, 0.0
        %v3351 = vmax.f32 %v3204, 0.0
        %v3352 = vmax.f32 %v3206, 0.0
        %v3353 = vmax.f32 %v3208, 0.0
        %v3354 = vmax.f32 %v3212, 0.0
        %v3355 = vmax.f32 %v3214, 0.0
        %v3356 = vmax.f32 %v3216, 0.0
        %v3357 = vmax.f32 %v3218, 0.0
        %v3358 = vmax.f32 %v3222, 0.0
        %v3359 = vmax.f32 %v3224, 0.0
        %v3360 = vmax.f32 %v3226, 0.0
        %v3361 = vmax.f32 %v3228, 0.0
        %v3362 = vmax.f32 %v3232, 0.0
        %v3363 = vmax.f32 %v3234, 0.0
        %v3364 = vmax.f32 %v3236, 0.0
        %v3365 = vmax.f32 %v3238, 0.0
        %v3366 = vmax.f32 %v3242, 0.0
        %v3367 = vmax.f32 %v3244, 0.0
        %v3368 = vmax.f32 %v3246, 0.0
        %v3369 = vmax.f32 %v3248, 0.0
        %v3370 = vmax.f32 %v3252, 0.0
        %v3371 = vmax.f32 %v3254, 0.0
        %v3372 = vmax.f32 %v3256, 0.0
        %v3373 = vmax.f32 %v3258, 0.0
        %v3374 = vmax.f32 %v3262, 0.0
        %v3375 = vmax.f32 %v3264, 0.0
        %v3376 = vmax.f32 %v3266, 0.0
        %v3377 = vmax.f32 %v3268, 0.0
        %v3378 = vmax.f32 %v3272, 0.0
        %v3379 = vmax.f32 %v3274, 0.0
        %v3380 = vmax.f32 %v3276, 0.0
        %v3381 = vmax.f32 %v3278, 0.0
        %v3382 = vmax.f32 %v3282, 0.0
        %v3383 = vmax.f32 %v3284, 0.0
        %v3384 = vmax.f32 %v3286, 0.0
        %v3385 = vmax.f32 %v3288, 0.0
        %v3386 = vld [vmem:[%s5] sm:$0xff]
        %v3387 = vld [vmem:[%s5 + $0x8] sm:$0xf]
        %v3388 = vld [vmem:[%s5 + $0xc] sm:$0xff]
        %v3389 = vld [vmem:[%s5 + $0x14] sm:$0xf]
        %v3390 = vld [vmem:[%s5 + $0x18] sm:$0xff]
        %v3391 = vld [vmem:[%s5 + $0x20] sm:$0xf]
        %v3392 = vld [vmem:[%s5 + $0x24] sm:$0xff]
        %v3393 = vld [vmem:[%s5 + $0x2c] sm:$0xf]
        %v3394 = vld [vmem:[%s5 + $0x30] sm:$0xff]
        %v3395 = vld [vmem:[%s5 + $0x38] sm:$0xf]
        %v3396 = vld [vmem:[%s5 + $0x3c] sm:$0xff]
        %v3397 = vld [vmem:[%s5 + $0x44] sm:$0xf]
        %v3398 = vld [vmem:[%s5 + $0x48] sm:$0xff]
        %v3399 = vld [vmem:[%s5 + $0x50] sm:$0xf]
        %v3400 = vld [vmem:[%s5 + $0x54] sm:$0xff]
        %v3401 = vld [vmem:[%s5 + $0x5c] sm:$0xf]
        %v3402 = vld [vmem:[%s5 + $0x60] sm:$0xff]
        %v3403 = vld [vmem:[%s5 + $0x68] sm:$0xf]
        %v3404 = vld [vmem:[%s5 + $0x6c] sm:$0xff]
        %v3405 = vld [vmem:[%s5 + $0x74] sm:$0xf]
        %v3406 = vld [vmem:[%s5 + $0x78] sm:$0xff]
        %v3407 = vld [vmem:[%s5 + $0x80] sm:$0xf]
        %v3408 = vld [vmem:[%s5 + $0x84] sm:$0xff]
        %v3409 = vld [vmem:[%s5 + $0x8c] sm:$0xf]
        %v3410 = vld [vmem:[%s5 + $0x90] sm:$0xff]
        %v3411 = vld [vmem:[%s5 + $0x98] sm:$0xf]
        %v3412 = vld [vmem:[%s5 + $0x9c] sm:$0xff]
        %v3413 = vld [vmem:[%s5 + $0xa4] sm:$0xf]
        %v3414 = vld [vmem:[%s5 + $0xa8] sm:$0xff]
        %v3415 = vld [vmem:[%s5 + $0xb0] sm:$0xf]
        %v3416 = vld [vmem:[%s5 + $0xb4] sm:$0xff]
        %v3417 = vld [vmem:[%s5 + $0xbc] sm:$0xf]
        %v3418 = vld [vmem:[%s5 + $0xc0] sm:$0xff]
        %v3419 = vld [vmem:[%s5 + $0xc8] sm:$0xf]
        %v3420 = vld [vmem:[%s5 + $0xcc] sm:$0xff]
        %v3421 = vld [vmem:[%s5 + $0xd4] sm:$0xf]
        %v3422 = vld [vmem:[%s5 + $0xd8] sm:$0xff]
        %v3423 = vld [vmem:[%s5 + $0xe0] sm:$0xf]
        %v3424 = vld [vmem:[%s5 + $0xe4] sm:$0xff]
        %v3425 = vld [vmem:[%s5 + $0xec] sm:$0xf]
        %v3426 = vld [vmem:[%s5 + $0xf0] sm:$0xff]
        %v3427 = vld [vmem:[%s5 + $0xf8] sm:$0xf]
        %v3428 = vld [vmem:[%s5 + $0xfc] sm:$0xff]
        %v3429 = vld [vmem:[%s5 + $0x104] sm:$0xf]
        %v3430 = vld [vmem:[%s5 + $0x108] sm:$0xff]
        %v3431 = vld [vmem:[%s5 + $0x110] sm:$0xf]
        %v3432 = vld [vmem:[%s5 + $0x114] sm:$0xff]
        %v3433 = vld [vmem:[%s5 + $0x11c] sm:$0xf]
        %v3434 = vld [vmem:[%s5 + $0x120] sm:$0xff]
        %v3435 = vld [vmem:[%s5 + $0x128] sm:$0xf]
        %v3436 = vld [vmem:[%s5 + $0x12c] sm:$0xff]
        %v3437 = vld [vmem:[%s5 + $0x134] sm:$0xf]
        %v3438 = vld [vmem:[%s5 + $0x138] sm:$0xff]
        %v3439 = vld [vmem:[%s5 + $0x140] sm:$0xf]
        %v3440 = vld [vmem:[%s5 + $0x144] sm:$0xff]
        %v3441 = vld [vmem:[%s5 + $0x14c] sm:$0xf]
        %v3442 = vld [vmem:[%s5 + $0x150] sm:$0xff]
        %v3443 = vld [vmem:[%s5 + $0x158] sm:$0xf]
        %v3444 = vld [vmem:[%s5 + $0x15c] sm:$0xff]
        %v3445 = vld [vmem:[%s5 + $0x164] sm:$0xf]
        %v3446 = vld [vmem:[%s5 + $0x168] sm:$0xff]
        %v3447 = vld [vmem:[%s5 + $0x170] sm:$0xf]
        %v3448 = vld [vmem:[%s5 + $0x174] sm:$0xff]
        %v3449 = vld [vmem:[%s5 + $0x17c] sm:$0xf]
        %v3450 = vpack.c.bf16 %v3292, %v3290
        %v3451 = vpack.c.bf16 %v3293, %v3291
        %v3452 = vpack.c.bf16 %v3296, %v3294
        %v3453 = vpack.c.bf16 %v3297, %v3295
        %v3454 = vpack.c.bf16 %v3300, %v3298
        %v3455 = vpack.c.bf16 %v3301, %v3299
        %v3456 = vpack.c.bf16 %v3304, %v3302
        %v3457 = vpack.c.bf16 %v3305, %v3303
        %v3458 = vpack.c.bf16 %v3308, %v3306
        %v3459 = vpack.c.bf16 %v3309, %v3307
        %v3460 = vpack.c.bf16 %v3312, %v3310
        %v3461 = vpack.c.bf16 %v3313, %v3311
        %v3462 = vpack.c.bf16 %v3316, %v3314
        %v3463 = vpack.c.bf16 %v3317, %v3315
        %v3464 = vpack.c.bf16 %v3320, %v3318
        %v3465 = vpack.c.bf16 %v3321, %v3319
        %v3466 = vpack.c.bf16 %v3324, %v3322
        %v3467 = vpack.c.bf16 %v3325, %v3323
        %v3468 = vpack.c.bf16 %v3328, %v3326
        %v3469 = vpack.c.bf16 %v3329, %v3327
        %v3470 = vpack.c.bf16 %v3332, %v3330
        %v3471 = vpack.c.bf16 %v3333, %v3331
        %v3472 = vpack.c.bf16 %v3336, %v3334
        %v3473 = vpack.c.bf16 %v3337, %v3335
        %v3474 = vpack.c.bf16 %v3340, %v3338
        %v3475 = vpack.c.bf16 %v3341, %v3339
        %v3476 = vpack.c.bf16 %v3344, %v3342
        %v3477 = vpack.c.bf16 %v3345, %v3343
        %v3478 = vpack.c.bf16 %v3348, %v3346
        %v3479 = vpack.c.bf16 %v3349, %v3347
        %v3480 = vpack.c.bf16 %v3352, %v3350
        %v3481 = vpack.c.bf16 %v3353, %v3351
        %v3482 = vpack.c.bf16 %v3356, %v3354
        %v3483 = vpack.c.bf16 %v3357, %v3355
        %v3484 = vpack.c.bf16 %v3360, %v3358
        %v3485 = vpack.c.bf16 %v3361, %v3359
        %v3486 = vpack.c.bf16 %v3364, %v3362
        %v3487 = vpack.c.bf16 %v3365, %v3363
        %v3488 = vpack.c.bf16 %v3368, %v3366
        %v3489 = vpack.c.bf16 %v3369, %v3367
        %v3490 = vpack.c.bf16 %v3372, %v3370
        %v3491 = vpack.c.bf16 %v3373, %v3371
        %v3492 = vpack.c.bf16 %v3376, %v3374
        %v3493 = vpack.c.bf16 %v3377, %v3375
        %v3494 = vpack.c.bf16 %v3380, %v3378
        %v3495 = vpack.c.bf16 %v3381, %v3379
        %v3496 = vpack.c.bf16 %v3384, %v3382
        %v3497 = vpack.c.bf16 %v3385, %v3383
        %v3498 = vld [vmem:[%s6] sm:$0xff]
        %v3499 = vld [vmem:[%s6 + $0x8] sm:$0xff]
        %v3500 = vld [vmem:[%s6 + $0x10] sm:$0xff]
        %v3501 = vld [vmem:[%s6 + $0x18] sm:$0xff]
        %v3502 = vld [vmem:[%s6 + $0x20] sm:$0xff]
        %v3503 = vld [vmem:[%s6 + $0x28] sm:$0xff]
        %v3504 = vld [vmem:[%s6 + $0x30] sm:$0xff]
        %v3505 = vld [vmem:[%s6 + $0x38] sm:$0xff]
        %v3506 = vld [vmem:[%s6 + $0x40] sm:$0xff]
        %v3507 = vld [vmem:[%s6 + $0x48] sm:$0xff]
        %v3508 = vld [vmem:[%s6 + $0x50] sm:$0xff]
        %v3509 = vld [vmem:[%s6 + $0x58] sm:$0xff]
        %v3510 = vld [vmem:[%s6 + $0x60] sm:$0xff]
        %v3511 = vld [vmem:[%s6 + $0x68] sm:$0xff]
        %v3512 = vld [vmem:[%s6 + $0x70] sm:$0xff]
        %v3513 = vld [vmem:[%s6 + $0x78] sm:$0xff]
        %v3514 = vld [vmem:[%s6 + $0x80] sm:$0xff]
        %v3515 = vld [vmem:[%s6 + $0x88] sm:$0xff]
        %v3516 = vld [vmem:[%s6 + $0x90] sm:$0xff]
        %v3517 = vld [vmem:[%s6 + $0x98] sm:$0xff]
        %v3518 = vld [vmem:[%s6 + $0xa0] sm:$0xff]
        %v3519 = vld [vmem:[%s6 + $0xa8] sm:$0xff]
        %v3520 = vld [vmem:[%s6 + $0xb0] sm:$0xff]
        %v3521 = vld [vmem:[%s6 + $0xb8] sm:$0xff]
        %v3522 = vld [vmem:[%s6 + $0xc0] sm:$0xff]
        %v3523 = vld [vmem:[%s6 + $0xc8] sm:$0xff]
        %v3524 = vld [vmem:[%s6 + $0xd0] sm:$0xff]
        %v3525 = vld [vmem:[%s6 + $0xd8] sm:$0xff]
        %v3526 = vld [vmem:[%s6 + $0xe0] sm:$0xff]
        %v3527 = vld [vmem:[%s6 + $0xe8] sm:$0xff]
        %v3528 = vld [vmem:[%s6 + $0xf0] sm:$0xff]
        %v3529 = vld [vmem:[%s6 + $0xf8] sm:$0xff]
        %3531 = vset.pattern.permute.xlu0 0
        %3532 = vperm.xlu0 %3531, %v3498
        %v3533 = vpop.permute.xlu0 %3532
        %3536 = vset.pattern.permute.xlu0 0
        %3537 = vperm.xlu0 %3536, %v3499
        %v3538 = vpop.permute.xlu0 %3537
        %3541 = vset.pattern.permute.xlu0 0
        %3542 = vperm.xlu0 %3541, %v3500
        %v3543 = vpop.permute.xlu0 %3542
        %3546 = vset.pattern.permute.xlu0 0
        %3547 = vperm.xlu0 %3546, %v3501
        %v3548 = vpop.permute.xlu0 %3547
        %3551 = vset.pattern.permute.xlu0 0
        %3552 = vperm.xlu0 %3551, %v3502
        %v3553 = vpop.permute.xlu0 %3552
        %3556 = vset.pattern.permute.xlu0 0
        %3557 = vperm.xlu0 %3556, %v3503
        %v3558 = vpop.permute.xlu0 %3557
        %3561 = vset.pattern.permute.xlu0 0
        %3562 = vperm.xlu0 %3561, %v3504
        %v3563 = vpop.permute.xlu0 %3562
        %3566 = vset.pattern.permute.xlu0 0
        %3567 = vperm.xlu0 %3566, %v3505
        %v3568 = vpop.permute.xlu0 %3567
        %3571 = vset.pattern.permute.xlu0 0
        %3572 = vperm.xlu0 %3571, %v3506
        %v3573 = vpop.permute.xlu0 %3572
        %3576 = vset.pattern.permute.xlu0 0
        %3577 = vperm.xlu0 %3576, %v3507
        %v3578 = vpop.permute.xlu0 %3577
        %3581 = vset.pattern.permute.xlu0 0
        %3582 = vperm.xlu0 %3581, %v3508
        %v3583 = vpop.permute.xlu0 %3582
        %3586 = vset.pattern.permute.xlu0 0
        %3587 = vperm.xlu0 %3586, %v3509
        %v3588 = vpop.permute.xlu0 %3587
        %3591 = vset.pattern.permute.xlu0 0
        %3592 = vperm.xlu0 %3591, %v3510
        %v3593 = vpop.permute.xlu0 %3592
        %3596 = vset.pattern.permute.xlu0 0
        %3597 = vperm.xlu0 %3596, %v3511
        %v3598 = vpop.permute.xlu0 %3597
        %3601 = vset.pattern.permute.xlu0 0
        %3602 = vperm.xlu0 %3601, %v3512
        %v3603 = vpop.permute.xlu0 %3602
        %3606 = vset.pattern.permute.xlu0 0
        %3607 = vperm.xlu0 %3606, %v3513
        %v3608 = vpop.permute.xlu0 %3607
        %3611 = vset.pattern.permute.xlu0 0
        %3612 = vperm.xlu0 %3611, %v3514
        %v3613 = vpop.permute.xlu0 %3612
        %3616 = vset.pattern.permute.xlu0 0
        %3617 = vperm.xlu0 %3616, %v3515
        %v3618 = vpop.permute.xlu0 %3617
        %3621 = vset.pattern.permute.xlu0 0
        %3622 = vperm.xlu0 %3621, %v3516
        %v3623 = vpop.permute.xlu0 %3622
        %3626 = vset.pattern.permute.xlu0 0
        %3627 = vperm.xlu0 %3626, %v3517
        %v3628 = vpop.permute.xlu0 %3627
        %3631 = vset.pattern.permute.xlu0 0
        %3632 = vperm.xlu0 %3631, %v3518
        %v3633 = vpop.permute.xlu0 %3632
        %3636 = vset.pattern.permute.xlu0 0
        %3637 = vperm.xlu0 %3636, %v3519
        %v3638 = vpop.permute.xlu0 %3637
        %3641 = vset.pattern.permute.xlu0 0
        %3642 = vperm.xlu0 %3641, %v3520
        %v3643 = vpop.permute.xlu0 %3642
        %3646 = vset.pattern.permute.xlu0 0
        %3647 = vperm.xlu0 %3646, %v3521
        %v3648 = vpop.permute.xlu0 %3647
        %3651 = vset.pattern.permute.xlu0 0
        %3652 = vperm.xlu0 %3651, %v3522
        %v3653 = vpop.permute.xlu0 %3652
        %3656 = vset.pattern.permute.xlu0 0
        %3657 = vperm.xlu0 %3656, %v3523
        %v3658 = vpop.permute.xlu0 %3657
        %3661 = vset.pattern.permute.xlu0 0
        %3662 = vperm.xlu0 %3661, %v3524
        %v3663 = vpop.permute.xlu0 %3662
        %3666 = vset.pattern.permute.xlu0 0
        %3667 = vperm.xlu0 %3666, %v3525
        %v3668 = vpop.permute.xlu0 %3667
        %3671 = vset.pattern.permute.xlu0 0
        %3672 = vperm.xlu0 %3671, %v3526
        %v3673 = vpop.permute.xlu0 %3672
        %3676 = vset.pattern.permute.xlu0 0
        %3677 = vperm.xlu0 %3676, %v3527
        %v3678 = vpop.permute.xlu0 %3677
        %3681 = vset.pattern.permute.xlu0 0
        %3682 = vperm.xlu0 %3681, %v3528
        %v3683 = vpop.permute.xlu0 %3682
        %3686 = vset.pattern.permute.xlu0 0
        %3687 = vperm.xlu0 %3686, %v3529
        %v3688 = vpop.permute.xlu0 %3687
        %v3754 = vunpack.c.l.b16 %v3386
        %v3755 = vunpack.c.h.b16 %v3386
        %v3756 = vunpack.c.l.b16 %v3387
        %v3757 = vunpack.c.l.b16 %v3388
        %v3758 = vunpack.c.h.b16 %v3388
        %v3759 = vunpack.c.l.b16 %v3389
        %v3760 = vunpack.c.l.b16 %v3390
        %v3761 = vunpack.c.h.b16 %v3390
        %v3762 = vunpack.c.l.b16 %v3391
        %v3763 = vunpack.c.l.b16 %v3392
        %v3764 = vunpack.c.h.b16 %v3392
        %v3765 = vunpack.c.l.b16 %v3393
        %v3766 = vunpack.c.l.b16 %v3394
        %v3767 = vunpack.c.h.b16 %v3394
        %v3768 = vunpack.c.l.b16 %v3395
        %v3769 = vunpack.c.l.b16 %v3396
        %v3770 = vunpack.c.h.b16 %v3396
        %v3771 = vunpack.c.l.b16 %v3397
        %v3772 = vunpack.c.l.b16 %v3398
        %v3773 = vunpack.c.h.b16 %v3398
        %v3774 = vunpack.c.l.b16 %v3399
        %v3775 = vunpack.c.l.b16 %v3400
        %v3776 = vunpack.c.h.b16 %v3400
        %v3777 = vunpack.c.l.b16 %v3401
        %v3778 = vunpack.c.l.b16 %v3402
        %v3779 = vunpack.c.h.b16 %v3402
        %v3780 = vunpack.c.l.b16 %v3403
        %v3781 = vunpack.c.l.b16 %v3404
        %v3782 = vunpack.c.h.b16 %v3404
        %v3783 = vunpack.c.l.b16 %v3405
        %v3784 = vunpack.c.l.b16 %v3406
        %v3785 = vunpack.c.h.b16 %v3406
        %v3786 = vunpack.c.l.b16 %v3407
        %v3787 = vunpack.c.l.b16 %v3408
        %v3788 = vunpack.c.h.b16 %v3408
        %v3789 = vunpack.c.l.b16 %v3409
        %v3790 = vunpack.c.l.b16 %v3410
        %v3791 = vunpack.c.h.b16 %v3410
        %v3792 = vunpack.c.l.b16 %v3411
        %v3793 = vunpack.c.l.b16 %v3412
        %v3794 = vunpack.c.h.b16 %v3412
        %v3795 = vunpack.c.l.b16 %v3413
        %v3796 = vunpack.c.l.b16 %v3414
        %v3797 = vunpack.c.h.b16 %v3414
        %v3798 = vunpack.c.l.b16 %v3415
        %v3799 = vunpack.c.l.b16 %v3416
        %v3800 = vunpack.c.h.b16 %v3416
        %v3801 = vunpack.c.l.b16 %v3417
        %v3802 = vunpack.c.l.b16 %v3418
        %v3803 = vunpack.c.h.b16 %v3418
        %v3804 = vunpack.c.l.b16 %v3419
        %v3805 = vunpack.c.l.b16 %v3420
        %v3806 = vunpack.c.h.b16 %v3420
        %v3807 = vunpack.c.l.b16 %v3421
        %v3808 = vunpack.c.l.b16 %v3422
        %v3809 = vunpack.c.h.b16 %v3422
        %v3810 = vunpack.c.l.b16 %v3423
        %v3811 = vunpack.c.l.b16 %v3424
        %v3812 = vunpack.c.h.b16 %v3424
        %v3813 = vunpack.c.l.b16 %v3425
        %v3814 = vunpack.c.l.b16 %v3426
        %v3815 = vunpack.c.h.b16 %v3426
        %v3816 = vunpack.c.l.b16 %v3427
        %v3817 = vunpack.c.l.b16 %v3428
        %v3818 = vunpack.c.h.b16 %v3428
        %v3819 = vunpack.c.l.b16 %v3429
        %v3820 = vunpack.c.l.b16 %v3430
        %v3821 = vunpack.c.h.b16 %v3430
        %v3822 = vunpack.c.l.b16 %v3431
        %v3823 = vunpack.c.l.b16 %v3432
        %v3824 = vunpack.c.h.b16 %v3432
        %v3825 = vunpack.c.l.b16 %v3433
        %v3826 = vunpack.c.l.b16 %v3434
        %v3827 = vunpack.c.h.b16 %v3434
        %v3828 = vunpack.c.l.b16 %v3435
        %v3829 = vunpack.c.l.b16 %v3436
        %v3830 = vunpack.c.h.b16 %v3436
        %v3831 = vunpack.c.l.b16 %v3437
        %v3832 = vunpack.c.l.b16 %v3438
        %v3833 = vunpack.c.h.b16 %v3438
        %v3834 = vunpack.c.l.b16 %v3439
        %v3835 = vunpack.c.l.b16 %v3440
        %v3836 = vunpack.c.h.b16 %v3440
        %v3837 = vunpack.c.l.b16 %v3441
        %v3838 = vunpack.c.l.b16 %v3442
        %v3839 = vunpack.c.h.b16 %v3442
        %v3840 = vunpack.c.l.b16 %v3443
        %v3841 = vunpack.c.l.b16 %v3444
        %v3842 = vunpack.c.h.b16 %v3444
        %v3843 = vunpack.c.l.b16 %v3445
        %v3844 = vunpack.c.l.b16 %v3446
        %v3845 = vunpack.c.h.b16 %v3446
        %v3846 = vunpack.c.l.b16 %v3447
        %v3847 = vunpack.c.l.b16 %v3448
        %v3848 = vunpack.c.h.b16 %v3448
        %v3849 = vunpack.c.l.b16 %v3449
        %v3850 = vpack.c.b16 %v3757, %v3754
        %v3851 = vpack.c.b16 %v3758, %v3755
        %v3852 = vpack.c.b16 %v3759, %v3756
        %v3853 = vpack.c.b16 %v3763, %v3760
        %v3854 = vpack.c.b16 %v3764, %v3761
        %v3855 = vpack.c.b16 %v3765, %v3762
        %v3856 = vpack.c.b16 %v3769, %v3766
        %v3857 = vpack.c.b16 %v3770, %v3767
        %v3858 = vpack.c.b16 %v3771, %v3768
        %v3859 = vpack.c.b16 %v3775, %v3772
        %v3860 = vpack.c.b16 %v3776, %v3773
        %v3861 = vpack.c.b16 %v3777, %v3774
        %v3862 = vpack.c.b16 %v3781, %v3778
        %v3863 = vpack.c.b16 %v3782, %v3779
        %v3864 = vpack.c.b16 %v3783, %v3780
        %v3865 = vpack.c.b16 %v3787, %v3784
        %v3866 = vpack.c.b16 %v3788, %v3785
        %v3867 = vpack.c.b16 %v3789, %v3786
        %v3868 = vpack.c.b16 %v3793, %v3790
        %v3869 = vpack.c.b16 %v3794, %v3791
        %v3870 = vpack.c.b16 %v3795, %v3792
        %v3871 = vpack.c.b16 %v3799, %v3796
        %v3872 = vpack.c.b16 %v3800, %v3797
        %v3873 = vpack.c.b16 %v3801, %v3798
        %v3874 = vpack.c.b16 %v3805, %v3802
        %v3875 = vpack.c.b16 %v3806, %v3803
        %v3876 = vpack.c.b16 %v3807, %v3804
        %v3877 = vpack.c.b16 %v3811, %v3808
        %v3878 = vpack.c.b16 %v3812, %v3809
        %v3879 = vpack.c.b16 %v3813, %v3810
        %v3880 = vpack.c.b16 %v3817, %v3814
        %v3881 = vpack.c.b16 %v3818, %v3815
        %v3882 = vpack.c.b16 %v3819, %v3816
        %v3883 = vpack.c.b16 %v3823, %v3820
        %v3884 = vpack.c.b16 %v3824, %v3821
        %v3885 = vpack.c.b16 %v3825, %v3822
        %v3886 = vpack.c.b16 %v3829, %v3826
        %v3887 = vpack.c.b16 %v3830, %v3827
        %v3888 = vpack.c.b16 %v3831, %v3828
        %v3889 = vpack.c.b16 %v3835, %v3832
        %v3890 = vpack.c.b16 %v3836, %v3833
        %v3891 = vpack.c.b16 %v3837, %v3834
        %v3892 = vpack.c.b16 %v3841, %v3838
        %v3893 = vpack.c.b16 %v3842, %v3839
        %v3894 = vpack.c.b16 %v3843, %v3840
        %v3895 = vpack.c.b16 %v3847, %v3844
        %v3896 = vpack.c.b16 %v3848, %v3845
        %v3897 = vpack.c.b16 %v3849, %v3846
        %3946 = vmatprep.subr.bf16.mxu0 %v3465
        %3947 = vmatpush1.bf16.msra.mxu0 %v3464
        %3948 = vmatprep.subr.bf16.mxu0 %v3463
        %3949 = vmatpush1.bf16.msra.mxu0 %v3462
        %3950 = vmatprep.subr.bf16.mxu0 %v3461
        %3951 = vmatpush1.bf16.msra.mxu0 %v3460
        %3952 = vmatprep.subr.bf16.mxu0 %v3459
        %3953 = vmatpush1.bf16.msra.mxu0 %v3458
        %3954 = vmatprep.subr.bf16.mxu0 %v3457
        %3955 = vmatpush1.bf16.msra.mxu0 %v3456
        %3956 = vmatprep.subr.bf16.mxu0 %v3455
        %3957 = vmatpush1.bf16.msra.mxu0 %v3454
        %3958 = vmatprep.subr.bf16.mxu0 %v3453
        %3959 = vmatpush1.bf16.msra.mxu0 %v3452
        %3960 = vmatprep.subr.bf16.mxu0 %v3451
        %3961 = vmatpush1.bf16.msra.mxu0 %v3450
        %3962 = vmatprep.subr.bf16.mxu0 %v3481
        %3963 = vmatpush2.bf16.msra.mxu0 %v3480
        %3964 = vmatprep.subr.bf16.mxu0 %v3479
        %3965 = vmatpush2.bf16.msra.mxu0 %v3478
        %3966 = vmatprep.subr.bf16.mxu0 %v3477
        %3967 = vmatpush2.bf16.msra.mxu0 %v3476
        %3968 = vmatprep.subr.bf16.mxu0 %v3475
        %3969 = vmatpush2.bf16.msra.mxu0 %v3474
        %3970 = vmatprep.subr.bf16.mxu0 %v3473
        %3971 = vmatpush2.bf16.msra.mxu0 %v3472
        %3972 = vmatprep.subr.bf16.mxu0 %v3471
        %3973 = vmatpush2.bf16.msra.mxu0 %v3470
        %3974 = vmatprep.subr.bf16.mxu0 %v3469
        %3975 = vmatpush2.bf16.msra.mxu0 %v3468
        %3976 = vmatprep.subr.bf16.mxu0 %v3467
        %3977 = vmatpush2.bf16.msra.mxu0 %v3466
        %3978 = vmatprep.mubr.bf16.mxu0 %v3851
        %3979 = vmatmul.mubr.bf16.gmra.mxu0 %v3850
        %v3980 = vpop.f32.mrf.mxu0
        %v3981 = vadd.f32 %v3533, %v3980
        %v3982 = vpop.f32.mrf.mxu0
        %v3983 = vadd.f32 %v3533, %v3982
        %v3984 = vpop.f32.mrf.mxu0
        %v3985 = vadd.f32 %v3538, %v3984
        %v3986 = vpop.f32.mrf.mxu0
        %v3987 = vadd.f32 %v3538, %v3986
        %3988 = vmatprep.mubr.bf16.mxu0 %v3854
        %3989 = vmatmul.mubr.bf16.gmra.mxu0 %v3853
        %v3990 = vpop.f32.mrf.mxu0
        %v3991 = vadd.f32 %v3543, %v3990
        %v3992 = vpop.f32.mrf.mxu0
        %v3993 = vadd.f32 %v3543, %v3992
        %v3994 = vpop.f32.mrf.mxu0
        %v3995 = vadd.f32 %v3548, %v3994
        %v3996 = vpop.f32.mrf.mxu0
        %v3997 = vadd.f32 %v3548, %v3996
        %3998 = vmatprep.mubr.bf16.mxu0 %v3857
        %3999 = vmatmul.mubr.bf16.gmra.mxu0 %v3856
        %v4000 = vpop.f32.mrf.mxu0
        %v4001 = vadd.f32 %v3553, %v4000
        %v4002 = vpop.f32.mrf.mxu0
        %v4003 = vadd.f32 %v3553, %v4002
        %v4004 = vpop.f32.mrf.mxu0
        %v4005 = vadd.f32 %v3558, %v4004
        %v4006 = vpop.f32.mrf.mxu0
        %v4007 = vadd.f32 %v3558, %v4006
        %4008 = vmatprep.mubr.bf16.mxu0 %v3860
        %4009 = vmatmul.mubr.bf16.gmra.mxu0 %v3859
        %v4010 = vpop.f32.mrf.mxu0
        %v4011 = vadd.f32 %v3563, %v4010
        %v4012 = vpop.f32.mrf.mxu0
        %v4013 = vadd.f32 %v3563, %v4012
        %v4014 = vpop.f32.mrf.mxu0
        %v4015 = vadd.f32 %v3568, %v4014
        %v4016 = vpop.f32.mrf.mxu0
        %v4017 = vadd.f32 %v3568, %v4016
        %4018 = vmatprep.mubr.bf16.mxu0 %v3863
        %4019 = vmatmul.mubr.bf16.gmra.mxu0 %v3862
        %v4020 = vpop.f32.mrf.mxu0
        %v4021 = vadd.f32 %v3573, %v4020
        %v4022 = vpop.f32.mrf.mxu0
        %v4023 = vadd.f32 %v3573, %v4022
        %v4024 = vpop.f32.mrf.mxu0
        %v4025 = vadd.f32 %v3578, %v4024
        %v4026 = vpop.f32.mrf.mxu0
        %v4027 = vadd.f32 %v3578, %v4026
        %4028 = vmatprep.mubr.bf16.mxu0 %v3866
        %4029 = vmatmul.mubr.bf16.gmra.mxu0 %v3865
        %v4030 = vpop.f32.mrf.mxu0
        %v4031 = vadd.f32 %v3583, %v4030
        %v4032 = vpop.f32.mrf.mxu0
        %v4033 = vadd.f32 %v3583, %v4032
        %v4034 = vpop.f32.mrf.mxu0
        %v4035 = vadd.f32 %v3588, %v4034
        %v4036 = vpop.f32.mrf.mxu0
        %v4037 = vadd.f32 %v3588, %v4036
        %4038 = vmatprep.mubr.bf16.mxu0 %v3869
        %4039 = vmatmul.mubr.bf16.gmra.mxu0 %v3868
        %v4040 = vpop.f32.mrf.mxu0
        %v4041 = vadd.f32 %v3593, %v4040
        %v4042 = vpop.f32.mrf.mxu0
        %v4043 = vadd.f32 %v3593, %v4042
        %v4044 = vpop.f32.mrf.mxu0
        %v4045 = vadd.f32 %v3598, %v4044
        %v4046 = vpop.f32.mrf.mxu0
        %v4047 = vadd.f32 %v3598, %v4046
        %4048 = vmatprep.mubr.bf16.mxu0 %v3872
        %4049 = vmatmul.mubr.bf16.gmra.mxu0 %v3871
        %v4050 = vpop.f32.mrf.mxu0
        %v4051 = vadd.f32 %v3603, %v4050
        %v4052 = vpop.f32.mrf.mxu0
        %v4053 = vadd.f32 %v3603, %v4052
        %v4054 = vpop.f32.mrf.mxu0
        %v4055 = vadd.f32 %v3608, %v4054
        %v4056 = vpop.f32.mrf.mxu0
        %v4057 = vadd.f32 %v3608, %v4056
        %4058 = vmatprep.mubr.bf16.mxu0 %v3875
        %4059 = vmatmul.mubr.bf16.gmra.mxu0 %v3874
        %v4060 = vpop.f32.mrf.mxu0
        %v4061 = vadd.f32 %v3613, %v4060
        %v4062 = vpop.f32.mrf.mxu0
        %v4063 = vadd.f32 %v3613, %v4062
        %v4064 = vpop.f32.mrf.mxu0
        %v4065 = vadd.f32 %v3618, %v4064
        %v4066 = vpop.f32.mrf.mxu0
        %v4067 = vadd.f32 %v3618, %v4066
        %4068 = vmatprep.mubr.bf16.mxu0 %v3878
        %4069 = vmatmul.mubr.bf16.gmra.mxu0 %v3877
        %v4070 = vpop.f32.mrf.mxu0
        %v4071 = vadd.f32 %v3623, %v4070
        %v4072 = vpop.f32.mrf.mxu0
        %v4073 = vadd.f32 %v3623, %v4072
        %v4074 = vpop.f32.mrf.mxu0
        %v4075 = vadd.f32 %v3628, %v4074
        %v4076 = vpop.f32.mrf.mxu0
        %v4077 = vadd.f32 %v3628, %v4076
        %4078 = vmatprep.mubr.bf16.mxu0 %v3881
        %4079 = vmatmul.mubr.bf16.gmra.mxu0 %v3880
        %v4080 = vpop.f32.mrf.mxu0
        %v4081 = vadd.f32 %v3633, %v4080
        %v4082 = vpop.f32.mrf.mxu0
        %v4083 = vadd.f32 %v3633, %v4082
        %v4084 = vpop.f32.mrf.mxu0
        %v4085 = vadd.f32 %v3638, %v4084
        %v4086 = vpop.f32.mrf.mxu0
        %v4087 = vadd.f32 %v3638, %v4086
        %4088 = vmatprep.mubr.bf16.mxu0 %v3884
        %4089 = vmatmul.mubr.bf16.gmra.mxu0 %v3883
        %v4090 = vpop.f32.mrf.mxu0
        %v4091 = vadd.f32 %v3643, %v4090
        %v4092 = vpop.f32.mrf.mxu0
        %v4093 = vadd.f32 %v3643, %v4092
        %v4094 = vpop.f32.mrf.mxu0
        %v4095 = vadd.f32 %v3648, %v4094
        %v4096 = vpop.f32.mrf.mxu0
        %v4097 = vadd.f32 %v3648, %v4096
        %4098 = vmatprep.mubr.bf16.mxu0 %v3887
        %4099 = vmatmul.mubr.bf16.gmra.mxu0 %v3886
        %v4100 = vpop.f32.mrf.mxu0
        %v4101 = vadd.f32 %v3653, %v4100
        %v4102 = vpop.f32.mrf.mxu0
        %v4103 = vadd.f32 %v3653, %v4102
        %v4104 = vpop.f32.mrf.mxu0
        %v4105 = vadd.f32 %v3658, %v4104
        %v4106 = vpop.f32.mrf.mxu0
        %v4107 = vadd.f32 %v3658, %v4106
        %4108 = vmatprep.mubr.bf16.mxu0 %v3890
        %4109 = vmatmul.mubr.bf16.gmra.mxu0 %v3889
        %v4110 = vpop.f32.mrf.mxu0
        %v4111 = vadd.f32 %v3663, %v4110
        %v4112 = vpop.f32.mrf.mxu0
        %v4113 = vadd.f32 %v3663, %v4112
        %v4114 = vpop.f32.mrf.mxu0
        %v4115 = vadd.f32 %v3668, %v4114
        %v4116 = vpop.f32.mrf.mxu0
        %v4117 = vadd.f32 %v3668, %v4116
        %4118 = vmatprep.mubr.bf16.mxu0 %v3893
        %4119 = vmatmul.mubr.bf16.gmra.mxu0 %v3892
        %v4120 = vpop.f32.mrf.mxu0
        %v4121 = vadd.f32 %v3673, %v4120
        %v4122 = vpop.f32.mrf.mxu0
        %v4123 = vadd.f32 %v3673, %v4122
        %v4124 = vpop.f32.mrf.mxu0
        %v4125 = vadd.f32 %v3678, %v4124
        %v4126 = vpop.f32.mrf.mxu0
        %v4127 = vadd.f32 %v3678, %v4126
        %4128 = vmatprep.mubr.bf16.mxu0 %v3896
        %4129 = vmatmul.mubr.bf16.gmra.mxu0 %v3895
        %v4130 = vpop.f32.mrf.mxu0
        %v4131 = vadd.f32 %v3683, %v4130
        %v4132 = vpop.f32.mrf.mxu0
        %v4133 = vadd.f32 %v3683, %v4132
        %v4134 = vpop.f32.mrf.mxu0
        %v4135 = vadd.f32 %v3688, %v4134
        %v4136 = vpop.f32.mrf.mxu0
        %v4137 = vadd.f32 %v3688, %v4136
        %4138 = vdwg.mxu0
        %4139 = vmatprep.subr.bf16.mxu0 %v3497
        %4140 = vmatpush1.bf16.msra.mxu0 %v3496
        %4141 = vmatprep.subr.bf16.mxu0 %v3495
        %4142 = vmatpush1.bf16.msra.mxu0 %v3494
        %4143 = vmatprep.subr.bf16.mxu0 %v3493
        %4144 = vmatpush1.bf16.msra.mxu0 %v3492
        %4145 = vmatprep.subr.bf16.mxu0 %v3491
        %4146 = vmatpush1.bf16.msra.mxu0 %v3490
        %4147 = vmatprep.subr.bf16.mxu0 %v3489
        %4148 = vmatpush1.bf16.msra.mxu0 %v3488
        %4149 = vmatprep.subr.bf16.mxu0 %v3487
        %4150 = vmatpush1.bf16.msra.mxu0 %v3486
        %4151 = vmatprep.subr.bf16.mxu0 %v3485
        %4152 = vmatpush1.bf16.msra.mxu0 %v3484
        %4153 = vmatprep.subr.bf16.mxu0 %v3483
        %4154 = vmatpush1.bf16.msra.mxu0 %v3482
        %4155 = vmatprep.subr.bf16.mxu0 0
        %4156 = vmatpush2.bf16.msra.mxu0 0
        %4157 = vmatprep.subr.bf16.mxu0 0
        %4158 = vmatpush2.bf16.msra.mxu0 0
        %4159 = vmatprep.subr.bf16.mxu0 0
        %4160 = vmatpush2.bf16.msra.mxu0 0
        %4161 = vmatprep.subr.bf16.mxu0 0
        %4162 = vmatpush2.bf16.msra.mxu0 0
        %4163 = vmatprep.subr.bf16.mxu0 0
        %4164 = vmatpush2.bf16.msra.mxu0 0
        %4165 = vmatprep.subr.bf16.mxu0 0
        %4166 = vmatpush2.bf16.msra.mxu0 0
        %4167 = vmatprep.subr.bf16.mxu0 0
        %4168 = vmatpush2.bf16.msra.mxu0 0
        %4169 = vmatprep.subr.bf16.mxu0 0
        %4170 = vmatpush2.bf16.msra.mxu0 0
        %4171 = vmatprep.mubr.bf16.mxu0 0
        %4172 = vmatmul.mubr.bf16.gmra.mxu0 %v3852
        %v4173 = vpop.f32.mrf.mxu0
        %v4174 = vadd.f32 %v3981, %v4173
        %v4175 = vpop.f32.mrf.mxu0
        %v4176 = vadd.f32 %v3983, %v4175
        %v4177 = vpop.f32.mrf.mxu0
        %v4178 = vadd.f32 %v3985, %v4177
        %v4179 = vpop.f32.mrf.mxu0
        %v4180 = vadd.f32 %v3987, %v4179
        %4181 = vmatprep.mubr.bf16.mxu0 0
        %4182 = vmatmul.mubr.bf16.gmra.mxu0 %v3855
        %v4183 = vpop.f32.mrf.mxu0
        %v4184 = vadd.f32 %v3991, %v4183
        %v4185 = vpop.f32.mrf.mxu0
        %v4186 = vadd.f32 %v3993, %v4185
        %v4187 = vpop.f32.mrf.mxu0
        %v4188 = vadd.f32 %v3995, %v4187
        %v4189 = vpop.f32.mrf.mxu0
        %v4190 = vadd.f32 %v3997, %v4189
        %4191 = vmatprep.mubr.bf16.mxu0 0
        %4192 = vmatmul.mubr.bf16.gmra.mxu0 %v3858
        %v4193 = vpop.f32.mrf.mxu0
        %v4194 = vadd.f32 %v4001, %v4193
        %v4195 = vpop.f32.mrf.mxu0
        %v4196 = vadd.f32 %v4003, %v4195
        %v4197 = vpop.f32.mrf.mxu0
        %v4198 = vadd.f32 %v4005, %v4197
        %v4199 = vpop.f32.mrf.mxu0
        %v4200 = vadd.f32 %v4007, %v4199
        %4201 = vmatprep.mubr.bf16.mxu0 0
        %4202 = vmatmul.mubr.bf16.gmra.mxu0 %v3861
        %v4203 = vpop.f32.mrf.mxu0
        %v4204 = vadd.f32 %v4011, %v4203
        %v4205 = vpop.f32.mrf.mxu0
        %v4206 = vadd.f32 %v4013, %v4205
        %v4207 = vpop.f32.mrf.mxu0
        %v4208 = vadd.f32 %v4015, %v4207
        %v4209 = vpop.f32.mrf.mxu0
        %v4210 = vadd.f32 %v4017, %v4209
        %4211 = vmatprep.mubr.bf16.mxu0 0
        %4212 = vmatmul.mubr.bf16.gmra.mxu0 %v3864
        %v4213 = vpop.f32.mrf.mxu0
        %v4214 = vadd.f32 %v4021, %v4213
        %v4215 = vpop.f32.mrf.mxu0
        %v4216 = vadd.f32 %v4023, %v4215
        %v4217 = vpop.f32.mrf.mxu0
        %v4218 = vadd.f32 %v4025, %v4217
        %v4219 = vpop.f32.mrf.mxu0
        %v4220 = vadd.f32 %v4027, %v4219
        %4221 = vmatprep.mubr.bf16.mxu0 0
        %4222 = vmatmul.mubr.bf16.gmra.mxu0 %v3867
        %v4223 = vpop.f32.mrf.mxu0
        %v4224 = vadd.f32 %v4031, %v4223
        %v4225 = vpop.f32.mrf.mxu0
        %v4226 = vadd.f32 %v4033, %v4225
        %v4227 = vpop.f32.mrf.mxu0
        %v4228 = vadd.f32 %v4035, %v4227
        %v4229 = vpop.f32.mrf.mxu0
        %v4230 = vadd.f32 %v4037, %v4229
        %4231 = vmatprep.mubr.bf16.mxu0 0
        %4232 = vmatmul.mubr.bf16.gmra.mxu0 %v3870
        %v4233 = vpop.f32.mrf.mxu0
        %v4234 = vadd.f32 %v4041, %v4233
        %v4235 = vpop.f32.mrf.mxu0
        %v4236 = vadd.f32 %v4043, %v4235
        %v4237 = vpop.f32.mrf.mxu0
        %v4238 = vadd.f32 %v4045, %v4237
        %v4239 = vpop.f32.mrf.mxu0
        %v4240 = vadd.f32 %v4047, %v4239
        %4241 = vmatprep.mubr.bf16.mxu0 0
        %4242 = vmatmul.mubr.bf16.gmra.mxu0 %v3873
        %v4243 = vpop.f32.mrf.mxu0
        %v4244 = vadd.f32 %v4051, %v4243
        %v4245 = vpop.f32.mrf.mxu0
        %v4246 = vadd.f32 %v4053, %v4245
        %v4247 = vpop.f32.mrf.mxu0
        %v4248 = vadd.f32 %v4055, %v4247
        %v4249 = vpop.f32.mrf.mxu0
        %v4250 = vadd.f32 %v4057, %v4249
        %4251 = vmatprep.mubr.bf16.mxu0 0
        %4252 = vmatmul.mubr.bf16.gmra.mxu0 %v3876
        %v4253 = vpop.f32.mrf.mxu0
        %v4254 = vadd.f32 %v4061, %v4253
        %v4255 = vpop.f32.mrf.mxu0
        %v4256 = vadd.f32 %v4063, %v4255
        %v4257 = vpop.f32.mrf.mxu0
        %v4258 = vadd.f32 %v4065, %v4257
        %v4259 = vpop.f32.mrf.mxu0
        %v4260 = vadd.f32 %v4067, %v4259
        %4261 = vmatprep.mubr.bf16.mxu0 0
        %4262 = vmatmul.mubr.bf16.gmra.mxu0 %v3879
        %v4263 = vpop.f32.mrf.mxu0
        %v4264 = vadd.f32 %v4071, %v4263
        %v4265 = vpop.f32.mrf.mxu0
        %v4266 = vadd.f32 %v4073, %v4265
        %v4267 = vpop.f32.mrf.mxu0
        %v4268 = vadd.f32 %v4075, %v4267
        %v4269 = vpop.f32.mrf.mxu0
        %v4270 = vadd.f32 %v4077, %v4269
        %4271 = vmatprep.mubr.bf16.mxu0 0
        %4272 = vmatmul.mubr.bf16.gmra.mxu0 %v3882
        %v4273 = vpop.f32.mrf.mxu0
        %v4274 = vadd.f32 %v4081, %v4273
        %v4275 = vpop.f32.mrf.mxu0
        %v4276 = vadd.f32 %v4083, %v4275
        %v4277 = vpop.f32.mrf.mxu0
        %v4278 = vadd.f32 %v4085, %v4277
        %v4279 = vpop.f32.mrf.mxu0
        %v4280 = vadd.f32 %v4087, %v4279
        %4281 = vmatprep.mubr.bf16.mxu0 0
        %4282 = vmatmul.mubr.bf16.gmra.mxu0 %v3885
        %v4283 = vpop.f32.mrf.mxu0
        %v4284 = vadd.f32 %v4091, %v4283
        %v4285 = vpop.f32.mrf.mxu0
        %v4286 = vadd.f32 %v4093, %v4285
        %v4287 = vpop.f32.mrf.mxu0
        %v4288 = vadd.f32 %v4095, %v4287
        %v4289 = vpop.f32.mrf.mxu0
        %v4290 = vadd.f32 %v4097, %v4289
        %4291 = vmatprep.mubr.bf16.mxu0 0
        %4292 = vmatmul.mubr.bf16.gmra.mxu0 %v3888
        %v4293 = vpop.f32.mrf.mxu0
        %v4294 = vadd.f32 %v4101, %v4293
        %v4295 = vpop.f32.mrf.mxu0
        %v4296 = vadd.f32 %v4103, %v4295
        %v4297 = vpop.f32.mrf.mxu0
        %v4298 = vadd.f32 %v4105, %v4297
        %v4299 = vpop.f32.mrf.mxu0
        %v4300 = vadd.f32 %v4107, %v4299
        %4301 = vmatprep.mubr.bf16.mxu0 0
        %4302 = vmatmul.mubr.bf16.gmra.mxu0 %v3891
        %v4303 = vpop.f32.mrf.mxu0
        %v4304 = vadd.f32 %v4111, %v4303
        %v4305 = vpop.f32.mrf.mxu0
        %v4306 = vadd.f32 %v4113, %v4305
        %v4307 = vpop.f32.mrf.mxu0
        %v4308 = vadd.f32 %v4115, %v4307
        %v4309 = vpop.f32.mrf.mxu0
        %v4310 = vadd.f32 %v4117, %v4309
        %4311 = vmatprep.mubr.bf16.mxu0 0
        %4312 = vmatmul.mubr.bf16.gmra.mxu0 %v3894
        %v4313 = vpop.f32.mrf.mxu0
        %v4314 = vadd.f32 %v4121, %v4313
        %v4315 = vpop.f32.mrf.mxu0
        %v4316 = vadd.f32 %v4123, %v4315
        %v4317 = vpop.f32.mrf.mxu0
        %v4318 = vadd.f32 %v4125, %v4317
        %v4319 = vpop.f32.mrf.mxu0
        %v4320 = vadd.f32 %v4127, %v4319
        %4321 = vmatprep.mubr.bf16.mxu0 0
        %4322 = vmatmul.mubr.bf16.gmra.mxu0 %v3897
        %v4323 = vpop.f32.mrf.mxu0
        %v4324 = vadd.f32 %v4131, %v4323
        %v4325 = vpop.f32.mrf.mxu0
        %v4326 = vadd.f32 %v4133, %v4325
        %v4327 = vpop.f32.mrf.mxu0
        %v4328 = vadd.f32 %v4135, %v4327
        %v4329 = vpop.f32.mrf.mxu0
        %v4330 = vadd.f32 %v4137, %v4329
        %4331 = vdwg.mxu0
        %v4332 = vmax.f32 %v4174, 0.0
        %v4333 = vmax.f32 %v4176, 0.0
        %v4334 = vmax.f32 %v4178, 0.0
        %v4335 = vmax.f32 %v4180, 0.0
        %v4336 = vmax.f32 %v4184, 0.0
        %v4337 = vmax.f32 %v4186, 0.0
        %v4338 = vmax.f32 %v4188, 0.0
        %v4339 = vmax.f32 %v4190, 0.0
        %v4340 = vmax.f32 %v4194, 0.0
        %v4341 = vmax.f32 %v4196, 0.0
        %v4342 = vmax.f32 %v4198, 0.0
        %v4343 = vmax.f32 %v4200, 0.0
        %v4344 = vmax.f32 %v4204, 0.0
        %v4345 = vmax.f32 %v4206, 0.0
        %v4346 = vmax.f32 %v4208, 0.0
        %v4347 = vmax.f32 %v4210, 0.0
        %v4348 = vmax.f32 %v4214, 0.0
        %v4349 = vmax.f32 %v4216, 0.0
        %v4350 = vmax.f32 %v4218, 0.0
        %v4351 = vmax.f32 %v4220, 0.0
        %v4352 = vmax.f32 %v4224, 0.0
        %v4353 = vmax.f32 %v4226, 0.0
        %v4354 = vmax.f32 %v4228, 0.0
        %v4355 = vmax.f32 %v4230, 0.0
        %v4356 = vmax.f32 %v4234, 0.0
        %v4357 = vmax.f32 %v4236, 0.0
        %v4358 = vmax.f32 %v4238, 0.0
        %v4359 = vmax.f32 %v4240, 0.0
        %v4360 = vmax.f32 %v4244, 0.0
        %v4361 = vmax.f32 %v4246, 0.0
        %v4362 = vmax.f32 %v4248, 0.0
        %v4363 = vmax.f32 %v4250, 0.0
        %v4364 = vmax.f32 %v4254, 0.0
        %v4365 = vmax.f32 %v4256, 0.0
        %v4366 = vmax.f32 %v4258, 0.0
        %v4367 = vmax.f32 %v4260, 0.0
        %v4368 = vmax.f32 %v4264, 0.0
        %v4369 = vmax.f32 %v4266, 0.0
        %v4370 = vmax.f32 %v4268, 0.0
        %v4371 = vmax.f32 %v4270, 0.0
        %v4372 = vmax.f32 %v4274, 0.0
        %v4373 = vmax.f32 %v4276, 0.0
        %v4374 = vmax.f32 %v4278, 0.0
        %v4375 = vmax.f32 %v4280, 0.0
        %v4376 = vmax.f32 %v4284, 0.0
        %v4377 = vmax.f32 %v4286, 0.0
        %v4378 = vmax.f32 %v4288, 0.0
        %v4379 = vmax.f32 %v4290, 0.0
        %v4380 = vmax.f32 %v4294, 0.0
        %v4381 = vmax.f32 %v4296, 0.0
        %v4382 = vmax.f32 %v4298, 0.0
        %v4383 = vmax.f32 %v4300, 0.0
        %v4384 = vmax.f32 %v4304, 0.0
        %v4385 = vmax.f32 %v4306, 0.0
        %v4386 = vmax.f32 %v4308, 0.0
        %v4387 = vmax.f32 %v4310, 0.0
        %v4388 = vmax.f32 %v4314, 0.0
        %v4389 = vmax.f32 %v4316, 0.0
        %v4390 = vmax.f32 %v4318, 0.0
        %v4391 = vmax.f32 %v4320, 0.0
        %v4392 = vmax.f32 %v4324, 0.0
        %v4393 = vmax.f32 %v4326, 0.0
        %v4394 = vmax.f32 %v4328, 0.0
        %v4395 = vmax.f32 %v4330, 0.0
        %v4396 = vld [vmem:[%s7] sm:$0xff]
        %v4397 = vld [vmem:[%s7 + $0x8] sm:$0xff]
        %v4398 = vld [vmem:[%s7 + $0x10] sm:$0xff]
        %v4399 = vld [vmem:[%s7 + $0x18] sm:$0xff]
        %v4400 = vld [vmem:[%s7 + $0x20] sm:$0xff]
        %v4401 = vld [vmem:[%s7 + $0x28] sm:$0xff]
        %v4402 = vld [vmem:[%s7 + $0x30] sm:$0xff]
        %v4403 = vld [vmem:[%s7 + $0x38] sm:$0xff]
        %v4404 = vld [vmem:[%s7 + $0x40] sm:$0xff]
        %v4405 = vld [vmem:[%s7 + $0x48] sm:$0xff]
        %v4406 = vld [vmem:[%s7 + $0x50] sm:$0xff]
        %v4407 = vld [vmem:[%s7 + $0x58] sm:$0xff]
        %v4408 = vld [vmem:[%s7 + $0x60] sm:$0xff]
        %v4409 = vld [vmem:[%s7 + $0x68] sm:$0xff]
        %v4410 = vld [vmem:[%s7 + $0x70] sm:$0xff]
        %v4411 = vld [vmem:[%s7 + $0x78] sm:$0xff]
        %v4412 = vpack.c.bf16 %v4334, %v4332
        %v4413 = vpack.c.bf16 %v4335, %v4333
        %v4414 = vpack.c.bf16 %v4338, %v4336
        %v4415 = vpack.c.bf16 %v4339, %v4337
        %v4416 = vpack.c.bf16 %v4342, %v4340
        %v4417 = vpack.c.bf16 %v4343, %v4341
        %v4418 = vpack.c.bf16 %v4346, %v4344
        %v4419 = vpack.c.bf16 %v4347, %v4345
        %v4420 = vpack.c.bf16 %v4350, %v4348
        %v4421 = vpack.c.bf16 %v4351, %v4349
        %v4422 = vpack.c.bf16 %v4354, %v4352
        %v4423 = vpack.c.bf16 %v4355, %v4353
        %v4424 = vpack.c.bf16 %v4358, %v4356
        %v4425 = vpack.c.bf16 %v4359, %v4357
        %v4426 = vpack.c.bf16 %v4362, %v4360
        %v4427 = vpack.c.bf16 %v4363, %v4361
        %v4428 = vpack.c.bf16 %v4366, %v4364
        %v4429 = vpack.c.bf16 %v4367, %v4365
        %v4430 = vpack.c.bf16 %v4370, %v4368
        %v4431 = vpack.c.bf16 %v4371, %v4369
        %v4432 = vpack.c.bf16 %v4374, %v4372
        %v4433 = vpack.c.bf16 %v4375, %v4373
        %v4434 = vpack.c.bf16 %v4378, %v4376
        %v4435 = vpack.c.bf16 %v4379, %v4377
        %v4436 = vpack.c.bf16 %v4382, %v4380
        %v4437 = vpack.c.bf16 %v4383, %v4381
        %v4438 = vpack.c.bf16 %v4386, %v4384
        %v4439 = vpack.c.bf16 %v4387, %v4385
        %v4440 = vpack.c.bf16 %v4390, %v4388
        %v4441 = vpack.c.bf16 %v4391, %v4389
        %v4442 = vpack.c.bf16 %v4394, %v4392
        %v4443 = vpack.c.bf16 %v4395, %v4393
        %v4444 = vld [vmem:[%s8] sm:$0xff]
        %v4445 = vld [vmem:[%s8 + $0x8] sm:$0xff]
        %v4446 = vld [vmem:[%s8 + $0x10] sm:$0xff]
        %v4447 = vld [vmem:[%s8 + $0x18] sm:$0xff]
        %v4448 = vld [vmem:[%s8 + $0x20] sm:$0xff]
        %v4449 = vld [vmem:[%s8 + $0x28] sm:$0xff]
        %v4450 = vld [vmem:[%s8 + $0x30] sm:$0xff]
        %v4451 = vld [vmem:[%s8 + $0x38] sm:$0xff]
        %v4452 = vld [vmem:[%s8 + $0x40] sm:$0xff]
        %v4453 = vld [vmem:[%s8 + $0x48] sm:$0xff]
        %v4454 = vld [vmem:[%s8 + $0x50] sm:$0xff]
        %v4455 = vld [vmem:[%s8 + $0x58] sm:$0xff]
        %v4456 = vld [vmem:[%s8 + $0x60] sm:$0xff]
        %v4457 = vld [vmem:[%s8 + $0x68] sm:$0xff]
        %v4458 = vld [vmem:[%s8 + $0x70] sm:$0xff]
        %v4459 = vld [vmem:[%s8 + $0x78] sm:$0xff]
        %4461 = vset.pattern.permute.xlu0 0
        %4462 = vperm.xlu0 %4461, %v4444
        %v4463 = vpop.permute.xlu0 %4462
        %4466 = vset.pattern.permute.xlu0 0
        %4467 = vperm.xlu0 %4466, %v4445
        %v4468 = vpop.permute.xlu0 %4467
        %4471 = vset.pattern.permute.xlu0 0
        %4472 = vperm.xlu0 %4471, %v4446
        %v4473 = vpop.permute.xlu0 %4472
        %4476 = vset.pattern.permute.xlu0 0
        %4477 = vperm.xlu0 %4476, %v4447
        %v4478 = vpop.permute.xlu0 %4477
        %4481 = vset.pattern.permute.xlu0 0
        %4482 = vperm.xlu0 %4481, %v4448
        %v4483 = vpop.permute.xlu0 %4482
        %4486 = vset.pattern.permute.xlu0 0
        %4487 = vperm.xlu0 %4486, %v4449
        %v4488 = vpop.permute.xlu0 %4487
        %4491 = vset.pattern.permute.xlu0 0
        %4492 = vperm.xlu0 %4491, %v4450
        %v4493 = vpop.permute.xlu0 %4492
        %4496 = vset.pattern.permute.xlu0 0
        %4497 = vperm.xlu0 %4496, %v4451
        %v4498 = vpop.permute.xlu0 %4497
        %4501 = vset.pattern.permute.xlu0 0
        %4502 = vperm.xlu0 %4501, %v4452
        %v4503 = vpop.permute.xlu0 %4502
        %4506 = vset.pattern.permute.xlu0 0
        %4507 = vperm.xlu0 %4506, %v4453
        %v4508 = vpop.permute.xlu0 %4507
        %4511 = vset.pattern.permute.xlu0 0
        %4512 = vperm.xlu0 %4511, %v4454
        %v4513 = vpop.permute.xlu0 %4512
        %4516 = vset.pattern.permute.xlu0 0
        %4517 = vperm.xlu0 %4516, %v4455
        %v4518 = vpop.permute.xlu0 %4517
        %4521 = vset.pattern.permute.xlu0 0
        %4522 = vperm.xlu0 %4521, %v4456
        %v4523 = vpop.permute.xlu0 %4522
        %4526 = vset.pattern.permute.xlu0 0
        %4527 = vperm.xlu0 %4526, %v4457
        %v4528 = vpop.permute.xlu0 %4527
        %4531 = vset.pattern.permute.xlu0 0
        %4532 = vperm.xlu0 %4531, %v4458
        %v4533 = vpop.permute.xlu0 %4532
        %4536 = vset.pattern.permute.xlu0 0
        %4537 = vperm.xlu0 %4536, %v4459
        %v4538 = vpop.permute.xlu0 %4537
        %v4556 = vunpack.c.l.b16 %v4396
        %v4557 = vunpack.c.h.b16 %v4396
        %v4558 = vunpack.c.l.b16 %v4397
        %v4559 = vunpack.c.h.b16 %v4397
        %v4560 = vunpack.c.l.b16 %v4398
        %v4561 = vunpack.c.h.b16 %v4398
        %v4562 = vunpack.c.l.b16 %v4399
        %v4563 = vunpack.c.h.b16 %v4399
        %v4564 = vunpack.c.l.b16 %v4400
        %v4565 = vunpack.c.h.b16 %v4400
        %v4566 = vunpack.c.l.b16 %v4401
        %v4567 = vunpack.c.h.b16 %v4401
        %v4568 = vunpack.c.l.b16 %v4402
        %v4569 = vunpack.c.h.b16 %v4402
        %v4570 = vunpack.c.l.b16 %v4403
        %v4571 = vunpack.c.h.b16 %v4403
        %v4572 = vunpack.c.l.b16 %v4404
        %v4573 = vunpack.c.h.b16 %v4404
        %v4574 = vunpack.c.l.b16 %v4405
        %v4575 = vunpack.c.h.b16 %v4405
        %v4576 = vunpack.c.l.b16 %v4406
        %v4577 = vunpack.c.h.b16 %v4406
        %v4578 = vunpack.c.l.b16 %v4407
        %v4579 = vunpack.c.h.b16 %v4407
        %v4580 = vunpack.c.l.b16 %v4408
        %v4581 = vunpack.c.h.b16 %v4408
        %v4582 = vunpack.c.l.b16 %v4409
        %v4583 = vunpack.c.h.b16 %v4409
        %v4584 = vunpack.c.l.b16 %v4410
        %v4585 = vunpack.c.h.b16 %v4410
        %v4586 = vunpack.c.l.b16 %v4411
        %v4587 = vunpack.c.h.b16 %v4411
        %v4588 = vpack.c.b16 %v4558, %v4556
        %v4589 = vpack.c.b16 %v4559, %v4557
        %v4590 = vpack.c.b16 %v4562, %v4560
        %v4591 = vpack.c.b16 %v4563, %v4561
        %v4592 = vpack.c.b16 %v4566, %v4564
        %v4593 = vpack.c.b16 %v4567, %v4565
        %v4594 = vpack.c.b16 %v4570, %v4568
        %v4595 = vpack.c.b16 %v4571, %v4569
        %v4596 = vpack.c.b16 %v4574, %v4572
        %v4597 = vpack.c.b16 %v4575, %v4573
        %v4598 = vpack.c.b16 %v4578, %v4576
        %v4599 = vpack.c.b16 %v4579, %v4577
        %v4600 = vpack.c.b16 %v4582, %v4580
        %v4601 = vpack.c.b16 %v4583, %v4581
        %v4602 = vpack.c.b16 %v4586, %v4584
        %v4603 = vpack.c.b16 %v4587, %v4585
        %4620 = vmatprep.subr.bf16.mxu0 %v4427
        %4621 = vmatpush1.bf16.msra.mxu0 %v4426
        %4622 = vmatprep.subr.bf16.mxu0 %v4425
        %4623 = vmatpush1.bf16.msra.mxu0 %v4424
        %4624 = vmatprep.subr.bf16.mxu0 %v4423
        %4625 = vmatpush1.bf16.msra.mxu0 %v4422
        %4626 = vmatprep.subr.bf16.mxu0 %v4421
        %4627 = vmatpush1.bf16.msra.mxu0 %v4420
        %4628 = vmatprep.subr.bf16.mxu0 %v4419
        %4629 = vmatpush1.bf16.msra.mxu0 %v4418
        %4630 = vmatprep.subr.bf16.mxu0 %v4417
        %4631 = vmatpush1.bf16.msra.mxu0 %v4416
        %4632 = vmatprep.subr.bf16.mxu0 %v4415
        %4633 = vmatpush1.bf16.msra.mxu0 %v4414
        %4634 = vmatprep.subr.bf16.mxu0 %v4413
        %4635 = vmatpush1.bf16.msra.mxu0 %v4412
        %4636 = vmatprep.subr.bf16.mxu0 %v4443
        %4637 = vmatpush2.bf16.msra.mxu0 %v4442
        %4638 = vmatprep.subr.bf16.mxu0 %v4441
        %4639 = vmatpush2.bf16.msra.mxu0 %v4440
        %4640 = vmatprep.subr.bf16.mxu0 %v4439
        %4641 = vmatpush2.bf16.msra.mxu0 %v4438
        %4642 = vmatprep.subr.bf16.mxu0 %v4437
        %4643 = vmatpush2.bf16.msra.mxu0 %v4436
        %4644 = vmatprep.subr.bf16.mxu0 %v4435
        %4645 = vmatpush2.bf16.msra.mxu0 %v4434
        %4646 = vmatprep.subr.bf16.mxu0 %v4433
        %4647 = vmatpush2.bf16.msra.mxu0 %v4432
        %4648 = vmatprep.subr.bf16.mxu0 %v4431
        %4649 = vmatpush2.bf16.msra.mxu0 %v4430
        %4650 = vmatprep.subr.bf16.mxu0 %v4429
        %4651 = vmatpush2.bf16.msra.mxu0 %v4428
        %4652 = vmatprep.mubr.bf16.mxu0 %v4589
        %4653 = vmatmul.mubr.bf16.gmra.mxu0 %v4588
        %v4654 = vpop.f32.mrf.mxu0
        %v4655 = vadd.f32 %v4463, %v4654
        %v4656 = vpop.f32.mrf.mxu0
        %v4657 = vadd.f32 %v4463, %v4656
        %v4658 = vpop.f32.mrf.mxu0
        %v4659 = vadd.f32 %v4468, %v4658
        %v4660 = vpop.f32.mrf.mxu0
        %v4661 = vadd.f32 %v4468, %v4660
        %4662 = vmatprep.mubr.bf16.mxu0 %v4591
        %4663 = vmatmul.mubr.bf16.gmra.mxu0 %v4590
        %v4664 = vpop.f32.mrf.mxu0
        %v4665 = vadd.f32 %v4473, %v4664
        %v4666 = vpop.f32.mrf.mxu0
        %v4667 = vadd.f32 %v4473, %v4666
        %v4668 = vpop.f32.mrf.mxu0
        %v4669 = vadd.f32 %v4478, %v4668
        %v4670 = vpop.f32.mrf.mxu0
        %v4671 = vadd.f32 %v4478, %v4670
        %4672 = vmatprep.mubr.bf16.mxu0 %v4593
        %4673 = vmatmul.mubr.bf16.gmra.mxu0 %v4592
        %v4674 = vpop.f32.mrf.mxu0
        %v4675 = vadd.f32 %v4483, %v4674
        %v4676 = vpop.f32.mrf.mxu0
        %v4677 = vadd.f32 %v4483, %v4676
        %v4678 = vpop.f32.mrf.mxu0
        %v4679 = vadd.f32 %v4488, %v4678
        %v4680 = vpop.f32.mrf.mxu0
        %v4681 = vadd.f32 %v4488, %v4680
        %4682 = vmatprep.mubr.bf16.mxu0 %v4595
        %4683 = vmatmul.mubr.bf16.gmra.mxu0 %v4594
        %v4684 = vpop.f32.mrf.mxu0
        %v4685 = vadd.f32 %v4493, %v4684
        %v4686 = vpop.f32.mrf.mxu0
        %v4687 = vadd.f32 %v4493, %v4686
        %v4688 = vpop.f32.mrf.mxu0
        %v4689 = vadd.f32 %v4498, %v4688
        %v4690 = vpop.f32.mrf.mxu0
        %v4691 = vadd.f32 %v4498, %v4690
        %4692 = vmatprep.mubr.bf16.mxu0 %v4597
        %4693 = vmatmul.mubr.bf16.gmra.mxu0 %v4596
        %v4694 = vpop.f32.mrf.mxu0
        %v4695 = vadd.f32 %v4503, %v4694
        %v4696 = vpop.f32.mrf.mxu0
        %v4697 = vadd.f32 %v4503, %v4696
        %v4698 = vpop.f32.mrf.mxu0
        %v4699 = vadd.f32 %v4508, %v4698
        %v4700 = vpop.f32.mrf.mxu0
        %v4701 = vadd.f32 %v4508, %v4700
        %4702 = vmatprep.mubr.bf16.mxu0 %v4599
        %4703 = vmatmul.mubr.bf16.gmra.mxu0 %v4598
        %v4704 = vpop.f32.mrf.mxu0
        %v4705 = vadd.f32 %v4513, %v4704
        %v4706 = vpop.f32.mrf.mxu0
        %v4707 = vadd.f32 %v4513, %v4706
        %v4708 = vpop.f32.mrf.mxu0
        %v4709 = vadd.f32 %v4518, %v4708
        %v4710 = vpop.f32.mrf.mxu0
        %v4711 = vadd.f32 %v4518, %v4710
        %4712 = vmatprep.mubr.bf16.mxu0 %v4601
        %4713 = vmatmul.mubr.bf16.gmra.mxu0 %v4600
        %v4714 = vpop.f32.mrf.mxu0
        %v4715 = vadd.f32 %v4523, %v4714
        %v4716 = vpop.f32.mrf.mxu0
        %v4717 = vadd.f32 %v4523, %v4716
        %v4718 = vpop.f32.mrf.mxu0
        %v4719 = vadd.f32 %v4528, %v4718
        %v4720 = vpop.f32.mrf.mxu0
        %v4721 = vadd.f32 %v4528, %v4720
        %4722 = vmatprep.mubr.bf16.mxu0 %v4603
        %4723 = vmatmul.mubr.bf16.gmra.mxu0 %v4602
        %v4724 = vpop.f32.mrf.mxu0
        %v4725 = vadd.f32 %v4533, %v4724
        %v4726 = vpop.f32.mrf.mxu0
        %v4727 = vadd.f32 %v4533, %v4726
        %v4728 = vpop.f32.mrf.mxu0
        %v4729 = vadd.f32 %v4538, %v4728
        %v4730 = vpop.f32.mrf.mxu0
        %v4731 = vadd.f32 %v4538, %v4730
        %4732 = vdwg.mxu0
        %v4733 = vmax.f32 %v4655, 0.0
        %v4734 = vmax.f32 %v4657, 0.0
        %v4735 = vmax.f32 %v4659, 0.0
        %v4736 = vmax.f32 %v4661, 0.0
        %v4737 = vmax.f32 %v4665, 0.0
        %v4738 = vmax.f32 %v4667, 0.0
        %v4739 = vmax.f32 %v4669, 0.0
        %v4740 = vmax.f32 %v4671, 0.0
        %v4741 = vmax.f32 %v4675, 0.0
        %v4742 = vmax.f32 %v4677, 0.0
        %v4743 = vmax.f32 %v4679, 0.0
        %v4744 = vmax.f32 %v4681, 0.0
        %v4745 = vmax.f32 %v4685, 0.0
        %v4746 = vmax.f32 %v4687, 0.0
        %v4747 = vmax.f32 %v4689, 0.0
        %v4748 = vmax.f32 %v4691, 0.0
        %v4749 = vmax.f32 %v4695, 0.0
        %v4750 = vmax.f32 %v4697, 0.0
        %v4751 = vmax.f32 %v4699, 0.0
        %v4752 = vmax.f32 %v4701, 0.0
        %v4753 = vmax.f32 %v4705, 0.0
        %v4754 = vmax.f32 %v4707, 0.0
        %v4755 = vmax.f32 %v4709, 0.0
        %v4756 = vmax.f32 %v4711, 0.0
        %v4757 = vmax.f32 %v4715, 0.0
        %v4758 = vmax.f32 %v4717, 0.0
        %v4759 = vmax.f32 %v4719, 0.0
        %v4760 = vmax.f32 %v4721, 0.0
        %v4761 = vmax.f32 %v4725, 0.0
        %v4762 = vmax.f32 %v4727, 0.0
        %v4763 = vmax.f32 %v4729, 0.0
        %v4764 = vmax.f32 %v4731, 0.0
        %v4765 = vld [vmem:[%s9] sm:$0xf]
        %v4766 = vld [vmem:[%s9 + $0x4] sm:$0xf]
        %v4767 = vld [vmem:[%s9 + $0x8] sm:$0xf]
        %v4768 = vld [vmem:[%s9 + $0xc] sm:$0xf]
        %v4769 = vld [vmem:[%s9 + $0x10] sm:$0xf]
        %v4770 = vld [vmem:[%s9 + $0x14] sm:$0xf]
        %v4771 = vld [vmem:[%s9 + $0x18] sm:$0xf]
        %v4772 = vld [vmem:[%s9 + $0x1c] sm:$0xf]
        %v4773 = vld [vmem:[%s9 + $0x20] sm:$0xf]
        %v4774 = vld [vmem:[%s9 + $0x24] sm:$0xf]
        %v4775 = vld [vmem:[%s9 + $0x28] sm:$0xf]
        %v4776 = vld [vmem:[%s9 + $0x2c] sm:$0xf]
        %v4777 = vld [vmem:[%s9 + $0x30] sm:$0xf]
        %v4778 = vld [vmem:[%s9 + $0x34] sm:$0xf]
        %v4779 = vld [vmem:[%s9 + $0x38] sm:$0xf]
        %v4780 = vld [vmem:[%s9 + $0x3c] sm:$0xf]
        %v4781 = vpack.c.bf16 %v4735, %v4733
        %v4782 = vpack.c.bf16 %v4736, %v4734
        %v4783 = vpack.c.bf16 %v4739, %v4737
        %v4784 = vpack.c.bf16 %v4740, %v4738
        %v4785 = vpack.c.bf16 %v4743, %v4741
        %v4786 = vpack.c.bf16 %v4744, %v4742
        %v4787 = vpack.c.bf16 %v4747, %v4745
        %v4788 = vpack.c.bf16 %v4748, %v4746
        %v4789 = vpack.c.bf16 %v4751, %v4749
        %v4790 = vpack.c.bf16 %v4752, %v4750
        %v4791 = vpack.c.bf16 %v4755, %v4753
        %v4792 = vpack.c.bf16 %v4756, %v4754
        %v4793 = vpack.c.bf16 %v4759, %v4757
        %v4794 = vpack.c.bf16 %v4760, %v4758
        %v4795 = vpack.c.bf16 %v4763, %v4761
        %v4796 = vpack.c.bf16 %v4764, %v4762
        %v4797 = vld [vmem:[%s10] sm:$0xff]
        %v4798 = vld [vmem:[%s10 + $0x8] sm:$0xff]
        %v4799 = vld [vmem:[%s10 + $0x10] sm:$0xff]
        %v4800 = vld [vmem:[%s10 + $0x18] sm:$0xff]
        %v4801 = vld [vmem:[%s10 + $0x20] sm:$0xff]
        %v4802 = vld [vmem:[%s10 + $0x28] sm:$0xff]
        %v4803 = vld [vmem:[%s10 + $0x30] sm:$0xff]
        %v4804 = vld [vmem:[%s10 + $0x38] sm:$0xff]
        %v4805 = vld [vmem:[%s10 + $0x40] sm:$0xff]
        %v4806 = vld [vmem:[%s10 + $0x48] sm:$0xff]
        %v4807 = vld [vmem:[%s10 + $0x50] sm:$0xff]
        %v4808 = vld [vmem:[%s10 + $0x58] sm:$0xff]
        %v4809 = vld [vmem:[%s10 + $0x60] sm:$0xff]
        %v4810 = vld [vmem:[%s10 + $0x68] sm:$0xff]
        %v4811 = vld [vmem:[%s10 + $0x70] sm:$0xff]
        %v4812 = vld [vmem:[%s10 + $0x78] sm:$0xff]
        %4814 = vset.pattern.permute.xlu0 0
        %4815 = vperm.xlu0 %4814, %v4797
        %v4816 = vpop.permute.xlu0 %4815
        %4819 = vset.pattern.permute.xlu0 0
        %4820 = vperm.xlu0 %4819, %v4798
        %v4821 = vpop.permute.xlu0 %4820
        %4824 = vset.pattern.permute.xlu0 0
        %4825 = vperm.xlu0 %4824, %v4799
        %v4826 = vpop.permute.xlu0 %4825
        %4829 = vset.pattern.permute.xlu0 0
        %4830 = vperm.xlu0 %4829, %v4800
        %v4831 = vpop.permute.xlu0 %4830
        %4834 = vset.pattern.permute.xlu0 0
        %4835 = vperm.xlu0 %4834, %v4801
        %v4836 = vpop.permute.xlu0 %4835
        %4839 = vset.pattern.permute.xlu0 0
        %4840 = vperm.xlu0 %4839, %v4802
        %v4841 = vpop.permute.xlu0 %4840
        %4844 = vset.pattern.permute.xlu0 0
        %4845 = vperm.xlu0 %4844, %v4803
        %v4846 = vpop.permute.xlu0 %4845
        %4849 = vset.pattern.permute.xlu0 0
        %4850 = vperm.xlu0 %4849, %v4804
        %v4851 = vpop.permute.xlu0 %4850
        %4854 = vset.pattern.permute.xlu0 0
        %4855 = vperm.xlu0 %4854, %v4805
        %v4856 = vpop.permute.xlu0 %4855
        %4859 = vset.pattern.permute.xlu0 0
        %4860 = vperm.xlu0 %4859, %v4806
        %v4861 = vpop.permute.xlu0 %4860
        %4864 = vset.pattern.permute.xlu0 0
        %4865 = vperm.xlu0 %4864, %v4807
        %v4866 = vpop.permute.xlu0 %4865
        %4869 = vset.pattern.permute.xlu0 0
        %4870 = vperm.xlu0 %4869, %v4808
        %v4871 = vpop.permute.xlu0 %4870
        %4874 = vset.pattern.permute.xlu0 0
        %4875 = vperm.xlu0 %4874, %v4809
        %v4876 = vpop.permute.xlu0 %4875
        %4879 = vset.pattern.permute.xlu0 0
        %4880 = vperm.xlu0 %4879, %v4810
        %v4881 = vpop.permute.xlu0 %4880
        %4884 = vset.pattern.permute.xlu0 0
        %4885 = vperm.xlu0 %4884, %v4811
        %v4886 = vpop.permute.xlu0 %4885
        %4889 = vset.pattern.permute.xlu0 0
        %4890 = vperm.xlu0 %4889, %v4812
        %v4891 = vpop.permute.xlu0 %4890
        %v4909 = vunpack.c.l.b16 %v4765
        %v4910 = vunpack.c.l.b16 %v4766
        %v4911 = vunpack.c.l.b16 %v4767
        %v4912 = vunpack.c.l.b16 %v4768
        %v4913 = vunpack.c.l.b16 %v4769
        %v4914 = vunpack.c.l.b16 %v4770
        %v4915 = vunpack.c.l.b16 %v4771
        %v4916 = vunpack.c.l.b16 %v4772
        %v4917 = vunpack.c.l.b16 %v4773
        %v4918 = vunpack.c.l.b16 %v4774
        %v4919 = vunpack.c.l.b16 %v4775
        %v4920 = vunpack.c.l.b16 %v4776
        %v4921 = vunpack.c.l.b16 %v4777
        %v4922 = vunpack.c.l.b16 %v4778
        %v4923 = vunpack.c.l.b16 %v4779
        %v4924 = vunpack.c.l.b16 %v4780
        %v4925 = vpack.c.b16 %v4910, %v4909
        %v4926 = vpack.c.b16 %v4912, %v4911
        %v4927 = vpack.c.b16 %v4914, %v4913
        %v4928 = vpack.c.b16 %v4916, %v4915
        %v4929 = vpack.c.b16 %v4918, %v4917
        %v4930 = vpack.c.b16 %v4920, %v4919
        %v4931 = vpack.c.b16 %v4922, %v4921
        %v4932 = vpack.c.b16 %v4924, %v4923
        %4941 = vmatprep.subr.bf16.mxu0 %v4796
        %4942 = vmatpush1.bf16.msra.mxu0 %v4795
        %4943 = vmatprep.subr.bf16.mxu0 %v4794
        %4944 = vmatpush1.bf16.msra.mxu0 %v4793
        %4945 = vmatprep.subr.bf16.mxu0 %v4792
        %4946 = vmatpush1.bf16.msra.mxu0 %v4791
        %4947 = vmatprep.subr.bf16.mxu0 %v4790
        %4948 = vmatpush1.bf16.msra.mxu0 %v4789
        %4949 = vmatprep.subr.bf16.mxu0 %v4788
        %4950 = vmatpush1.bf16.msra.mxu0 %v4787
        %4951 = vmatprep.subr.bf16.mxu0 %v4786
        %4952 = vmatpush1.bf16.msra.mxu0 %v4785
        %4953 = vmatprep.subr.bf16.mxu0 %v4784
        %4954 = vmatpush1.bf16.msra.mxu0 %v4783
        %4955 = vmatprep.subr.bf16.mxu0 %v4782
        %4956 = vmatpush1.bf16.msra.mxu0 %v4781
        %4957 = vmatprep.subr.bf16.mxu0 0
        %4958 = vmatpush2.bf16.msra.mxu0 0
        %4959 = vmatprep.subr.bf16.mxu0 0
        %4960 = vmatpush2.bf16.msra.mxu0 0
        %4961 = vmatprep.subr.bf16.mxu0 0
        %4962 = vmatpush2.bf16.msra.mxu0 0
        %4963 = vmatprep.subr.bf16.mxu0 0
        %4964 = vmatpush2.bf16.msra.mxu0 0
        %4965 = vmatprep.subr.bf16.mxu0 0
        %4966 = vmatpush2.bf16.msra.mxu0 0
        %4967 = vmatprep.subr.bf16.mxu0 0
        %4968 = vmatpush2.bf16.msra.mxu0 0
        %4969 = vmatprep.subr.bf16.mxu0 0
        %4970 = vmatpush2.bf16.msra.mxu0 0
        %4971 = vmatprep.subr.bf16.mxu0 0
        %4972 = vmatpush2.bf16.msra.mxu0 0
        %4973 = vmatprep.mubr.bf16.mxu0 0
        %4974 = vmatmul.mubr.bf16.gmra.mxu0 %v4925
        %v4975 = vpop.f32.mrf.mxu0
        %v4976 = vadd.f32 %v4816, %v4975
        %v4977 = vpop.f32.mrf.mxu0
        %v4978 = vadd.f32 %v4816, %v4977
        %v4979 = vpop.f32.mrf.mxu0
        %v4980 = vadd.f32 %v4821, %v4979
        %v4981 = vpop.f32.mrf.mxu0
        %v4982 = vadd.f32 %v4821, %v4981
        %4983 = vmatprep.mubr.bf16.mxu0 0
        %4984 = vmatmul.mubr.bf16.gmra.mxu0 %v4926
        %v4985 = vpop.f32.mrf.mxu0
        %v4986 = vadd.f32 %v4826, %v4985
        %v4987 = vpop.f32.mrf.mxu0
        %v4988 = vadd.f32 %v4826, %v4987
        %v4989 = vpop.f32.mrf.mxu0
        %v4990 = vadd.f32 %v4831, %v4989
        %v4991 = vpop.f32.mrf.mxu0
        %v4992 = vadd.f32 %v4831, %v4991
        %4993 = vmatprep.mubr.bf16.mxu0 0
        %4994 = vmatmul.mubr.bf16.gmra.mxu0 %v4927
        %v4995 = vpop.f32.mrf.mxu0
        %v4996 = vadd.f32 %v4836, %v4995
        %v4997 = vpop.f32.mrf.mxu0
        %v4998 = vadd.f32 %v4836, %v4997
        %v4999 = vpop.f32.mrf.mxu0
        %v5000 = vadd.f32 %v4841, %v4999
        %v5001 = vpop.f32.mrf.mxu0
        %v5002 = vadd.f32 %v4841, %v5001
        %5003 = vmatprep.mubr.bf16.mxu0 0
        %5004 = vmatmul.mubr.bf16.gmra.mxu0 %v4928
        %v5005 = vpop.f32.mrf.mxu0
        %v5006 = vadd.f32 %v4846, %v5005
        %v5007 = vpop.f32.mrf.mxu0
        %v5008 = vadd.f32 %v4846, %v5007
        %v5009 = vpop.f32.mrf.mxu0
        %v5010 = vadd.f32 %v4851, %v5009
        %v5011 = vpop.f32.mrf.mxu0
        %v5012 = vadd.f32 %v4851, %v5011
        %5013 = vmatprep.mubr.bf16.mxu0 0
        %5014 = vmatmul.mubr.bf16.gmra.mxu0 %v4929
        %v5015 = vpop.f32.mrf.mxu0
        %v5016 = vadd.f32 %v4856, %v5015
        %v5017 = vpop.f32.mrf.mxu0
        %v5018 = vadd.f32 %v4856, %v5017
        %v5019 = vpop.f32.mrf.mxu0
        %v5020 = vadd.f32 %v4861, %v5019
        %v5021 = vpop.f32.mrf.mxu0
        %v5022 = vadd.f32 %v4861, %v5021
        %5023 = vmatprep.mubr.bf16.mxu0 0
        %5024 = vmatmul.mubr.bf16.gmra.mxu0 %v4930
        %v5025 = vpop.f32.mrf.mxu0
        %v5026 = vadd.f32 %v4866, %v5025
        %v5027 = vpop.f32.mrf.mxu0
        %v5028 = vadd.f32 %v4866, %v5027
        %v5029 = vpop.f32.mrf.mxu0
        %v5030 = vadd.f32 %v4871, %v5029
        %v5031 = vpop.f32.mrf.mxu0
        %v5032 = vadd.f32 %v4871, %v5031
        %5033 = vmatprep.mubr.bf16.mxu0 0
        %5034 = vmatmul.mubr.bf16.gmra.mxu0 %v4931
        %v5035 = vpop.f32.mrf.mxu0
        %v5036 = vadd.f32 %v4876, %v5035
        %v5037 = vpop.f32.mrf.mxu0
        %v5038 = vadd.f32 %v4876, %v5037
        %v5039 = vpop.f32.mrf.mxu0
        %v5040 = vadd.f32 %v4881, %v5039
        %v5041 = vpop.f32.mrf.mxu0
        %v5042 = vadd.f32 %v4881, %v5041
        %5043 = vmatprep.mubr.bf16.mxu0 0
        %5044 = vmatmul.mubr.bf16.gmra.mxu0 %v4932
        %v5045 = vpop.f32.mrf.mxu0
        %v5046 = vadd.f32 %v4886, %v5045
        %v5047 = vpop.f32.mrf.mxu0
        %v5048 = vadd.f32 %v4886, %v5047
        %v5049 = vpop.f32.mrf.mxu0
        %v5050 = vadd.f32 %v4891, %v5049
        %v5051 = vpop.f32.mrf.mxu0
        %v5052 = vadd.f32 %v4891, %v5051
        %5053 = vdwg.mxu0
        %v5054 = vmax.f32 %v4976, 0.0
        %v5055 = vmax.f32 %v4978, 0.0
        %v5056 = vmax.f32 %v4980, 0.0
        %v5057 = vmax.f32 %v4982, 0.0
        %v5058 = vmax.f32 %v4986, 0.0
        %v5059 = vmax.f32 %v4988, 0.0
        %v5060 = vmax.f32 %v4990, 0.0
        %v5061 = vmax.f32 %v4992, 0.0
        %v5062 = vmax.f32 %v4996, 0.0
        %v5063 = vmax.f32 %v4998, 0.0
        %v5064 = vmax.f32 %v5000, 0.0
        %v5065 = vmax.f32 %v5002, 0.0
        %v5066 = vmax.f32 %v5006, 0.0
        %v5067 = vmax.f32 %v5008, 0.0
        %v5068 = vmax.f32 %v5010, 0.0
        %v5069 = vmax.f32 %v5012, 0.0
        %v5070 = vmax.f32 %v5016, 0.0
        %v5071 = vmax.f32 %v5018, 0.0
        %v5072 = vmax.f32 %v5020, 0.0
        %v5073 = vmax.f32 %v5022, 0.0
        %v5074 = vmax.f32 %v5026, 0.0
        %v5075 = vmax.f32 %v5028, 0.0
        %v5076 = vmax.f32 %v5030, 0.0
        %v5077 = vmax.f32 %v5032, 0.0
        %v5078 = vmax.f32 %v5036, 0.0
        %v5079 = vmax.f32 %v5038, 0.0
        %v5080 = vmax.f32 %v5040, 0.0
        %v5081 = vmax.f32 %v5042, 0.0
        %v5082 = vmax.f32 %v5046, 0.0
        %v5083 = vmax.f32 %v5048, 0.0
        %v5084 = vmax.f32 %v5050, 0.0
        %v5085 = vmax.f32 %v5052, 0.0
        %v5086 = vld [vmem:[%s11] sm:$0xf]
        %v5087 = vld [vmem:[%s11 + $0x4] sm:$0xf]
        %v5088 = vld [vmem:[%s11 + $0x8] sm:$0xf]
        %v5089 = vld [vmem:[%s11 + $0xc] sm:$0xf]
        %v5090 = vld [vmem:[%s11 + $0x10] sm:$0xf]
        %v5091 = vld [vmem:[%s11 + $0x14] sm:$0xf]
        %v5092 = vld [vmem:[%s11 + $0x18] sm:$0xf]
        %v5093 = vld [vmem:[%s11 + $0x1c] sm:$0xf]
        %v5094 = vld [vmem:[%s11 + $0x20] sm:$0xf]
        %v5095 = vld [vmem:[%s11 + $0x24] sm:$0xf]
        %v5096 = vld [vmem:[%s11 + $0x28] sm:$0xf]
        %v5097 = vld [vmem:[%s11 + $0x2c] sm:$0xf]
        %v5098 = vld [vmem:[%s11 + $0x30] sm:$0xf]
        %v5099 = vld [vmem:[%s11 + $0x34] sm:$0xf]
        %v5100 = vld [vmem:[%s11 + $0x38] sm:$0xf]
        %v5101 = vld [vmem:[%s11 + $0x3c] sm:$0xf]
        %v5102 = vpack.c.bf16 %v5056, %v5054
        %v5103 = vpack.c.bf16 %v5057, %v5055
        %v5104 = vpack.c.bf16 %v5060, %v5058
        %v5105 = vpack.c.bf16 %v5061, %v5059
        %v5106 = vpack.c.bf16 %v5064, %v5062
        %v5107 = vpack.c.bf16 %v5065, %v5063
        %v5108 = vpack.c.bf16 %v5068, %v5066
        %v5109 = vpack.c.bf16 %v5069, %v5067
        %v5110 = vpack.c.bf16 %v5072, %v5070
        %v5111 = vpack.c.bf16 %v5073, %v5071
        %v5112 = vpack.c.bf16 %v5076, %v5074
        %v5113 = vpack.c.bf16 %v5077, %v5075
        %v5114 = vpack.c.bf16 %v5080, %v5078
        %v5115 = vpack.c.bf16 %v5081, %v5079
        %v5116 = vpack.c.bf16 %v5084, %v5082
        %v5117 = vpack.c.bf16 %v5085, %v5083
        %v5118 = vld [vmem:[%s12] sm:$0xff]
        %v5119 = vld [vmem:[%s12 + $0x8] sm:$0xff]
        %v5120 = vld [vmem:[%s12 + $0x10] sm:$0xff]
        %v5121 = vld [vmem:[%s12 + $0x18] sm:$0xff]
        %v5122 = vld [vmem:[%s12 + $0x20] sm:$0xff]
        %v5123 = vld [vmem:[%s12 + $0x28] sm:$0xff]
        %v5124 = vld [vmem:[%s12 + $0x30] sm:$0xff]
        %v5125 = vld [vmem:[%s12 + $0x38] sm:$0xff]
        %v5126 = vld [vmem:[%s12 + $0x40] sm:$0xff]
        %v5127 = vld [vmem:[%s12 + $0x48] sm:$0xff]
        %v5128 = vld [vmem:[%s12 + $0x50] sm:$0xff]
        %v5129 = vld [vmem:[%s12 + $0x58] sm:$0xff]
        %v5130 = vld [vmem:[%s12 + $0x60] sm:$0xff]
        %v5131 = vld [vmem:[%s12 + $0x68] sm:$0xff]
        %v5132 = vld [vmem:[%s12 + $0x70] sm:$0xff]
        %v5133 = vld [vmem:[%s12 + $0x78] sm:$0xff]
        %5135 = vset.pattern.permute.xlu0 0
        %5136 = vperm.xlu0 %5135, %v5118
        %v5137 = vpop.permute.xlu0 %5136
        %5140 = vset.pattern.permute.xlu0 0
        %5141 = vperm.xlu0 %5140, %v5119
        %v5142 = vpop.permute.xlu0 %5141
        %5145 = vset.pattern.permute.xlu0 0
        %5146 = vperm.xlu0 %5145, %v5120
        %v5147 = vpop.permute.xlu0 %5146
        %5150 = vset.pattern.permute.xlu0 0
        %5151 = vperm.xlu0 %5150, %v5121
        %v5152 = vpop.permute.xlu0 %5151
        %5155 = vset.pattern.permute.xlu0 0
        %5156 = vperm.xlu0 %5155, %v5122
        %v5157 = vpop.permute.xlu0 %5156
        %5160 = vset.pattern.permute.xlu0 0
        %5161 = vperm.xlu0 %5160, %v5123
        %v5162 = vpop.permute.xlu0 %5161
        %5165 = vset.pattern.permute.xlu0 0
        %5166 = vperm.xlu0 %5165, %v5124
        %v5167 = vpop.permute.xlu0 %5166
        %5170 = vset.pattern.permute.xlu0 0
        %5171 = vperm.xlu0 %5170, %v5125
        %v5172 = vpop.permute.xlu0 %5171
        %5175 = vset.pattern.permute.xlu0 0
        %5176 = vperm.xlu0 %5175, %v5126
        %v5177 = vpop.permute.xlu0 %5176
        %5180 = vset.pattern.permute.xlu0 0
        %5181 = vperm.xlu0 %5180, %v5127
        %v5182 = vpop.permute.xlu0 %5181
        %5185 = vset.pattern.permute.xlu0 0
        %5186 = vperm.xlu0 %5185, %v5128
        %v5187 = vpop.permute.xlu0 %5186
        %5190 = vset.pattern.permute.xlu0 0
        %5191 = vperm.xlu0 %5190, %v5129
        %v5192 = vpop.permute.xlu0 %5191
        %5195 = vset.pattern.permute.xlu0 0
        %5196 = vperm.xlu0 %5195, %v5130
        %v5197 = vpop.permute.xlu0 %5196
        %5200 = vset.pattern.permute.xlu0 0
        %5201 = vperm.xlu0 %5200, %v5131
        %v5202 = vpop.permute.xlu0 %5201
        %5205 = vset.pattern.permute.xlu0 0
        %5206 = vperm.xlu0 %5205, %v5132
        %v5207 = vpop.permute.xlu0 %5206
        %5210 = vset.pattern.permute.xlu0 0
        %5211 = vperm.xlu0 %5210, %v5133
        %v5212 = vpop.permute.xlu0 %5211
        %v5230 = vunpack.c.l.b16 %v5086
        %v5231 = vunpack.c.l.b16 %v5087
        %v5232 = vunpack.c.l.b16 %v5088
        %v5233 = vunpack.c.l.b16 %v5089
        %v5234 = vunpack.c.l.b16 %v5090
        %v5235 = vunpack.c.l.b16 %v5091
        %v5236 = vunpack.c.l.b16 %v5092
        %v5237 = vunpack.c.l.b16 %v5093
        %v5238 = vunpack.c.l.b16 %v5094
        %v5239 = vunpack.c.l.b16 %v5095
        %v5240 = vunpack.c.l.b16 %v5096
        %v5241 = vunpack.c.l.b16 %v5097
        %v5242 = vunpack.c.l.b16 %v5098
        %v5243 = vunpack.c.l.b16 %v5099
        %v5244 = vunpack.c.l.b16 %v5100
        %v5245 = vunpack.c.l.b16 %v5101
        %v5246 = vpack.c.b16 %v5231, %v5230
        %v5247 = vpack.c.b16 %v5233, %v5232
        %v5248 = vpack.c.b16 %v5235, %v5234
        %v5249 = vpack.c.b16 %v5237, %v5236
        %v5250 = vpack.c.b16 %v5239, %v5238
        %v5251 = vpack.c.b16 %v5241, %v5240
        %v5252 = vpack.c.b16 %v5243, %v5242
        %v5253 = vpack.c.b16 %v5245, %v5244
        %5262 = vmatprep.subr.bf16.mxu0 %v5117
        %5263 = vmatpush1.bf16.msra.mxu0 %v5116
        %5264 = vmatprep.subr.bf16.mxu0 %v5115
        %5265 = vmatpush1.bf16.msra.mxu0 %v5114
        %5266 = vmatprep.subr.bf16.mxu0 %v5113
        %5267 = vmatpush1.bf16.msra.mxu0 %v5112
        %5268 = vmatprep.subr.bf16.mxu0 %v5111
        %5269 = vmatpush1.bf16.msra.mxu0 %v5110
        %5270 = vmatprep.subr.bf16.mxu0 %v5109
        %5271 = vmatpush1.bf16.msra.mxu0 %v5108
        %5272 = vmatprep.subr.bf16.mxu0 %v5107
        %5273 = vmatpush1.bf16.msra.mxu0 %v5106
        %5274 = vmatprep.subr.bf16.mxu0 %v5105
        %5275 = vmatpush1.bf16.msra.mxu0 %v5104
        %5276 = vmatprep.subr.bf16.mxu0 %v5103
        %5277 = vmatpush1.bf16.msra.mxu0 %v5102
        %5278 = vmatprep.subr.bf16.mxu0 0
        %5279 = vmatpush2.bf16.msra.mxu0 0
        %5280 = vmatprep.subr.bf16.mxu0 0
        %5281 = vmatpush2.bf16.msra.mxu0 0
        %5282 = vmatprep.subr.bf16.mxu0 0
        %5283 = vmatpush2.bf16.msra.mxu0 0
        %5284 = vmatprep.subr.bf16.mxu0 0
        %5285 = vmatpush2.bf16.msra.mxu0 0
        %5286 = vmatprep.subr.bf16.mxu0 0
        %5287 = vmatpush2.bf16.msra.mxu0 0
        %5288 = vmatprep.subr.bf16.mxu0 0
        %5289 = vmatpush2.bf16.msra.mxu0 0
        %5290 = vmatprep.subr.bf16.mxu0 0
        %5291 = vmatpush2.bf16.msra.mxu0 0
        %5292 = vmatprep.subr.bf16.mxu0 0
        %5293 = vmatpush2.bf16.msra.mxu0 0
        %5294 = vmatprep.mubr.bf16.mxu0 0
        %5295 = vmatmul.mubr.bf16.gmra.mxu0 %v5246
        %v5296 = vpop.f32.mrf.mxu0
        %v5297 = vadd.f32 %v5137, %v5296
        %v5298 = vpop.f32.mrf.mxu0
        %v5299 = vadd.f32 %v5137, %v5298
        %v5300 = vpop.f32.mrf.mxu0
        %v5301 = vadd.f32 %v5142, %v5300
        %v5302 = vpop.f32.mrf.mxu0
        %v5303 = vadd.f32 %v5142, %v5302
        %5304 = vmatprep.mubr.bf16.mxu0 0
        %5305 = vmatmul.mubr.bf16.gmra.mxu0 %v5247
        %v5306 = vpop.f32.mrf.mxu0
        %v5307 = vadd.f32 %v5147, %v5306
        %v5308 = vpop.f32.mrf.mxu0
        %v5309 = vadd.f32 %v5147, %v5308
        %v5310 = vpop.f32.mrf.mxu0
        %v5311 = vadd.f32 %v5152, %v5310
        %v5312 = vpop.f32.mrf.mxu0
        %v5313 = vadd.f32 %v5152, %v5312
        %5314 = vmatprep.mubr.bf16.mxu0 0
        %5315 = vmatmul.mubr.bf16.gmra.mxu0 %v5248
        %v5316 = vpop.f32.mrf.mxu0
        %v5317 = vadd.f32 %v5157, %v5316
        %v5318 = vpop.f32.mrf.mxu0
        %v5319 = vadd.f32 %v5157, %v5318
        %v5320 = vpop.f32.mrf.mxu0
        %v5321 = vadd.f32 %v5162, %v5320
        %v5322 = vpop.f32.mrf.mxu0
        %v5323 = vadd.f32 %v5162, %v5322
        %5324 = vmatprep.mubr.bf16.mxu0 0
        %5325 = vmatmul.mubr.bf16.gmra.mxu0 %v5249
        %v5326 = vpop.f32.mrf.mxu0
        %v5327 = vadd.f32 %v5167, %v5326
        %v5328 = vpop.f32.mrf.mxu0
        %v5329 = vadd.f32 %v5167, %v5328
        %v5330 = vpop.f32.mrf.mxu0
        %v5331 = vadd.f32 %v5172, %v5330
        %v5332 = vpop.f32.mrf.mxu0
        %v5333 = vadd.f32 %v5172, %v5332
        %5334 = vmatprep.mubr.bf16.mxu0 0
        %5335 = vmatmul.mubr.bf16.gmra.mxu0 %v5250
        %v5336 = vpop.f32.mrf.mxu0
        %v5337 = vadd.f32 %v5177, %v5336
        %v5338 = vpop.f32.mrf.mxu0
        %v5339 = vadd.f32 %v5177, %v5338
        %v5340 = vpop.f32.mrf.mxu0
        %v5341 = vadd.f32 %v5182, %v5340
        %v5342 = vpop.f32.mrf.mxu0
        %v5343 = vadd.f32 %v5182, %v5342
        %5344 = vmatprep.mubr.bf16.mxu0 0
        %5345 = vmatmul.mubr.bf16.gmra.mxu0 %v5251
        %v5346 = vpop.f32.mrf.mxu0
        %v5347 = vadd.f32 %v5187, %v5346
        %v5348 = vpop.f32.mrf.mxu0
        %v5349 = vadd.f32 %v5187, %v5348
        %v5350 = vpop.f32.mrf.mxu0
        %v5351 = vadd.f32 %v5192, %v5350
        %v5352 = vpop.f32.mrf.mxu0
        %v5353 = vadd.f32 %v5192, %v5352
        %5354 = vmatprep.mubr.bf16.mxu0 0
        %5355 = vmatmul.mubr.bf16.gmra.mxu0 %v5252
        %v5356 = vpop.f32.mrf.mxu0
        %v5357 = vadd.f32 %v5197, %v5356
        %v5358 = vpop.f32.mrf.mxu0
        %v5359 = vadd.f32 %v5197, %v5358
        %v5360 = vpop.f32.mrf.mxu0
        %v5361 = vadd.f32 %v5202, %v5360
        %v5362 = vpop.f32.mrf.mxu0
        %v5363 = vadd.f32 %v5202, %v5362
        %5364 = vmatprep.mubr.bf16.mxu0 0
        %5365 = vmatmul.mubr.bf16.gmra.mxu0 %v5253
        %v5366 = vpop.f32.mrf.mxu0
        %v5367 = vadd.f32 %v5207, %v5366
        %v5368 = vpop.f32.mrf.mxu0
        %v5369 = vadd.f32 %v5207, %v5368
        %v5370 = vpop.f32.mrf.mxu0
        %v5371 = vadd.f32 %v5212, %v5370
        %v5372 = vpop.f32.mrf.mxu0
        %v5373 = vadd.f32 %v5212, %v5372
        %5374 = vdwg.mxu0
        %v5375 = vmax.f32 %v5297, 0.0
        %v5376 = vmax.f32 %v5299, 0.0
        %v5377 = vmax.f32 %v5301, 0.0
        %v5378 = vmax.f32 %v5303, 0.0
        %v5379 = vmax.f32 %v5307, 0.0
        %v5380 = vmax.f32 %v5309, 0.0
        %v5381 = vmax.f32 %v5311, 0.0
        %v5382 = vmax.f32 %v5313, 0.0
        %v5383 = vmax.f32 %v5317, 0.0
        %v5384 = vmax.f32 %v5319, 0.0
        %v5385 = vmax.f32 %v5321, 0.0
        %v5386 = vmax.f32 %v5323, 0.0
        %v5387 = vmax.f32 %v5327, 0.0
        %v5388 = vmax.f32 %v5329, 0.0
        %v5389 = vmax.f32 %v5331, 0.0
        %v5390 = vmax.f32 %v5333, 0.0
        %v5391 = vmax.f32 %v5337, 0.0
        %v5392 = vmax.f32 %v5339, 0.0
        %v5393 = vmax.f32 %v5341, 0.0
        %v5394 = vmax.f32 %v5343, 0.0
        %v5395 = vmax.f32 %v5347, 0.0
        %v5396 = vmax.f32 %v5349, 0.0
        %v5397 = vmax.f32 %v5351, 0.0
        %v5398 = vmax.f32 %v5353, 0.0
        %v5399 = vmax.f32 %v5357, 0.0
        %v5400 = vmax.f32 %v5359, 0.0
        %v5401 = vmax.f32 %v5361, 0.0
        %v5402 = vmax.f32 %v5363, 0.0
        %v5403 = vmax.f32 %v5367, 0.0
        %v5404 = vmax.f32 %v5369, 0.0
        %v5405 = vmax.f32 %v5371, 0.0
        %v5406 = vmax.f32 %v5373, 0.0
        %v5407 = vld [vmem:[%s13] sm:$0xff]
        %v5408 = vld [vmem:[%s13 + $0x8] sm:$0xff]
        %v5409 = vld [vmem:[%s13 + $0x10] sm:$0xff]
        %v5410 = vld [vmem:[%s13 + $0x18] sm:$0xff]
        %v5411 = vld [vmem:[%s13 + $0x20] sm:$0xff]
        %v5412 = vld [vmem:[%s13 + $0x28] sm:$0xff]
        %v5413 = vld [vmem:[%s13 + $0x30] sm:$0xff]
        %v5414 = vld [vmem:[%s13 + $0x38] sm:$0xff]
        %v5415 = vld [vmem:[%s13 + $0x40] sm:$0xff]
        %v5416 = vld [vmem:[%s13 + $0x48] sm:$0xff]
        %v5417 = vld [vmem:[%s13 + $0x50] sm:$0xff]
        %v5418 = vld [vmem:[%s13 + $0x58] sm:$0xff]
        %v5419 = vld [vmem:[%s13 + $0x60] sm:$0xff]
        %v5420 = vld [vmem:[%s13 + $0x68] sm:$0xff]
        %v5421 = vld [vmem:[%s13 + $0x70] sm:$0xff]
        %v5422 = vld [vmem:[%s13 + $0x78] sm:$0xff]
        %5424 = vset.pattern.permute.xlu0 0
        %5425 = vperm.xlu0 %5424, %v5407
        %v5426 = vpop.permute.xlu0 %5425
        %5429 = vset.pattern.permute.xlu0 0
        %5430 = vperm.xlu0 %5429, %v5408
        %v5431 = vpop.permute.xlu0 %5430
        %5434 = vset.pattern.permute.xlu0 0
        %5435 = vperm.xlu0 %5434, %v5409
        %v5436 = vpop.permute.xlu0 %5435
        %5439 = vset.pattern.permute.xlu0 0
        %5440 = vperm.xlu0 %5439, %v5410
        %v5441 = vpop.permute.xlu0 %5440
        %5444 = vset.pattern.permute.xlu0 0
        %5445 = vperm.xlu0 %5444, %v5411
        %v5446 = vpop.permute.xlu0 %5445
        %5449 = vset.pattern.permute.xlu0 0
        %5450 = vperm.xlu0 %5449, %v5412
        %v5451 = vpop.permute.xlu0 %5450
        %5454 = vset.pattern.permute.xlu0 0
        %5455 = vperm.xlu0 %5454, %v5413
        %v5456 = vpop.permute.xlu0 %5455
        %5459 = vset.pattern.permute.xlu0 0
        %5460 = vperm.xlu0 %5459, %v5414
        %v5461 = vpop.permute.xlu0 %5460
        %5464 = vset.pattern.permute.xlu0 0
        %5465 = vperm.xlu0 %5464, %v5415
        %v5466 = vpop.permute.xlu0 %5465
        %5469 = vset.pattern.permute.xlu0 0
        %5470 = vperm.xlu0 %5469, %v5416
        %v5471 = vpop.permute.xlu0 %5470
        %5474 = vset.pattern.permute.xlu0 0
        %5475 = vperm.xlu0 %5474, %v5417
        %v5476 = vpop.permute.xlu0 %5475
        %5479 = vset.pattern.permute.xlu0 0
        %5480 = vperm.xlu0 %5479, %v5418
        %v5481 = vpop.permute.xlu0 %5480
        %5484 = vset.pattern.permute.xlu0 0
        %5485 = vperm.xlu0 %5484, %v5419
        %v5486 = vpop.permute.xlu0 %5485
        %5489 = vset.pattern.permute.xlu0 0
        %5490 = vperm.xlu0 %5489, %v5420
        %v5491 = vpop.permute.xlu0 %5490
        %5494 = vset.pattern.permute.xlu0 0
        %5495 = vperm.xlu0 %5494, %v5421
        %v5496 = vpop.permute.xlu0 %5495
        %5499 = vset.pattern.permute.xlu0 0
        %5500 = vperm.xlu0 %5499, %v5422
        %v5501 = vpop.permute.xlu0 %5500
        %v5503 = vmul.f32 %v5375, %v5426
        %v5504 = vmul.f32 %v5376, %v5426
        %v5505 = vmul.f32 %v5377, %v5431
        %v5506 = vmul.f32 %v5378, %v5431
        %v5507 = vmul.f32 %v5379, %v5436
        %v5508 = vmul.f32 %v5380, %v5436
        %v5509 = vmul.f32 %v5381, %v5441
        %v5510 = vmul.f32 %v5382, %v5441
        %v5511 = vmul.f32 %v5383, %v5446
        %v5512 = vmul.f32 %v5384, %v5446
        %v5513 = vmul.f32 %v5385, %v5451
        %v5514 = vmul.f32 %v5386, %v5451
        %v5515 = vmul.f32 %v5387, %v5456
        %v5516 = vmul.f32 %v5388, %v5456
        %v5517 = vmul.f32 %v5389, %v5461
        %v5518 = vmul.f32 %v5390, %v5461
        %v5519 = vmul.f32 %v5391, %v5466
        %v5520 = vmul.f32 %v5392, %v5466
        %v5521 = vmul.f32 %v5393, %v5471
        %v5522 = vmul.f32 %v5394, %v5471
        %v5523 = vmul.f32 %v5395, %v5476
        %v5524 = vmul.f32 %v5396, %v5476
        %v5525 = vmul.f32 %v5397, %v5481
        %v5526 = vmul.f32 %v5398, %v5481
        %v5527 = vmul.f32 %v5399, %v5486
        %v5528 = vmul.f32 %v5400, %v5486
        %v5529 = vmul.f32 %v5401, %v5491
        %v5530 = vmul.f32 %v5402, %v5491
        %v5531 = vmul.f32 %v5403, %v5496
        %v5532 = vmul.f32 %v5404, %v5496
        %v5533 = vmul.f32 %v5405, %v5501
        %v5534 = vmul.f32 %v5406, %v5501
        %v5535 = vadd.f32 %v5503, %v5505
        %v5536 = vadd.f32 %v5535, %v5507
        %v5537 = vadd.f32 %v5536, %v5509
        %v5538 = vadd.f32 %v5537, %v5511
        %v5539 = vadd.f32 %v5538, %v5513
        %v5540 = vadd.f32 %v5539, %v5515
        %v5541 = vadd.f32 %v5540, %v5517
        %v5542 = vadd.f32 %v5541, %v5519
        %v5543 = vadd.f32 %v5542, %v5521
        %v5544 = vadd.f32 %v5543, %v5523
        %v5545 = vadd.f32 %v5544, %v5525
        %v5546 = vadd.f32 %v5545, %v5527
        %v5547 = vadd.f32 %v5546, %v5529
        %v5548 = vadd.f32 %v5547, %v5531
        %v5549 = vadd.f32 %v5548, %v5533
        %v5550 = vrot.slane %v5549, 4
        %v5551 = vadd.f32 %v5549, %v5550
        %v5552 = vrot.slane %v5551, 2
        %v5553 = vadd.f32 %v5551, %v5552
        %v5554 = vrot.slane %v5553, 1
        %v5555 = vadd.f32 %v5553, %v5554
        %v5556 = vadd.f32 %v5504, %v5506
        %v5557 = vadd.f32 %v5556, %v5508
        %v5558 = vadd.f32 %v5557, %v5510
        %v5559 = vadd.f32 %v5558, %v5512
        %v5560 = vadd.f32 %v5559, %v5514
        %v5561 = vadd.f32 %v5560, %v5516
        %v5562 = vadd.f32 %v5561, %v5518
        %v5563 = vadd.f32 %v5562, %v5520
        %v5564 = vadd.f32 %v5563, %v5522
        %v5565 = vadd.f32 %v5564, %v5524
        %v5566 = vadd.f32 %v5565, %v5526
        %v5567 = vadd.f32 %v5566, %v5528
        %v5568 = vadd.f32 %v5567, %v5530
        %v5569 = vadd.f32 %v5568, %v5532
        %v5570 = vadd.f32 %v5569, %v5534
        %v5571 = vrot.slane %v5570, 4
        %v5572 = vadd.f32 %v5570, %v5571
        %v5573 = vrot.slane %v5572, 2
        %v5574 = vadd.f32 %v5572, %v5573
        %v5575 = vrot.slane %v5574, 1
        %v5576 = vadd.f32 %v5574, %v5575
        %v5577 = vld [vmem:[#allocation2] sm:$0x1]
        %5579 = vset.pattern.permute.xlu0 0
        %5580 = vperm.xlu0 %5579, %v5577
        %v5581 = vpop.permute.xlu0 %5580
        %v5583 = vlaneseq
        %v5584 = vshrl.u32 %v5583, 7
        %v5585 = vsub.s32 0, %v5584
        %v5586 = vrot.slane %v5581, %v5585
        %v5587 = vadd.f32 %v5555, %v5586
        %v5588 = vadd.f32 %v5576, %v5586
        %v5589 = vxor.u32 %v5587, 2147483648
        %v5590 = vxor.u32 %v5588, 2147483648
        %v5591 = vmul.f32 %v5589, 1.442695
        %v5592 = vpow.pop %v5591
        %v5593 = vmul.f32 %v5590, 1.442695
        %v5594 = vpow.pop %v5593
        %v5595 = vadd.f32 %v5592, 1.0
        %v5596 = vadd.f32 %v5594, 1.0
        %v5597 = vrcp.pop %v5595
        %v5598 = vmul.f32 1.0, %v5597
        %v5599 = vrcp.pop %v5596
        %v5600 = vmul.f32 1.0, %v5599
        %v5603 = vcombine.low %v5598, %v5600
        %v5605 = vunpack.c.l.s4 1966171168
        %v5606 = vunpack.c.0.s8 %v5605
        %v5607 = vlaneseq
        %v5608 = vshrl.u32 %v5607, 7
        %v5609 = vsub.s32 %v5606, %v5608
        %v5610 = vrot.slane %v5603, %v5609
        %v5612 = vunpack.c.l.s4 1966171168
        %v5613 = vunpack.c.0.s8 %v5612
        %v5614 = vlaneseq
        %v5615 = vshrl.u32 %v5614, 7
        %v5616 = vsub.s32 %v5613, %v5615
        %v5617 = vrot.slane %v5610, %v5616
        %v5619 = vlaneseq
        %vm5620 = vcmp.ge.s32.totalorder %v5619, 0
        %vm5621 = vcmp.lt.s32.totalorder %v5619, 256
        %vm5622 = vmand %vm5620, %vm5621
        %5623 = vst.msk [vmem:[%s566] sm:$0x3] %vm5622, %v5617
        %s5624 = sand.u32 %s359, 1
        %s5625 = scalar_lea.sflag [#allocation5], %s5624
        %s5626 = sand.u32 %s359, 1
        %s5627 = smul.addr %s5626, 2
        %s5628 = scalar_lea.vmem [#allocation4], %s5627
        // Predicated region
        $region119: #{tpu_custom_call.1} parent=113 // pred_check
          %p5629 = pneg %p369
        $region120: #{tpu_custom_call.1} parent=113 // pred_check_branch
          %5631 = sbr.rel (%p5629) target = $region122
        $region121: #{tpu_custom_call.1} parent=113 // pred_region
          %s5632 = smul.u32 2, %s31
          %s5634 = ssub.s32 32, 32
          %5635 = vsyncadd %s5625, %s5634
          %s5636 = smul.addr %s5632, 16
          %s5637 = scalar_lea.hbm %s15, %s5636
          %s5639 = sshll.u32 %s5628, 4
          %s5640 = int_to_ptr.vmem [resolvable:$true] %s5639
          %5642 = dma.vmem_to_hbm [thread:$0]  %s5640, 32, %s5637, %s5625
        $region122: #{tpu_custom_call.1} parent=113 // pred_fallthru
          _
      $region114: #{tpu_custom_call.1} parent=5 // pred_fallthru
        _
      %p5643 = scmp.le.s32.totalorder 2, %s26
      // Predicated region
      $region123: #{tpu_custom_call.1} parent=5 // pred_check
        %p5644 = pneg %p5643
      $region124: #{tpu_custom_call.1} parent=5 // pred_check_branch
        %5646 = sbr.rel (%p5644) target = $region126
      $region125: #{tpu_custom_call.1} parent=5 // pred_region
        %s5647 = ssub.s32 %s26, 2
        // Predicated region
        $region127: #{tpu_custom_call.1} parent=125 // pred_check
          %p5648 = pneg %p375
        $region128: #{tpu_custom_call.1} parent=125 // pred_check_branch
          %5650 = sbr.rel (%p5648) target = $region130
        $region129: #{tpu_custom_call.1} parent=125 // pred_region
          %s5651 = sand.u32 %s360, 1
          %s5652 = scalar_lea.sflag [#allocation5], %s5651
          %s5653 = sand.u32 %s360, 1
          %s5654 = smul.addr %s5653, 2
          %s5655 = scalar_lea.vmem [#allocation4], %s5654
          %5656 = dma.done %s5652, 32
        $region130: #{tpu_custom_call.1} parent=125 // pred_fallthru
          _
      $region126: #{tpu_custom_call.1} parent=5 // pred_fallthru
        _
    $region6: #{tpu_custom_call.1} parent=1 // loop_footer
      %s30 = sadd.s32 1, %s26
    $region7: #{tpu_custom_call.1} parent=1 // loop_footer_branch
      %25 = sbr.rel target = $region3
    $region8: #{tpu_custom_call.1} parent=1 // loop_exit
      _
    %5657 = vsyncpa [#allocation5], 1
    %s5658 = scalar_lea.sflag [#allocation5], 1
    %5659 = vsyncpa %s5658, 1

</llo_original>
